<compile_context>
chip_gen: v6e
topology: v6e:2x2x1
jax: 0.10.0
libtpu: 0.0.40
codegen_flags: <defaults>
</compile_context>

<pallas_src>
import math

import jax
import jax.numpy as jnp
from jax.experimental import pallas as pl
from jax.experimental.pallas import tpu as pltpu


# ---------------------------------------------------------------------------
# helpers
# ---------------------------------------------------------------------------
def _round_up(a: int, b: int) -> int:
    return (a + b - 1) // b * b


def _vmem_bytes(shape, dtype) -> int:
    """Rough VMEM footprint of one buffer under (sublane, 128)-lane tiling."""
    itemsize = jnp.dtype(dtype).itemsize
    sub = 8 * max(1, 4 // itemsize)          # 8 rows f32, 16 bf16, 32 int8
    if len(shape) < 2:
        return _round_up(int(math.prod(shape)) * itemsize, 1024)
    lead = int(math.prod(shape[:-2])) if len(shape) > 2 else 1
    return lead * _round_up(shape[-2], sub) * _round_up(shape[-1], 128) * itemsize


# ---------------------------------------------------------------------------
# fused (conv -> relu -> conv -> relu) kernel, one grid step per image
# ---------------------------------------------------------------------------
def _make_fused_kernel(K, p, H, W, Cin, Cout, Ho1, Wo1, Ho2, Wo2):
    M1, M2 = Ho1 * Wo1, Ho2 * Wo2

    def kernel(x_ref, w1_ref, b1_ref, w2t_ref, b2_ref, o_ref,
               x1p_ref, x2p_ref, p1_ref, p2_ref):
        # x_ref   : (1, H, W, Cin)           bf16  input image (unpadded, NHWC)
        # w1_ref  : (K*K*Cin, Cout)          bf16  conv1 weights, taps flattened (ky,kx,c)
        # b1_ref  : (1, Cout)                f32
        # w2t_ref : (Cout, K*K*Cout)         bf16  conv2 weights, transposed
        # b2_ref  : (Cout, 1)                f32
        # o_ref   : (1, Cout, Ho2*Wo2)       f32   channel-major, lane-dense output
        # x1p_ref : (H+2p, W+2p, Cin)        f32   scratch: padded input slab
        # x2p_ref : (Ho1+2p, Wo1+2p, Cout)   f32   scratch: padded conv1 activation
        # p1_ref  : (M1, K*K*Cin)            f32   scratch: conv1 im2col patch
        # p2_ref  : (M2, K*K*Cout)           f32   scratch: conv2 im2col patch
        #
        # Scratch slabs are kept f32 so all sub-window / lane-offset stores use
        # the plain unpacked relayout path; the MXU inputs are cast to bf16
        # right before the dots.

        def im2col(xp_ref, patch_ref, Ho, Wo, C):
            # Fold every (ky, kx) tap into the contraction axis: each tap is a
            # static window slice + a lane-offset store into the patch scratch.
            for ky in range(K):
                for kx in range(K):
                    tap = xp_ref[ky:ky + Ho, kx:kx + Wo, :]          # (Ho, Wo, C)
                    col = (ky * K + kx) * C
                    patch_ref[:, col:col + C] = tap.reshape(Ho * Wo, C)

        # ---- stage padded input slab in VMEM (no jnp.pad / extra HBM pass) --
        if p > 0:
            x1p_ref[...] = jnp.zeros_like(x1p_ref)
        x1p_ref[p:p + H, p:p + W, :] = x_ref[0].astype(x1p_ref.dtype)

        # ---- conv1 + bias + ReLU: one MXU matmul, contraction K*K*Cin -------
        im2col(x1p_ref, p1_ref, Ho1, Wo1, Cin)
        y1 = jnp.dot(p1_ref[...].astype(jnp.bfloat16), w1_ref[...],
                     preferred_element_type=jnp.float32)             # (M1, Cout)
        y1 = jnp.maximum(y1 + b1_ref[...], 0.0)

        # ---- conv1 activation stays in VMEM (fused), with its conv2 halo ----
        if p > 0:
            x2p_ref[...] = jnp.zeros_like(x2p_ref)
        x2p_ref[p:p + Ho1, p:p + Wo1, :] = (
            y1.reshape(Ho1, Wo1, Cout).astype(x2p_ref.dtype))

        # ---- conv2 + bias + ReLU: output channel-major => lane-dense store --
        im2col(x2p_ref, p2_ref, Ho2, Wo2, Cout)
        y2 = jax.lax.dot_general(                                     # (Cout, M2)
            w2t_ref[...], p2_ref[...].astype(jnp.bfloat16),
            dimension_numbers=(((1,), (1,)), ((), ())),
            preferred_element_type=jnp.float32)
        y2 = jnp.maximum(y2 + b2_ref[...], 0.0)
        o_ref[...] = y2.reshape(1, Cout, M2).astype(o_ref.dtype)

    return kernel


def _convblock_fused(x_nhwc, w1, b1, w2t, b2, *, kernel_size, padding, out_dtype):
    """x_nhwc: (N, H, W, Cin) bf16; returns (N, Cout, Ho2*Wo2) in out_dtype."""
    N, H, W, Cin = x_nhwc.shape
    K = kernel_size
    Cout = w1.shape[-1]
    p = (K - 1) // 2 if padding == "same" else 0
    Ho1, Wo1 = (H, W) if padding == "same" else (H - K + 1, W - K + 1)
    Ho2, Wo2 = (Ho1, Wo1) if padding == "same" else (Ho1 - K + 1, Wo1 - K + 1)
    Hp1, Wp1 = H + 2 * p, W + 2 * p
    Hp2, Wp2 = Ho1 + 2 * p, Wo1 + 2 * p
    M1, M2 = Ho1 * Wo1, Ho2 * Wo2

    # TODO(synk): for very large feature maps add an H-tiled grid axis with a
    # (K-1)-row halo (and bf16 VMEM slabs) so the working set fits v7x's 64 MiB
    # VMEM; whole-image blocks are used here since the shapes are small.

    footprint = (
        2 * _vmem_bytes((1, H, W, Cin), x_nhwc.dtype)          # double-buffered input
        + 2 * _vmem_bytes((1, Cout, M2), out_dtype)            # double-buffered output
        + 2 * (_vmem_bytes(w1.shape, w1.dtype) + _vmem_bytes(b1.shape, b1.dtype)
               + _vmem_bytes(w2t.shape, w2t.dtype) + _vmem_bytes(b2.shape, b2.dtype))
        + _vmem_bytes((Hp1, Wp1, Cin), jnp.float32)
        + _vmem_bytes((Hp2, Wp2, Cout), jnp.float32)
        + _vmem_bytes((M1, K * K * Cin), jnp.float32)
        + _vmem_bytes((M2, K * K * Cout), jnp.float32)
        + (4 << 20)                                            # relayout / spill headroom
    )
    try:
        phys_vmem = int(getattr(pltpu.get_tpu_info(), "vmem_capacity_bytes", 128 << 20))
    except Exception:
        phys_vmem = 64 << 20                                   # conservative (v7x) fallback
    vmem_limit = int(min(max(footprint, 16 << 20), (phys_vmem * 3) // 4))

    itemsize_out = jnp.dtype(out_dtype).itemsize
    cost = pl.CostEstimate(
        flops=2 * N * (M1 * K * K * Cin * Cout + M2 * K * K * Cout * Cout),
        transcendentals=0,
        bytes_accessed=int(N * H * W * Cin * 2 + N * Cout * M2 * itemsize_out
                           + (w1.size + w2t.size) * 2 + (b1.size + b2.size) * 4),
    )

    kernel = _make_fused_kernel(K, p, H, W, Cin, Cout, Ho1, Wo1, Ho2, Wo2)

    return pl.pallas_call(
        kernel,
        out_shape=jax.ShapeDtypeStruct((N, Cout, M2), out_dtype),
        grid_spec=pltpu.PrefetchScalarGridSpec(
            num_scalar_prefetch=0,
            grid=(N,),
            in_specs=[
                # Block trailing dims equal the full array dims -> (8,128) rule ok.
                pl.BlockSpec((1, H, W, Cin), lambda n: (n, 0, 0, 0)),
                # Weights / biases are grid-invariant (tiny; re-fetched blocks hit
                # the same data every step).
                pl.BlockSpec((K * K * Cin, Cout), lambda n: (0, 0)),
                pl.BlockSpec((1, Cout), lambda n: (0, 0)),
                pl.BlockSpec((Cout, K * K * Cout), lambda n: (0, 0)),
                pl.BlockSpec((Cout, 1), lambda n: (0, 0)),
            ],
            out_specs=pl.BlockSpec((1, Cout, M2), lambda n: (n, 0, 0)),
            scratch_shapes=[
                pltpu.VMEM((Hp1, Wp1, Cin), jnp.float32),
                pltpu.VMEM((Hp2, Wp2, Cout), jnp.float32),
                pltpu.VMEM((M1, K * K * Cin), jnp.float32),
                pltpu.VMEM((M2, K * K * Cout), jnp.float32),
            ],
        ),
        compiler_params=pltpu.CompilerParams(
            dimension_semantics=("parallel",),
            vmem_limit_bytes=vmem_limit,
        ),
        cost_estimate=cost,
    )(x_nhwc, w1, b1, w2t, b2)


# ---------------------------------------------------------------------------
# module wrapper
# ---------------------------------------------------------------------------
class ConvBlock:
    """JAX/Pallas port of the PyTorch ConvBlock: 2x (Conv2d + ReLU), ndim=2."""

    def __init__(self, in_channels: int, out_channels: int, kernel_size: int,
                 padding: str = "same", ndim: int = 2, *, key=None,
                 dtype=jnp.float32):
        if ndim not in (2, 3):
            raise ValueError(
                f"Invalid number of dimensions: ndim={ndim!r}. Options are 2 or 3.")
        if kernel_size % 2 == 0:
            raise ValueError("Only allowing odd kernel sizes.")
        if padding not in ("same", "valid"):
            raise ValueError(f"Invalid padding: {padding!r}")
        if ndim == 3:
            # TODO(synk): Conv3d (ndim=3) path is not implemented in this Pallas port.
            raise NotImplementedError("Only ndim=2 is implemented in the Pallas port.")

        self.in_channels = in_channels
        self.out_channels = out_channels
        self.kernel_size = kernel_size
        self.padding = padding
        self.ndim = ndim

        if key is None:
            key = jax.random.PRNGKey(0)
        k1, k2, k3, k4 = jax.random.split(key, 4)
        K = kernel_size

        def _init(kw, kb, cin, cout):
            fan_in = cin * K * K
            std = (2.0 / fan_in) ** 0.5               # kaiming_normal_, relu gain
            # Weights stored with taps flattened row-major over (ky, kx, cin).
            w = std * jax.random.normal(kw, (K * K * cin, cout), dtype=dtype)
            bound = 1.0 / (fan_in ** 0.5)             # PyTorch default bias init
            b = jax.random.uniform(kb, (cout,), dtype=dtype,
                                   minval=-bound, maxval=bound)
            return w, b

        self.w1, self.b1 = _init(k1, k2, in_channels, out_channels)
        self.w2, self.b2 = _init(k3, k4, out_channels, out_channels)

    def __call__(self, x: jax.Array) -> jax.Array:
        # x: (N, C, H, W) like the PyTorch module.
        N, Cin, H, W = x.shape
        K = self.kernel_size
        # bf16 at the pallas_call boundary halves the HBM activation traffic and
        # runs the MXU in bf16; accumulation / bias / ReLU stay f32 in-kernel.
        x_nhwc = jnp.transpose(x, (0, 2, 3, 1)).astype(jnp.bfloat16)
        y = _convblock_fused(
            x_nhwc,
            self.w1.astype(jnp.bfloat16),
            self.b1.reshape(1, -1).astype(jnp.float32),
            jnp.transpose(self.w2).astype(jnp.bfloat16),     # (Cout, K*K*Cout)
            self.b2.reshape(-1, 1).astype(jnp.float32),
            kernel_size=K, padding=self.padding, out_dtype=x.dtype)
        if self.padding == "same":
            Ho2, Wo2 = H, W
        else:
            Ho2, Wo2 = H - 2 * (K - 1), W - 2 * (K - 1)
        # Kernel already emits channel-major (N, Cout, Ho*Wo): a reshape gives NCHW.
        return y.reshape(N, self.out_channels, Ho2, Wo2)


# ---------------------------------------------------------------------------
# pure-JAX reference (same bf16 boundary cast, f32 HIGHEST-precision convs)
# ---------------------------------------------------------------------------
def _reference_convblock(x, block: ConvBlock):
    K = block.kernel_size
    pad = "SAME" if block.padding == "same" else "VALID"
    q = lambda a: a.astype(jnp.bfloat16).astype(jnp.float32)

    def conv_relu(x, w_flat, b, cin, cout):
        w_oihw = w_flat.reshape(K, K, cin, cout).transpose(3, 2, 0, 1)
        y = jax.lax.conv_general_dilated(
            q(x), q(w_oihw), window_strides=(1, 1), padding=pad,
            dimension_numbers=("NCHW", "OIHW", "NCHW"),
            precision=jax.lax.Precision.HIGHEST)
        return jnp.maximum(y + b.reshape(1, cout, 1, 1), 0.0)

    y = conv_relu(x, block.w1, block.b1, block.in_channels, block.out_channels)
    return conv_relu(y, block.w2, block.b2, block.out_channels, block.out_channels)


if __name__ == "__main__":
    key = jax.random.PRNGKey(0)
    kx, kp = jax.random.split(key)

    N, Cin, Cout, H, W, Ksz = 2, 4, 8, 16, 16, 3
    x = jax.random.normal(kx, (N, Cin, H, W), dtype=jnp.float32)

    block = ConvBlock(Cin, Cout, Ksz, padding="same", ndim=2, key=kp)
    y = jax.block_until_ready(block(x))

    y_ref = _reference_convblock(x, block)
    assert y.shape == (N, Cout, H, W), y.shape
    err = float(jnp.max(jnp.abs(y - y_ref)))
    assert jnp.allclose(y, y_ref, atol=1e-2, rtol=1e-2), err

    print("KERNEL_OK")
</pallas_src>

<mosaic_0001>
module attributes {stable_mosaic.version = 11 : i64} {
  func.func @kernel(%arg0: i32, %arg1: memref<1x16x16x4xbf16, #tpu.memory_space<vmem>>, %arg2: memref<36x8xbf16, #tpu.memory_space<vmem>>, %arg3: memref<1x8xf32, #tpu.memory_space<vmem>>, %arg4: memref<8x72xbf16, #tpu.memory_space<vmem>>, %arg5: memref<8x1xf32, #tpu.memory_space<vmem>>, %arg6: memref<1x8x256xf32, #tpu.memory_space<vmem>>, %arg7: memref<18x18x4xf32, #tpu.memory_space<vmem>>, %arg8: memref<18x18x8xf32, #tpu.memory_space<vmem>>, %arg9: memref<256x36xf32, #tpu.memory_space<vmem>>, %arg10: memref<256x72xf32, #tpu.memory_space<vmem>>) attributes {dimension_semantics = [#tpu.dimension_semantics<parallel>], iteration_bounds = array<i64: 2>, scalar_prefetch = 0 : i64, scratch_operands = 4 : i64, tpu.core_type = #tpu.core_type<tc>, window_params = [{transform_indices = @transform_0, window_bounds = array<i64: 1, 16, 16, 4>}, {pipeline_mode = #tpu.pipeline_mode<synchronous>, transform_indices = @transform_1, window_bounds = array<i64: 36, 8>}, {pipeline_mode = #tpu.pipeline_mode<synchronous>, transform_indices = @transform_2, window_bounds = array<i64: 1, 8>}, {pipeline_mode = #tpu.pipeline_mode<synchronous>, transform_indices = @transform_3, window_bounds = array<i64: 8, 72>}, {pipeline_mode = #tpu.pipeline_mode<synchronous>, transform_indices = @transform_4, window_bounds = array<i64: 8, 1>}, {transform_indices = @transform_5, window_bounds = array<i64: 1, 8, 256>}]} {
    %cst = arith.constant 0.000000e+00 : f32
    %0 = vector.broadcast %cst : f32 to vector<18x18x4xf32>
    %c0 = arith.constant 0 : index
    %c0_0 = arith.constant 0 : index
    %c0_1 = arith.constant 0 : index
    %1 = vector.load %arg7[%c0, %c0_0, %c0_1] : memref<18x18x4xf32, #tpu.memory_space<vmem>>, vector<18x18x4xf32>
    tpu.vector_store %arg7[%c0, %c0_0, %c0_1], %0 {strides = array<i32>} : memref<18x18x4xf32, #tpu.memory_space<vmem>>, vector<18x18x4xf32>,
    %c0_2 = arith.constant 0 : index
    %c0_3 = arith.constant 0 : index
    %c0_4 = arith.constant 0 : index
    %c0_5 = arith.constant 0 : index
    %2 = vector.load %arg1[%c0_2, %c0_3, %c0_4, %c0_5] : memref<1x16x16x4xbf16, #tpu.memory_space<vmem>>, vector<1x16x16x4xbf16>
    %3 = vector.shape_cast %2 : vector<1x16x16x4xbf16> to vector<16x16x4xbf16>
    %4 = arith.extf %3 : vector<16x16x4xbf16> to vector<16x16x4xf32>
    %c1 = arith.constant 1 : index
    %c1_6 = arith.constant 1 : index
    %c0_7 = arith.constant 0 : index
    %5 = vector.load %arg7[%c1, %c1_6, %c0_7] : memref<18x18x4xf32, #tpu.memory_space<vmem>>, vector<16x16x4xf32>
    tpu.vector_store %arg7[%c1, %c1_6, %c0_7], %4 {strides = array<i32>} : memref<18x18x4xf32, #tpu.memory_space<vmem>>, vector<16x16x4xf32>,
    %c0_8 = arith.constant 0 : index
    %c0_9 = arith.constant 0 : index
    %c0_10 = arith.constant 0 : index
    %6 = vector.load %arg7[%c0_8, %c0_9, %c0_10] : memref<18x18x4xf32, #tpu.memory_space<vmem>>, vector<16x16x4xf32>
    %7 = vector.shape_cast %6 : vector<16x16x4xf32> to vector<256x4xf32>
    %c0_11 = arith.constant 0 : index
    %c0_12 = arith.constant 0 : index
    %8 = vector.load %arg9[%c0_11, %c0_12] : memref<256x36xf32, #tpu.memory_space<vmem>>, vector<256x4xf32>
    tpu.vector_store %arg9[%c0_11, %c0_12], %7 {strides = array<i32>} : memref<256x36xf32, #tpu.memory_space<vmem>>, vector<256x4xf32>,
    %c0_13 = arith.constant 0 : index
    %c1_14 = arith.constant 1 : index
    %c0_15 = arith.constant 0 : index
    %9 = vector.load %arg7[%c0_13, %c1_14, %c0_15] : memref<18x18x4xf32, #tpu.memory_space<vmem>>, vector<16x16x4xf32>
    %10 = vector.shape_cast %9 : vector<16x16x4xf32> to vector<256x4xf32>
    %c0_16 = arith.constant 0 : index
    %c4 = arith.constant 4 : index
    %11 = vector.load %arg9[%c0_16, %c4] : memref<256x36xf32, #tpu.memory_space<vmem>>, vector<256x4xf32>
    tpu.vector_store %arg9[%c0_16, %c4], %10 {strides = array<i32>} : memref<256x36xf32, #tpu.memory_space<vmem>>, vector<256x4xf32>,
    %c0_17 = arith.constant 0 : index
    %c2 = arith.constant 2 : index
    %c0_18 = arith.constant 0 : index
    %12 = vector.load %arg7[%c0_17, %c2, %c0_18] : memref<18x18x4xf32, #tpu.memory_space<vmem>>, vector<16x16x4xf32>
    %13 = vector.shape_cast %12 : vector<16x16x4xf32> to vector<256x4xf32>
    %c0_19 = arith.constant 0 : index
    %c8 = arith.constant 8 : index
    %14 = vector.load %arg9[%c0_19, %c8] : memref<256x36xf32, #tpu.memory_space<vmem>>, vector<256x4xf32>
    tpu.vector_store %arg9[%c0_19, %c8], %13 {strides = array<i32>} : memref<256x36xf32, #tpu.memory_space<vmem>>, vector<256x4xf32>,
    %c1_20 = arith.constant 1 : index
    %c0_21 = arith.constant 0 : index
    %c0_22 = arith.constant 0 : index
    %15 = vector.load %arg7[%c1_20, %c0_21, %c0_22] : memref<18x18x4xf32, #tpu.memory_space<vmem>>, vector<16x16x4xf32>
    %16 = vector.shape_cast %15 : vector<16x16x4xf32> to vector<256x4xf32>
    %c0_23 = arith.constant 0 : index
    %c12 = arith.constant 12 : index
    %17 = vector.load %arg9[%c0_23, %c12] : memref<256x36xf32, #tpu.memory_space<vmem>>, vector<256x4xf32>
    tpu.vector_store %arg9[%c0_23, %c12], %16 {strides = array<i32>} : memref<256x36xf32, #tpu.memory_space<vmem>>, vector<256x4xf32>,
    %c1_24 = arith.constant 1 : index
    %c1_25 = arith.constant 1 : index
    %c0_26 = arith.constant 0 : index
    %18 = vector.load %arg7[%c1_24, %c1_25, %c0_26] : memref<18x18x4xf32, #tpu.memory_space<vmem>>, vector<16x16x4xf32>
    %19 = vector.shape_cast %18 : vector<16x16x4xf32> to vector<256x4xf32>
    %c0_27 = arith.constant 0 : index
    %c16 = arith.constant 16 : index
    %20 = vector.load %arg9[%c0_27, %c16] : memref<256x36xf32, #tpu.memory_space<vmem>>, vector<256x4xf32>
    tpu.vector_store %arg9[%c0_27, %c16], %19 {strides = array<i32>} : memref<256x36xf32, #tpu.memory_space<vmem>>, vector<256x4xf32>,
    %c1_28 = arith.constant 1 : index
    %c2_29 = arith.constant 2 : index
    %c0_30 = arith.constant 0 : index
    %21 = vector.load %arg7[%c1_28, %c2_29, %c0_30] : memref<18x18x4xf32, #tpu.memory_space<vmem>>, vector<16x16x4xf32>
    %22 = vector.shape_cast %21 : vector<16x16x4xf32> to vector<256x4xf32>
    %c0_31 = arith.constant 0 : index
    %c20 = arith.constant 20 : index
    %23 = vector.load %arg9[%c0_31, %c20] : memref<256x36xf32, #tpu.memory_space<vmem>>, vector<256x4xf32>
    tpu.vector_store %arg9[%c0_31, %c20], %22 {strides = array<i32>} : memref<256x36xf32, #tpu.memory_space<vmem>>, vector<256x4xf32>,
    %c2_32 = arith.constant 2 : index
    %c0_33 = arith.constant 0 : index
    %c0_34 = arith.constant 0 : index
    %24 = vector.load %arg7[%c2_32, %c0_33, %c0_34] : memref<18x18x4xf32, #tpu.memory_space<vmem>>, vector<16x16x4xf32>
    %25 = vector.shape_cast %24 : vector<16x16x4xf32> to vector<256x4xf32>
    %c0_35 = arith.constant 0 : index
    %c24 = arith.constant 24 : index
    %26 = vector.load %arg9[%c0_35, %c24] : memref<256x36xf32, #tpu.memory_space<vmem>>, vector<256x4xf32>
    tpu.vector_store %arg9[%c0_35, %c24], %25 {strides = array<i32>} : memref<256x36xf32, #tpu.memory_space<vmem>>, vector<256x4xf32>,
    %c2_36 = arith.constant 2 : index
    %c1_37 = arith.constant 1 : index
    %c0_38 = arith.constant 0 : index
    %27 = vector.load %arg7[%c2_36, %c1_37, %c0_38] : memref<18x18x4xf32, #tpu.memory_space<vmem>>, vector<16x16x4xf32>
    %28 = vector.shape_cast %27 : vector<16x16x4xf32> to vector<256x4xf32>
    %c0_39 = arith.constant 0 : index
    %c28 = arith.constant 28 : index
    %29 = vector.load %arg9[%c0_39, %c28] : memref<256x36xf32, #tpu.memory_space<vmem>>, vector<256x4xf32>
    tpu.vector_store %arg9[%c0_39, %c28], %28 {strides = array<i32>} : memref<256x36xf32, #tpu.memory_space<vmem>>, vector<256x4xf32>,
    %c2_40 = arith.constant 2 : index
    %c2_41 = arith.constant 2 : index
    %c0_42 = arith.constant 0 : index
    %30 = vector.load %arg7[%c2_40, %c2_41, %c0_42] : memref<18x18x4xf32, #tpu.memory_space<vmem>>, vector<16x16x4xf32>
    %31 = vector.shape_cast %30 : vector<16x16x4xf32> to vector<256x4xf32>
    %c0_43 = arith.constant 0 : index
    %c32 = arith.constant 32 : index
    %32 = vector.load %arg9[%c0_43, %c32] : memref<256x36xf32, #tpu.memory_space<vmem>>, vector<256x4xf32>
    tpu.vector_store %arg9[%c0_43, %c32], %31 {strides = array<i32>} : memref<256x36xf32, #tpu.memory_space<vmem>>, vector<256x4xf32>,
    %c0_44 = arith.constant 0 : index
    %c0_45 = arith.constant 0 : index
    %33 = vector.load %arg9[%c0_44, %c0_45] : memref<256x36xf32, #tpu.memory_space<vmem>>, vector<256x36xf32>
    %34 = arith.truncf %33 : vector<256x36xf32> to vector<256x36xbf16>
    %c0_46 = arith.constant 0 : index
    %c0_47 = arith.constant 0 : index
    %35 = vector.load %arg2[%c0_46, %c0_47] : memref<36x8xbf16, #tpu.memory_space<vmem>>, vector<36x8xbf16>
    %cst_48 = arith.constant dense<0.000000e+00> : vector<256x8xf32>
    %36 = tpu.matmul %34, %35, %cst_48 {dimension_numbers = #tpu.dot_dimension_numbers<[1], [0], [0], [1], [0, 0, 1, 1], [], []>} : vector<256x36xbf16>, vector<36x8xbf16>, vector<256x8xf32> -> vector<256x8xf32>
    %c0_49 = arith.constant 0 : index
    %c0_50 = arith.constant 0 : index
    %37 = vector.load %arg3[%c0_49, %c0_50] : memref<1x8xf32, #tpu.memory_space<vmem>>, vector<1x8xf32>
    %38 = vector.broadcast %37 : vector<1x8xf32> to vector<256x8xf32>
    %39 = arith.addf %36, %38 : vector<256x8xf32>
    %cst_51 = arith.constant 0.000000e+00 : f32
    %40 = vector.broadcast %cst_51 : f32 to vector<256x8xf32>
    %41 = arith.maximumf %39, %40 : vector<256x8xf32>
    %cst_52 = arith.constant 0.000000e+00 : f32
    %42 = vector.broadcast %cst_52 : f32 to vector<18x18x8xf32>
    %c0_53 = arith.constant 0 : index
    %c0_54 = arith.constant 0 : index
    %c0_55 = arith.constant 0 : index
    %43 = vector.load %arg8[%c0_53, %c0_54, %c0_55] : memref<18x18x8xf32, #tpu.memory_space<vmem>>, vector<18x18x8xf32>
    tpu.vector_store %arg8[%c0_53, %c0_54, %c0_55], %42 {strides = array<i32>} : memref<18x18x8xf32, #tpu.memory_space<vmem>>, vector<18x18x8xf32>,
    %44 = vector.shape_cast %41 : vector<256x8xf32> to vector<16x16x8xf32>
    %c1_56 = arith.constant 1 : index
    %c1_57 = arith.constant 1 : index
    %c0_58 = arith.constant 0 : index
    %45 = vector.load %arg8[%c1_56, %c1_57, %c0_58] : memref<18x18x8xf32, #tpu.memory_space<vmem>>, vector<16x16x8xf32>
    tpu.vector_store %arg8[%c1_56, %c1_57, %c0_58], %44 {strides = array<i32>} : memref<18x18x8xf32, #tpu.memory_space<vmem>>, vector<16x16x8xf32>,
    %c0_59 = arith.constant 0 : index
    %c0_60 = arith.constant 0 : index
    %c0_61 = arith.constant 0 : index
    %46 = vector.load %arg8[%c0_59, %c0_60, %c0_61] : memref<18x18x8xf32, #tpu.memory_space<vmem>>, vector<16x16x8xf32>
    %47 = vector.shape_cast %46 : vector<16x16x8xf32> to vector<256x8xf32>
    %c0_62 = arith.constant 0 : index
    %c0_63 = arith.constant 0 : index
    %48 = vector.load %arg10[%c0_62, %c0_63] : memref<256x72xf32, #tpu.memory_space<vmem>>, vector<256x8xf32>
    tpu.vector_store %arg10[%c0_62, %c0_63], %47 {strides = array<i32>} : memref<256x72xf32, #tpu.memory_space<vmem>>, vector<256x8xf32>,
    %c0_64 = arith.constant 0 : index
    %c1_65 = arith.constant 1 : index
    %c0_66 = arith.constant 0 : index
    %49 = vector.load %arg8[%c0_64, %c1_65, %c0_66] : memref<18x18x8xf32, #tpu.memory_space<vmem>>, vector<16x16x8xf32>
    %50 = vector.shape_cast %49 : vector<16x16x8xf32> to vector<256x8xf32>
    %c0_67 = arith.constant 0 : index
    %c8_68 = arith.constant 8 : index
    %51 = vector.load %arg10[%c0_67, %c8_68] : memref<256x72xf32, #tpu.memory_space<vmem>>, vector<256x8xf32>
    tpu.vector_store %arg10[%c0_67, %c8_68], %50 {strides = array<i32>} : memref<256x72xf32, #tpu.memory_space<vmem>>, vector<256x8xf32>,
    %c0_69 = arith.constant 0 : index
    %c2_70 = arith.constant 2 : index
    %c0_71 = arith.constant 0 : index
    %52 = vector.load %arg8[%c0_69, %c2_70, %c0_71] : memref<18x18x8xf32, #tpu.memory_space<vmem>>, vector<16x16x8xf32>
    %53 = vector.shape_cast %52 : vector<16x16x8xf32> to vector<256x8xf32>
    %c0_72 = arith.constant 0 : index
    %c16_73 = arith.constant 16 : index
    %54 = vector.load %arg10[%c0_72, %c16_73] : memref<256x72xf32, #tpu.memory_space<vmem>>, vector<256x8xf32>
    tpu.vector_store %arg10[%c0_72, %c16_73], %53 {strides = array<i32>} : memref<256x72xf32, #tpu.memory_space<vmem>>, vector<256x8xf32>,
    %c1_74 = arith.constant 1 : index
    %c0_75 = arith.constant 0 : index
    %c0_76 = arith.constant 0 : index
    %55 = vector.load %arg8[%c1_74, %c0_75, %c0_76] : memref<18x18x8xf32, #tpu.memory_space<vmem>>, vector<16x16x8xf32>
    %56 = vector.shape_cast %55 : vector<16x16x8xf32> to vector<256x8xf32>
    %c0_77 = arith.constant 0 : index
    %c24_78 = arith.constant 24 : index
    %57 = vector.load %arg10[%c0_77, %c24_78] : memref<256x72xf32, #tpu.memory_space<vmem>>, vector<256x8xf32>
    tpu.vector_store %arg10[%c0_77, %c24_78], %56 {strides = array<i32>} : memref<256x72xf32, #tpu.memory_space<vmem>>, vector<256x8xf32>,
    %c1_79 = arith.constant 1 : index
    %c1_80 = arith.constant 1 : index
    %c0_81 = arith.constant 0 : index
    %58 = vector.load %arg8[%c1_79, %c1_80, %c0_81] : memref<18x18x8xf32, #tpu.memory_space<vmem>>, vector<16x16x8xf32>
    %59 = vector.shape_cast %58 : vector<16x16x8xf32> to vector<256x8xf32>
    %c0_82 = arith.constant 0 : index
    %c32_83 = arith.constant 32 : index
    %60 = vector.load %arg10[%c0_82, %c32_83] : memref<256x72xf32, #tpu.memory_space<vmem>>, vector<256x8xf32>
    tpu.vector_store %arg10[%c0_82, %c32_83], %59 {strides = array<i32>} : memref<256x72xf32, #tpu.memory_space<vmem>>, vector<256x8xf32>,
    %c1_84 = arith.constant 1 : index
    %c2_85 = arith.constant 2 : index
    %c0_86 = arith.constant 0 : index
    %61 = vector.load %arg8[%c1_84, %c2_85, %c0_86] : memref<18x18x8xf32, #tpu.memory_space<vmem>>, vector<16x16x8xf32>
    %62 = vector.shape_cast %61 : vector<16x16x8xf32> to vector<256x8xf32>
    %c0_87 = arith.constant 0 : index
    %c40 = arith.constant 40 : index
    %63 = vector.load %arg10[%c0_87, %c40] : memref<256x72xf32, #tpu.memory_space<vmem>>, vector<256x8xf32>
    tpu.vector_store %arg10[%c0_87, %c40], %62 {strides = array<i32>} : memref<256x72xf32, #tpu.memory_space<vmem>>, vector<256x8xf32>,
    %c2_88 = arith.constant 2 : index
    %c0_89 = arith.constant 0 : index
    %c0_90 = arith.constant 0 : index
    %64 = vector.load %arg8[%c2_88, %c0_89, %c0_90] : memref<18x18x8xf32, #tpu.memory_space<vmem>>, vector<16x16x8xf32>
    %65 = vector.shape_cast %64 : vector<16x16x8xf32> to vector<256x8xf32>
    %c0_91 = arith.constant 0 : index
    %c48 = arith.constant 48 : index
    %66 = vector.load %arg10[%c0_91, %c48] : memref<256x72xf32, #tpu.memory_space<vmem>>, vector<256x8xf32>
    tpu.vector_store %arg10[%c0_91, %c48], %65 {strides = array<i32>} : memref<256x72xf32, #tpu.memory_space<vmem>>, vector<256x8xf32>,
    %c2_92 = arith.constant 2 : index
    %c1_93 = arith.constant 1 : index
    %c0_94 = arith.constant 0 : index
    %67 = vector.load %arg8[%c2_92, %c1_93, %c0_94] : memref<18x18x8xf32, #tpu.memory_space<vmem>>, vector<16x16x8xf32>
    %68 = vector.shape_cast %67 : vector<16x16x8xf32> to vector<256x8xf32>
    %c0_95 = arith.constant 0 : index
    %c56 = arith.constant 56 : index
    %69 = vector.load %arg10[%c0_95, %c56] : memref<256x72xf32, #tpu.memory_space<vmem>>, vector<256x8xf32>
    tpu.vector_store %arg10[%c0_95, %c56], %68 {strides = array<i32>} : memref<256x72xf32, #tpu.memory_space<vmem>>, vector<256x8xf32>,
    %c2_96 = arith.constant 2 : index
    %c2_97 = arith.constant 2 : index
    %c0_98 = arith.constant 0 : index
    %70 = vector.load %arg8[%c2_96, %c2_97, %c0_98] : memref<18x18x8xf32, #tpu.memory_space<vmem>>, vector<16x16x8xf32>
    %71 = vector.shape_cast %70 : vector<16x16x8xf32> to vector<256x8xf32>
    %c0_99 = arith.constant 0 : index
    %c64 = arith.constant 64 : index
    %72 = vector.load %arg10[%c0_99, %c64] : memref<256x72xf32, #tpu.memory_space<vmem>>, vector<256x8xf32>
    tpu.vector_store %arg10[%c0_99, %c64], %71 {strides = array<i32>} : memref<256x72xf32, #tpu.memory_space<vmem>>, vector<256x8xf32>,
    %c0_100 = arith.constant 0 : index
    %c0_101 = arith.constant 0 : index
    %73 = vector.load %arg4[%c0_100, %c0_101] : memref<8x72xbf16, #tpu.memory_space<vmem>>, vector<8x72xbf16>
    %c0_102 = arith.constant 0 : index
    %c0_103 = arith.constant 0 : index
    %74 = vector.load %arg10[%c0_102, %c0_103] : memref<256x72xf32, #tpu.memory_space<vmem>>, vector<256x72xf32>
    %75 = arith.truncf %74 : vector<256x72xf32> to vector<256x72xbf16>
    %cst_104 = arith.constant dense<0.000000e+00> : vector<8x256xf32>
    %76 = tpu.matmul %73, %75, %cst_104 {dimension_numbers = #tpu.dot_dimension_numbers<[1], [1], [0], [0], [0, 0, 1, 0], [], []>} : vector<8x72xbf16>, vector<256x72xbf16>, vector<8x256xf32> -> vector<8x256xf32>
    %c0_105 = arith.constant 0 : index
    %c0_106 = arith.constant 0 : index
    %77 = vector.load %arg5[%c0_105, %c0_106] : memref<8x1xf32, #tpu.memory_space<vmem>>, vector<8x1xf32>
    %78 = vector.broadcast %77 : vector<8x1xf32> to vector<8x256xf32>
    %79 = arith.addf %76, %78 : vector<8x256xf32>
    %cst_107 = arith.constant 0.000000e+00 : f32
    %80 = vector.broadcast %cst_107 : f32 to vector<8x256xf32>
    %81 = arith.maximumf %79, %80 : vector<8x256xf32>
    %82 = vector.shape_cast %81 : vector<8x256xf32> to vector<1x8x256xf32>
    %c0_108 = arith.constant 0 : index
    %c0_109 = arith.constant 0 : index
    %c0_110 = arith.constant 0 : index
    %83 = vector.load %arg6[%c0_108, %c0_109, %c0_110] : memref<1x8x256xf32, #tpu.memory_space<vmem>>, vector<1x8x256xf32>
    tpu.vector_store %arg6[%c0_108, %c0_109, %c0_110], %82 {strides = array<i32>} : memref<1x8x256xf32, #tpu.memory_space<vmem>>, vector<1x8x256xf32>,
    return
  }
  func.func @transform_0(%arg0: i32) -> (i32, i32, i32, i32) {
    %c0_i32 = arith.constant 0 : i32
    %c0_i32_0 = arith.constant 0 : i32
    %c0_i32_1 = arith.constant 0 : i32
    %c0_i32_2 = arith.constant 0 : i32
    return %arg0, %c0_i32, %c0_i32_0, %c0_i32_1 : i32, i32, i32, i32
  }
  func.func @transform_1(%arg0: i32) -> (i32, i32) {
    %c0_i32 = arith.constant 0 : i32
    %c0_i32_0 = arith.constant 0 : i32
    %c0_i32_1 = arith.constant 0 : i32
    return %c0_i32, %c0_i32_0 : i32, i32
  }
  func.func @transform_2(%arg0: i32) -> (i32, i32) {
    %c0_i32 = arith.constant 0 : i32
    %c0_i32_0 = arith.constant 0 : i32
    %c0_i32_1 = arith.constant 0 : i32
    return %c0_i32, %c0_i32_0 : i32, i32
  }
  func.func @transform_3(%arg0: i32) -> (i32, i32) {
    %c0_i32 = arith.constant 0 : i32
    %c0_i32_0 = arith.constant 0 : i32
    %c0_i32_1 = arith.constant 0 : i32
    return %c0_i32, %c0_i32_0 : i32, i32
  }
  func.func @transform_4(%arg0: i32) -> (i32, i32) {
    %c0_i32 = arith.constant 0 : i32
    %c0_i32_0 = arith.constant 0 : i32
    %c0_i32_1 = arith.constant 0 : i32
    return %c0_i32, %c0_i32_0 : i32, i32
  }
  func.func @transform_5(%arg0: i32) -> (i32, i32, i32) {
    %c0_i32 = arith.constant 0 : i32
    %c0_i32_0 = arith.constant 0 : i32
    %c0_i32_1 = arith.constant 0 : i32
    return %arg0, %c0_i32, %c0_i32_0 : i32, i32, i32
  }
}

</mosaic_0001>

<llo_original>
// kernel: tpu_custom_call.1
$region0: #{tpu_custom_call.1}
  #allocation0 [shape = 'u32[]', space=smem, size = 0x4, offset = 0x4, fixed_abs, tag = 'smem constant byte address 0x4 - core index']
  #allocation1 [shape = 'u32[144,128]{1,0:T(1,128)}', space=vmem, size = 0x12000, scoped, tag = 'internal scratch']
  #allocation2 [shape = 'f32[18,18,4]{2,1,0:T(8,128)}', space=vmem, size = 0x36000, scoped, tag = 'scratch operand']
  #allocation3 [shape = 'f32[18,18,8]{2,1,0:T(8,128)}', space=vmem, size = 0x36000, scoped, tag = 'scratch operand']
  #allocation4 [shape = 'f32[256,36]{1,0:T(8,128)}', space=vmem, size = 0x20000, scoped, tag = 'scratch operand']
  #allocation5 [shape = 'f32[256,72]{1,0:T(8,128)}', space=vmem, size = 0x20000, scoped, tag = 'scratch operand']
  %s0 = inlined_call_operand.vmem [shape: bf16[2,16,16,4], index: 0, kind: input, shape index: {}]
  %s1 = inlined_call_operand.vmem [shape: bf16[36,8], index: 1, kind: input, shape index: {}]
  %s2 = inlined_call_operand.vmem [shape: f32[1,8], index: 2, kind: input, shape index: {}]
  %s3 = inlined_call_operand.vmem [shape: bf16[8,72], index: 3, kind: input, shape index: {}]
  %s4 = inlined_call_operand.vmem [shape: f32[8,1], index: 4, kind: input, shape index: {}]
  %s5 = inlined_call_operand.hbm [shape: f32[2,8,256], index: 5, kind: output, shape index: {}]
  %s6 = sld [smem:[#allocation0]]
  $region53: #{tpu_custom_call.1} parent=0
    _
  %s8 = ssub.s32 1, %s6
  %s9 = scalar_select 0, %s8, %s6
  $region1: #{tpu_custom_call.1} parent=0
    #allocation6 [shape = 'u8[16384]{0}', space=vmem, size = 0x4000, scoped, tag = 'output window, operand 0']
    #allocation7 [shape = 's32[2]{0}', space=sflag, size = 0x8, scoped, tag = 'scoped memory for tpu_custom_call.1']
    %10 = vsyncpa [#allocation7], 0
    %s11 = scalar_lea.sflag [#allocation7], 1
    %12 = vsyncpa %s11, 0
    loop: start=0, step=1, limit=4
    $region2: #{tpu_custom_call.1} parent=1 // loop_pre_header
      _
    $region3: #{tpu_custom_call.1} parent=1 // loop_header
      %s14 = sphi 0, %s18
      %p15 = scmp.ge.s32.totalorder %s14, 4
      %s24 = sphi 0, %s26
      %s27 = sphi 0, %s24
      %s28 = sphi 0, %s27
      %s44 = sphi 0, %s28
      %s48 = sphi 0, %s48
      %s50 = sphi 0, %s48
      %s51 = sphi 0, %s50
      %s65 = sphi 0, %s51
      %s69 = sphi 0, %s69
      %s71 = sphi 0, %s69
      %s72 = sphi 0, %s71
      %s86 = sphi 0, %s72
      %s90 = sphi 0, %s90
      %s92 = sphi 0, %s90
      %s93 = sphi 0, %s92
      %s107 = sphi 0, %s93
      %s111 = sphi 0, %s111
      %s113 = sphi 0, %s111
      %s114 = sphi 0, %s113
      %s128 = sphi 0, %s114
      %s134 = sphi 0, %s136
      %s137 = sphi 0, %s134
      %s138 = sphi 0, %s137
      %s154 = sphi 0, %s138
    $region4: #{tpu_custom_call.1} parent=1 // loop_header_branch
      %17 = sbr.rel (%p15) target = $region8
    $region5: #{tpu_custom_call.1} parent=1 // loop_body
      %s19 = ssub.s32 %s14, 1
      %s20 = ssub.s32 %s14, 2
      %s21 = sadd.s32 %s14, 1
      %s22 = ssub.s32 %s14, %s21
      %p23 = scmp.eq.s32.totalorder %s22, 0
      %s25 = sadd.s32 %s24, 1
      %s26 = scalar_select %p23, %s24, %s25
      %p29 = pneg %p23
      %p30 = scmp.eq.s32.totalorder %s14, 1
      %p31 = por %p29, %p30
      %p32 = scmp.ne.s32.totalorder %s24, %s27
      %p33 = scmp.eq.s32.totalorder %s14, 0
      %p34 = por %p32, %p33
      %p35 = scmp.ne.s32.totalorder %s24, %s27
      %p36 = scmp.eq.s32.totalorder %s19, 1
      %p37 = por %p35, %p36
      %p38 = scmp.ne.s32.totalorder %s27, %s28
      %p39 = scmp.eq.s32.totalorder %s19, 0
      %p40 = por %p38, %p39
      %p41 = scmp.ne.s32.totalorder %s27, %s28
      %p42 = scmp.eq.s32.totalorder %s20, 1
      %p43 = por %p41, %p42
      %p45 = scmp.ne.s32.totalorder %s28, %s44
      %p46 = scmp.eq.s32.totalorder %s20, 0
      %p47 = por %p45, %p46
      %s49 = sadd.s32 %s48, 1
      %p52 = scmp.eq.s32.totalorder %s14, 1
      %p53 = scmp.ne.s32.totalorder %s48, %s50
      %p54 = scmp.eq.s32.totalorder %s14, 0
      %p55 = por %p53, %p54
      %p56 = scmp.ne.s32.totalorder %s48, %s50
      %p57 = scmp.eq.s32.totalorder %s19, 1
      %p58 = por %p56, %p57
      %p59 = scmp.ne.s32.totalorder %s50, %s51
      %p60 = scmp.eq.s32.totalorder %s19, 0
      %p61 = por %p59, %p60
      %p62 = scmp.ne.s32.totalorder %s50, %s51
      %p63 = scmp.eq.s32.totalorder %s20, 1
      %p64 = por %p62, %p63
      %p66 = scmp.ne.s32.totalorder %s51, %s65
      %p67 = scmp.eq.s32.totalorder %s20, 0
      %p68 = por %p66, %p67
      %s70 = sadd.s32 %s69, 1
      %p73 = scmp.eq.s32.totalorder %s14, 1
      %p74 = scmp.ne.s32.totalorder %s69, %s71
      %p75 = scmp.eq.s32.totalorder %s14, 0
      %p76 = por %p74, %p75
      %p77 = scmp.ne.s32.totalorder %s69, %s71
      %p78 = scmp.eq.s32.totalorder %s19, 1
      %p79 = por %p77, %p78
      %p80 = scmp.ne.s32.totalorder %s71, %s72
      %p81 = scmp.eq.s32.totalorder %s19, 0
      %p82 = por %p80, %p81
      %p83 = scmp.ne.s32.totalorder %s71, %s72
      %p84 = scmp.eq.s32.totalorder %s20, 1
      %p85 = por %p83, %p84
      %p87 = scmp.ne.s32.totalorder %s72, %s86
      %p88 = scmp.eq.s32.totalorder %s20, 0
      %p89 = por %p87, %p88
      %s91 = sadd.s32 %s90, 1
      %p94 = scmp.eq.s32.totalorder %s14, 1
      %p95 = scmp.ne.s32.totalorder %s90, %s92
      %p96 = scmp.eq.s32.totalorder %s14, 0
      %p97 = por %p95, %p96
      %p98 = scmp.ne.s32.totalorder %s90, %s92
      %p99 = scmp.eq.s32.totalorder %s19, 1
      %p100 = por %p98, %p99
      %p101 = scmp.ne.s32.totalorder %s92, %s93
      %p102 = scmp.eq.s32.totalorder %s19, 0
      %p103 = por %p101, %p102
      %p104 = scmp.ne.s32.totalorder %s92, %s93
      %p105 = scmp.eq.s32.totalorder %s20, 1
      %p106 = por %p104, %p105
      %p108 = scmp.ne.s32.totalorder %s93, %s107
      %p109 = scmp.eq.s32.totalorder %s20, 0
      %p110 = por %p108, %p109
      %s112 = sadd.s32 %s111, 1
      %p115 = scmp.eq.s32.totalorder %s14, 1
      %p116 = scmp.ne.s32.totalorder %s111, %s113
      %p117 = scmp.eq.s32.totalorder %s14, 0
      %p118 = por %p116, %p117
      %p119 = scmp.ne.s32.totalorder %s111, %s113
      %p120 = scmp.eq.s32.totalorder %s19, 1
      %p121 = por %p119, %p120
      %p122 = scmp.ne.s32.totalorder %s113, %s114
      %p123 = scmp.eq.s32.totalorder %s19, 0
      %p124 = por %p122, %p123
      %p125 = scmp.ne.s32.totalorder %s113, %s114
      %p126 = scmp.eq.s32.totalorder %s20, 1
      %p127 = por %p125, %p126
      %p129 = scmp.ne.s32.totalorder %s114, %s128
      %p130 = scmp.eq.s32.totalorder %s20, 0
      %p131 = por %p129, %p130
      %s132 = ssub.s32 %s14, %s21
      %p133 = scmp.eq.s32.totalorder %s132, 0
      %s135 = sadd.s32 %s134, 1
      %s136 = scalar_select %p133, %s134, %s135
      %p139 = pneg %p133
      %p140 = scmp.eq.s32.totalorder %s14, 1
      %p141 = por %p139, %p140
      %p142 = scmp.ne.s32.totalorder %s134, %s137
      %p143 = scmp.eq.s32.totalorder %s14, 0
      %p144 = por %p142, %p143
      %p145 = scmp.ne.s32.totalorder %s134, %s137
      %p146 = scmp.eq.s32.totalorder %s19, 1
      %p147 = por %p145, %p146
      %p148 = scmp.ne.s32.totalorder %s137, %s138
      %p149 = scmp.eq.s32.totalorder %s19, 0
      %p150 = por %p148, %p149
      %p151 = scmp.ne.s32.totalorder %s137, %s138
      %p152 = scmp.eq.s32.totalorder %s20, 1
      %p153 = por %p151, %p152
      %p155 = scmp.ne.s32.totalorder %s138, %s154
      %p156 = scmp.eq.s32.totalorder %s20, 0
      %p157 = por %p155, %p156
      %p158 = scmp.le.s32.totalorder 1, %s14
      %p159 = scmp.lt.s32.totalorder %s14, 3
      %p160 = pnand %p158, %p159
      %p161 = pneg %p160
      // Predicated region
      $region9: #{tpu_custom_call.1} parent=5 // pred_check
        _
      $region10: #{tpu_custom_call.1} parent=5 // pred_check_branch
        %163 = sbr.rel (%p160) target = $region12
      $region11: #{tpu_custom_call.1} parent=5 // pred_region
        %s164 = ssub.s32 %s14, 1
        // Predicated region
        $region13: #{tpu_custom_call.1} parent=11 // pred_check
          %p165 = pneg %p61
        $region14: #{tpu_custom_call.1} parent=11 // pred_check_branch
          %167 = sbr.rel (%p165) target = $region16
        $region15: #{tpu_custom_call.1} parent=11 // pred_region
          _
        $region16: #{tpu_custom_call.1} parent=11 // pred_fallthru
          _
        // Predicated region
        $region17: #{tpu_custom_call.1} parent=11 // pred_check
          %p168 = pneg %p82
        $region18: #{tpu_custom_call.1} parent=11 // pred_check_branch
          %170 = sbr.rel (%p168) target = $region20
        $region19: #{tpu_custom_call.1} parent=11 // pred_region
          _
        $region20: #{tpu_custom_call.1} parent=11 // pred_fallthru
          _
        // Predicated region
        $region21: #{tpu_custom_call.1} parent=11 // pred_check
          %p171 = pneg %p103
        $region22: #{tpu_custom_call.1} parent=11 // pred_check_branch
          %173 = sbr.rel (%p171) target = $region24
        $region23: #{tpu_custom_call.1} parent=11 // pred_region
          _
        $region24: #{tpu_custom_call.1} parent=11 // pred_fallthru
          _
        // Predicated region
        $region25: #{tpu_custom_call.1} parent=11 // pred_check
          %p174 = pneg %p124
        $region26: #{tpu_custom_call.1} parent=11 // pred_check_branch
          %176 = sbr.rel (%p174) target = $region28
        $region27: #{tpu_custom_call.1} parent=11 // pred_region
          _
        $region28: #{tpu_custom_call.1} parent=11 // pred_fallthru
          _
      $region12: #{tpu_custom_call.1} parent=5 // pred_fallthru
        _
      %p177 = scmp.lt.s32.totalorder %s14, 2
      // Predicated region
      $region29: #{tpu_custom_call.1} parent=5 // pred_check
        %p178 = pneg %p177
      $region30: #{tpu_custom_call.1} parent=5 // pred_check_branch
        %180 = sbr.rel (%p178) target = $region32
      $region31: #{tpu_custom_call.1} parent=5 // pred_region
        // Predicated region
        $region33: #{tpu_custom_call.1} parent=31 // pred_check
          %p181 = pneg %p34
        $region34: #{tpu_custom_call.1} parent=31 // pred_check_branch
          %183 = sbr.rel (%p181) target = $region36
        $region35: #{tpu_custom_call.1} parent=31 // pred_region
          %p184 = scmp.lt.s32.totalorder %s14, 1
          %s185 = scalar_select %p184, %s14, 1
          %s186 = smul.addr %s185, 32
          %s187 = smul.addr %s186, 4
          %s188 = scalar_lea.vmem %s0, %s187
        $region36: #{tpu_custom_call.1} parent=31 // pred_fallthru
          _
      $region32: #{tpu_custom_call.1} parent=5 // pred_fallthru
        _
      %p189 = scmp.le.s32.totalorder 1, %s14
      %p190 = scmp.lt.s32.totalorder %s14, 3
      %p191 = pnand %p189, %p190
      %p192 = pneg %p191
      // Predicated region
      $region37: #{tpu_custom_call.1} parent=5 // pred_check
        _
      $region38: #{tpu_custom_call.1} parent=5 // pred_check_branch
        %194 = sbr.rel (%p191) target = $region40
      $region39: #{tpu_custom_call.1} parent=5 // pred_region
        %s195 = ssub.s32 %s14, 1
        %p196 = scmp.lt.s32.totalorder %s19, 1
        %s197 = scalar_select %p196, %s19, 1
        %s198 = smul.addr %s197, 32
        %s199 = smul.addr %s198, 4
        %s200 = scalar_lea.vmem %s0, %s199
        %p201 = pneg %p40
        %p202 = pneg %p37
        %p203 = pneg %p61
        %p204 = pneg %p58
        %p205 = pneg %p82
        %p206 = pneg %p79
        %p207 = pneg %p103
        %p208 = pneg %p100
        %p209 = pneg %p124
        %p210 = pneg %p121
        %p211 = pneg %p150
        %p212 = pneg %p147
        %s213 = sand.u32 %s137, 1
        %s214 = scalar_lea.sflag [#allocation7], %s213
        %s215 = sand.u32 %s137, 1
        %s216 = smul.addr %s215, 16
        %s217 = scalar_lea.vmem [#allocation6], %s216
        %p218 = scmp.lt.s32.totalorder %s19, 1
        %s219 = scalar_select %p218, %s19, 1
        %s220 = smul.addr %s219, 32
        %s221 = smul.addr %s220, 4
        %s222 = scalar_lea.vmem %s0, %s221
        %vm224 = vcmask 31744
        %225 = vst.msk [vmem:[#allocation2] sm:$0xff] %vm224, 0.0
        %226 = vst.msk [vmem:[#allocation2 + $0x8] sm:$0xff] %vm224, 0.0
        %vm227 = vcmask 25600
        %228 = vst.msk [vmem:[#allocation2 + $0x10] sm:$0x3] %vm227, 0.0
        %229 = vst.msk [vmem:[#allocation2 + $0x18] sm:$0xff] %vm224, 0.0
        %230 = vst.msk [vmem:[#allocation2 + $0x20] sm:$0xff] %vm224, 0.0
        %231 = vst.msk [vmem:[#allocation2 + $0x28] sm:$0x3] %vm227, 0.0
        %232 = vst.msk [vmem:[#allocation2 + $0x30] sm:$0xff] %vm224, 0.0
        %233 = vst.msk [vmem:[#allocation2 + $0x38] sm:$0xff] %vm224, 0.0
        %234 = vst.msk [vmem:[#allocation2 + $0x40] sm:$0x3] %vm227, 0.0
        %235 = vst.msk [vmem:[#allocation2 + $0x48] sm:$0xff] %vm224, 0.0
        %236 = vst.msk [vmem:[#allocation2 + $0x50] sm:$0xff] %vm224, 0.0
        %237 = vst.msk [vmem:[#allocation2 + $0x58] sm:$0x3] %vm227, 0.0
        %238 = vst.msk [vmem:[#allocation2 + $0x60] sm:$0xff] %vm224, 0.0
        %239 = vst.msk [vmem:[#allocation2 + $0x68] sm:$0xff] %vm224, 0.0
        %240 = vst.msk [vmem:[#allocation2 + $0x70] sm:$0x3] %vm227, 0.0
        %241 = vst.msk [vmem:[#allocation2 + $0x78] sm:$0xff] %vm224, 0.0
        %242 = vst.msk [vmem:[#allocation2 + $0x80] sm:$0xff] %vm224, 0.0
        %243 = vst.msk [vmem:[#allocation2 + $0x88] sm:$0x3] %vm227, 0.0
        %244 = vst.msk [vmem:[#allocation2 + $0x90] sm:$0xff] %vm224, 0.0
        %245 = vst.msk [vmem:[#allocation2 + $0x98] sm:$0xff] %vm224, 0.0
        %246 = vst.msk [vmem:[#allocation2 + $0xa0] sm:$0x3] %vm227, 0.0
        %247 = vst.msk [vmem:[#allocation2 + $0xa8] sm:$0xff] %vm224, 0.0
        %248 = vst.msk [vmem:[#allocation2 + $0xb0] sm:$0xff] %vm224, 0.0
        %249 = vst.msk [vmem:[#allocation2 + $0xb8] sm:$0x3] %vm227, 0.0
        %250 = vst.msk [vmem:[#allocation2 + $0xc0] sm:$0xff] %vm224, 0.0
        %251 = vst.msk [vmem:[#allocation2 + $0xc8] sm:$0xff] %vm224, 0.0
        %252 = vst.msk [vmem:[#allocation2 + $0xd0] sm:$0x3] %vm227, 0.0
        %253 = vst.msk [vmem:[#allocation2 + $0xd8] sm:$0xff] %vm224, 0.0
        %254 = vst.msk [vmem:[#allocation2 + $0xe0] sm:$0xff] %vm224, 0.0
        %255 = vst.msk [vmem:[#allocation2 + $0xe8] sm:$0x3] %vm227, 0.0
        %256 = vst.msk [vmem:[#allocation2 + $0xf0] sm:$0xff] %vm224, 0.0
        %257 = vst.msk [vmem:[#allocation2 + $0xf8] sm:$0xff] %vm224, 0.0
        %258 = vst.msk [vmem:[#allocation2 + $0x100] sm:$0x3] %vm227, 0.0
        %259 = vst.msk [vmem:[#allocation2 + $0x108] sm:$0xff] %vm224, 0.0
        %260 = vst.msk [vmem:[#allocation2 + $0x110] sm:$0xff] %vm224, 0.0
        %261 = vst.msk [vmem:[#allocation2 + $0x118] sm:$0x3] %vm227, 0.0
        %262 = vst.msk [vmem:[#allocation2 + $0x120] sm:$0xff] %vm224, 0.0
        %263 = vst.msk [vmem:[#allocation2 + $0x128] sm:$0xff] %vm224, 0.0
        %264 = vst.msk [vmem:[#allocation2 + $0x130] sm:$0x3] %vm227, 0.0
        %265 = vst.msk [vmem:[#allocation2 + $0x138] sm:$0xff] %vm224, 0.0
        %266 = vst.msk [vmem:[#allocation2 + $0x140] sm:$0xff] %vm224, 0.0
        %267 = vst.msk [vmem:[#allocation2 + $0x148] sm:$0x3] %vm227, 0.0
        %268 = vst.msk [vmem:[#allocation2 + $0x150] sm:$0xff] %vm224, 0.0
        %269 = vst.msk [vmem:[#allocation2 + $0x158] sm:$0xff] %vm224, 0.0
        %270 = vst.msk [vmem:[#allocation2 + $0x160] sm:$0x3] %vm227, 0.0
        %271 = vst.msk [vmem:[#allocation2 + $0x168] sm:$0xff] %vm224, 0.0
        %272 = vst.msk [vmem:[#allocation2 + $0x170] sm:$0xff] %vm224, 0.0
        %273 = vst.msk [vmem:[#allocation2 + $0x178] sm:$0x3] %vm227, 0.0
        %274 = vst.msk [vmem:[#allocation2 + $0x180] sm:$0xff] %vm224, 0.0
        %275 = vst.msk [vmem:[#allocation2 + $0x188] sm:$0xff] %vm224, 0.0
        %276 = vst.msk [vmem:[#allocation2 + $0x190] sm:$0x3] %vm227, 0.0
        %277 = vst.msk [vmem:[#allocation2 + $0x198] sm:$0xff] %vm224, 0.0
        %278 = vst.msk [vmem:[#allocation2 + $0x1a0] sm:$0xff] %vm224, 0.0
        %279 = vst.msk [vmem:[#allocation2 + $0x1a8] sm:$0x3] %vm227, 0.0
        %v280 = vld [vmem:[%s222] sm:$0xf]
        %v281 = vld [vmem:[%s222 + $0x4] sm:$0xf]
        %v282 = vld [vmem:[%s222 + $0x8] sm:$0xf]
        %v283 = vld [vmem:[%s222 + $0xc] sm:$0xf]
        %v284 = vld [vmem:[%s222 + $0x10] sm:$0xf]
        %v285 = vld [vmem:[%s222 + $0x14] sm:$0xf]
        %v286 = vld [vmem:[%s222 + $0x18] sm:$0xf]
        %v287 = vld [vmem:[%s222 + $0x1c] sm:$0xf]
        %v288 = vld [vmem:[%s222 + $0x20] sm:$0xf]
        %v289 = vld [vmem:[%s222 + $0x24] sm:$0xf]
        %v290 = vld [vmem:[%s222 + $0x28] sm:$0xf]
        %v291 = vld [vmem:[%s222 + $0x2c] sm:$0xf]
        %v292 = vld [vmem:[%s222 + $0x30] sm:$0xf]
        %v293 = vld [vmem:[%s222 + $0x34] sm:$0xf]
        %v294 = vld [vmem:[%s222 + $0x38] sm:$0xf]
        %v295 = vld [vmem:[%s222 + $0x3c] sm:$0xf]
        %v296 = vld [vmem:[%s222 + $0x40] sm:$0xf]
        %v297 = vld [vmem:[%s222 + $0x44] sm:$0xf]
        %v298 = vld [vmem:[%s222 + $0x48] sm:$0xf]
        %v299 = vld [vmem:[%s222 + $0x4c] sm:$0xf]
        %v300 = vld [vmem:[%s222 + $0x50] sm:$0xf]
        %v301 = vld [vmem:[%s222 + $0x54] sm:$0xf]
        %v302 = vld [vmem:[%s222 + $0x58] sm:$0xf]
        %v303 = vld [vmem:[%s222 + $0x5c] sm:$0xf]
        %v304 = vld [vmem:[%s222 + $0x60] sm:$0xf]
        %v305 = vld [vmem:[%s222 + $0x64] sm:$0xf]
        %v306 = vld [vmem:[%s222 + $0x68] sm:$0xf]
        %v307 = vld [vmem:[%s222 + $0x6c] sm:$0xf]
        %v308 = vld [vmem:[%s222 + $0x70] sm:$0xf]
        %v309 = vld [vmem:[%s222 + $0x74] sm:$0xf]
        %v310 = vld [vmem:[%s222 + $0x78] sm:$0xf]
        %v311 = vld [vmem:[%s222 + $0x7c] sm:$0xf]
        %v312 = vunpack.c.l.bf16 %v280
        %v313 = vunpack.c.l.bf16 %v281
        %v314 = vunpack.c.l.bf16 %v282
        %v315 = vunpack.c.l.bf16 %v283
        %v316 = vunpack.c.l.bf16 %v284
        %v317 = vunpack.c.l.bf16 %v285
        %v318 = vunpack.c.l.bf16 %v286
        %v319 = vunpack.c.l.bf16 %v287
        %v320 = vunpack.c.l.bf16 %v288
        %v321 = vunpack.c.l.bf16 %v289
        %v322 = vunpack.c.l.bf16 %v290
        %v323 = vunpack.c.l.bf16 %v291
        %v324 = vunpack.c.l.bf16 %v292
        %v325 = vunpack.c.l.bf16 %v293
        %v326 = vunpack.c.l.bf16 %v294
        %v327 = vunpack.c.l.bf16 %v295
        %v328 = vunpack.c.l.bf16 %v296
        %v329 = vunpack.c.l.bf16 %v297
        %v330 = vunpack.c.l.bf16 %v298
        %v331 = vunpack.c.l.bf16 %v299
        %v332 = vunpack.c.l.bf16 %v300
        %v333 = vunpack.c.l.bf16 %v301
        %v334 = vunpack.c.l.bf16 %v302
        %v335 = vunpack.c.l.bf16 %v303
        %v336 = vunpack.c.l.bf16 %v304
        %v337 = vunpack.c.l.bf16 %v305
        %v338 = vunpack.c.l.bf16 %v306
        %v339 = vunpack.c.l.bf16 %v307
        %v340 = vunpack.c.l.bf16 %v308
        %v341 = vunpack.c.l.bf16 %v309
        %v342 = vunpack.c.l.bf16 %v310
        %v343 = vunpack.c.l.bf16 %v311
        %s344 = scalar_lea.vmem [#allocation2], 24
        %345 = vst.msk [vmem:[%s344 + $0x1] sm:$0xff] %vm224, %v312
        %346 = vst.msk [vmem:[%s344 + $0x9] sm:$0xff] %vm224, %v313
        %347 = vst.msk [vmem:[%s344 + $0x19] sm:$0xff] %vm224, %v314
        %348 = vst.msk [vmem:[%s344 + $0x21] sm:$0xff] %vm224, %v315
        %349 = vst.msk [vmem:[%s344 + $0x31] sm:$0xff] %vm224, %v316
        %350 = vst.msk [vmem:[%s344 + $0x39] sm:$0xff] %vm224, %v317
        %351 = vst.msk [vmem:[%s344 + $0x49] sm:$0xff] %vm224, %v318
        %352 = vst.msk [vmem:[%s344 + $0x51] sm:$0xff] %vm224, %v319
        %353 = vst.msk [vmem:[%s344 + $0x61] sm:$0xff] %vm224, %v320
        %354 = vst.msk [vmem:[%s344 + $0x69] sm:$0xff] %vm224, %v321
        %355 = vst.msk [vmem:[%s344 + $0x79] sm:$0xff] %vm224, %v322
        %356 = vst.msk [vmem:[%s344 + $0x81] sm:$0xff] %vm224, %v323
        %357 = vst.msk [vmem:[%s344 + $0x91] sm:$0xff] %vm224, %v324
        %358 = vst.msk [vmem:[%s344 + $0x99] sm:$0xff] %vm224, %v325
        %359 = vst.msk [vmem:[%s344 + $0xa9] sm:$0xff] %vm224, %v326
        %360 = vst.msk [vmem:[%s344 + $0xb1] sm:$0xff] %vm224, %v327
        %361 = vst.msk [vmem:[%s344 + $0xc1] sm:$0xff] %vm224, %v328
        %362 = vst.msk [vmem:[%s344 + $0xc9] sm:$0xff] %vm224, %v329
        %363 = vst.msk [vmem:[%s344 + $0xd9] sm:$0xff] %vm224, %v330
        %364 = vst.msk [vmem:[%s344 + $0xe1] sm:$0xff] %vm224, %v331
        %365 = vst.msk [vmem:[%s344 + $0xf1] sm:$0xff] %vm224, %v332
        %366 = vst.msk [vmem:[%s344 + $0xf9] sm:$0xff] %vm224, %v333
        %367 = vst.msk [vmem:[%s344 + $0x109] sm:$0xff] %vm224, %v334
        %368 = vst.msk [vmem:[%s344 + $0x111] sm:$0xff] %vm224, %v335
        %369 = vst.msk [vmem:[%s344 + $0x121] sm:$0xff] %vm224, %v336
        %370 = vst.msk [vmem:[%s344 + $0x129] sm:$0xff] %vm224, %v337
        %371 = vst.msk [vmem:[%s344 + $0x139] sm:$0xff] %vm224, %v338
        %372 = vst.msk [vmem:[%s344 + $0x141] sm:$0xff] %vm224, %v339
        %373 = vst.msk [vmem:[%s344 + $0x151] sm:$0xff] %vm224, %v340
        %374 = vst.msk [vmem:[%s344 + $0x159] sm:$0xff] %vm224, %v341
        %375 = vst.msk [vmem:[%s344 + $0x169] sm:$0xff] %vm224, %v342
        %376 = vst.msk [vmem:[%s344 + $0x171] sm:$0xff] %vm224, %v343
        %v377 = vld [vmem:[#allocation2] sm:$0xff]
        %v378 = vld [vmem:[#allocation2 + $0x8] sm:$0xff]
        %v379 = vld [vmem:[#allocation2 + $0x18] sm:$0xff]
        %v380 = vld [vmem:[#allocation2 + $0x20] sm:$0xff]
        %v381 = vld [vmem:[#allocation2 + $0x30] sm:$0xff]
        %v382 = vld [vmem:[#allocation2 + $0x38] sm:$0xff]
        %v383 = vld [vmem:[#allocation2 + $0x48] sm:$0xff]
        %v384 = vld [vmem:[#allocation2 + $0x50] sm:$0xff]
        %v385 = vld [vmem:[#allocation2 + $0x60] sm:$0xff]
        %v386 = vld [vmem:[#allocation2 + $0x68] sm:$0xff]
        %v387 = vld [vmem:[#allocation2 + $0x78] sm:$0xff]
        %v388 = vld [vmem:[#allocation2 + $0x80] sm:$0xff]
        %v389 = vld [vmem:[#allocation2 + $0x90] sm:$0xff]
        %v390 = vld [vmem:[#allocation2 + $0x98] sm:$0xff]
        %v391 = vld [vmem:[#allocation2 + $0xa8] sm:$0xff]
        %v392 = vld [vmem:[#allocation2 + $0xb0] sm:$0xff]
        %v393 = vld [vmem:[#allocation2 + $0xc0] sm:$0xff]
        %v394 = vld [vmem:[#allocation2 + $0xc8] sm:$0xff]
        %v395 = vld [vmem:[#allocation2 + $0xd8] sm:$0xff]
        %v396 = vld [vmem:[#allocation2 + $0xe0] sm:$0xff]
        %v397 = vld [vmem:[#allocation2 + $0xf0] sm:$0xff]
        %v398 = vld [vmem:[#allocation2 + $0xf8] sm:$0xff]
        %v399 = vld [vmem:[#allocation2 + $0x108] sm:$0xff]
        %v400 = vld [vmem:[#allocation2 + $0x110] sm:$0xff]
        %v401 = vld [vmem:[#allocation2 + $0x120] sm:$0xff]
        %v402 = vld [vmem:[#allocation2 + $0x128] sm:$0xff]
        %v403 = vld [vmem:[#allocation2 + $0x138] sm:$0xff]
        %v404 = vld [vmem:[#allocation2 + $0x140] sm:$0xff]
        %v405 = vld [vmem:[#allocation2 + $0x150] sm:$0xff]
        %v406 = vld [vmem:[#allocation2 + $0x158] sm:$0xff]
        %v407 = vld [vmem:[#allocation2 + $0x168] sm:$0xff]
        %v408 = vld [vmem:[#allocation2 + $0x170] sm:$0xff]
        %409 = vst.msk [vmem:[#allocation4] sm:$0xff] %vm224, %v377
        %410 = vst.msk [vmem:[#allocation4 + $0x8] sm:$0xff] %vm224, %v378
        %411 = vst.msk [vmem:[#allocation4 + $0x10] sm:$0xff] %vm224, %v379
        %412 = vst.msk [vmem:[#allocation4 + $0x18] sm:$0xff] %vm224, %v380
        %413 = vst.msk [vmem:[#allocation4 + $0x20] sm:$0xff] %vm224, %v381
        %414 = vst.msk [vmem:[#allocation4 + $0x28] sm:$0xff] %vm224, %v382
        %415 = vst.msk [vmem:[#allocation4 + $0x30] sm:$0xff] %vm224, %v383
        %416 = vst.msk [vmem:[#allocation4 + $0x38] sm:$0xff] %vm224, %v384
        %417 = vst.msk [vmem:[#allocation4 + $0x40] sm:$0xff] %vm224, %v385
        %418 = vst.msk [vmem:[#allocation4 + $0x48] sm:$0xff] %vm224, %v386
        %419 = vst.msk [vmem:[#allocation4 + $0x50] sm:$0xff] %vm224, %v387
        %420 = vst.msk [vmem:[#allocation4 + $0x58] sm:$0xff] %vm224, %v388
        %421 = vst.msk [vmem:[#allocation4 + $0x60] sm:$0xff] %vm224, %v389
        %422 = vst.msk [vmem:[#allocation4 + $0x68] sm:$0xff] %vm224, %v390
        %423 = vst.msk [vmem:[#allocation4 + $0x70] sm:$0xff] %vm224, %v391
        %424 = vst.msk [vmem:[#allocation4 + $0x78] sm:$0xff] %vm224, %v392
        %425 = vst.msk [vmem:[#allocation4 + $0x80] sm:$0xff] %vm224, %v393
        %426 = vst.msk [vmem:[#allocation4 + $0x88] sm:$0xff] %vm224, %v394
        %427 = vst.msk [vmem:[#allocation4 + $0x90] sm:$0xff] %vm224, %v395
        %428 = vst.msk [vmem:[#allocation4 + $0x98] sm:$0xff] %vm224, %v396
        %429 = vst.msk [vmem:[#allocation4 + $0xa0] sm:$0xff] %vm224, %v397
        %430 = vst.msk [vmem:[#allocation4 + $0xa8] sm:$0xff] %vm224, %v398
        %431 = vst.msk [vmem:[#allocation4 + $0xb0] sm:$0xff] %vm224, %v399
        %432 = vst.msk [vmem:[#allocation4 + $0xb8] sm:$0xff] %vm224, %v400
        %433 = vst.msk [vmem:[#allocation4 + $0xc0] sm:$0xff] %vm224, %v401
        %434 = vst.msk [vmem:[#allocation4 + $0xc8] sm:$0xff] %vm224, %v402
        %435 = vst.msk [vmem:[#allocation4 + $0xd0] sm:$0xff] %vm224, %v403
        %436 = vst.msk [vmem:[#allocation4 + $0xd8] sm:$0xff] %vm224, %v404
        %437 = vst.msk [vmem:[#allocation4 + $0xe0] sm:$0xff] %vm224, %v405
        %438 = vst.msk [vmem:[#allocation4 + $0xe8] sm:$0xff] %vm224, %v406
        %439 = vst.msk [vmem:[#allocation4 + $0xf0] sm:$0xff] %vm224, %v407
        %440 = vst.msk [vmem:[#allocation4 + $0xf8] sm:$0xff] %vm224, %v408
        %v441 = vld [vmem:[#allocation2 + $0x1] sm:$0xff]
        %v442 = vld [vmem:[#allocation2 + $0x9] sm:$0xff]
        %v443 = vld [vmem:[#allocation2 + $0x19] sm:$0xff]
        %v444 = vld [vmem:[#allocation2 + $0x21] sm:$0xff]
        %v445 = vld [vmem:[#allocation2 + $0x31] sm:$0xff]
        %v446 = vld [vmem:[#allocation2 + $0x39] sm:$0xff]
        %v447 = vld [vmem:[#allocation2 + $0x49] sm:$0xff]
        %v448 = vld [vmem:[#allocation2 + $0x51] sm:$0xff]
        %v449 = vld [vmem:[#allocation2 + $0x61] sm:$0xff]
        %v450 = vld [vmem:[#allocation2 + $0x69] sm:$0xff]
        %v451 = vld [vmem:[#allocation2 + $0x79] sm:$0xff]
        %v452 = vld [vmem:[#allocation2 + $0x81] sm:$0xff]
        %v453 = vld [vmem:[#allocation2 + $0x91] sm:$0xff]
        %v454 = vld [vmem:[#allocation2 + $0x99] sm:$0xff]
        %v455 = vld [vmem:[#allocation2 + $0xa9] sm:$0xff]
        %v456 = vld [vmem:[#allocation2 + $0xb1] sm:$0xff]
        %v457 = vld [vmem:[#allocation2 + $0xc1] sm:$0xff]
        %v458 = vld [vmem:[#allocation2 + $0xc9] sm:$0xff]
        %v459 = vld [vmem:[#allocation2 + $0xd9] sm:$0xff]
        %v460 = vld [vmem:[#allocation2 + $0xe1] sm:$0xff]
        %v461 = vld [vmem:[#allocation2 + $0xf1] sm:$0xff]
        %v462 = vld [vmem:[#allocation2 + $0xf9] sm:$0xff]
        %v463 = vld [vmem:[#allocation2 + $0x109] sm:$0xff]
        %v464 = vld [vmem:[#allocation2 + $0x111] sm:$0xff]
        %v465 = vld [vmem:[#allocation2 + $0x121] sm:$0xff]
        %v466 = vld [vmem:[#allocation2 + $0x129] sm:$0xff]
        %v467 = vld [vmem:[#allocation2 + $0x139] sm:$0xff]
        %v468 = vld [vmem:[#allocation2 + $0x141] sm:$0xff]
        %v469 = vld [vmem:[#allocation2 + $0x151] sm:$0xff]
        %v470 = vld [vmem:[#allocation2 + $0x159] sm:$0xff]
        %v471 = vld [vmem:[#allocation2 + $0x169] sm:$0xff]
        %v472 = vld [vmem:[#allocation2 + $0x171] sm:$0xff]
        %505 = vrot.lane.b32.xlu0 %v441, 4
        %v506 = vpop.permute.xlu0 %505
        %507 = vrot.lane.b32.xlu0 %v442, 4
        %v508 = vpop.permute.xlu0 %507
        %509 = vrot.lane.b32.xlu0 %v443, 4
        %v510 = vpop.permute.xlu0 %509
        %511 = vrot.lane.b32.xlu0 %v444, 4
        %v512 = vpop.permute.xlu0 %511
        %513 = vrot.lane.b32.xlu0 %v445, 4
        %v514 = vpop.permute.xlu0 %513
        %515 = vrot.lane.b32.xlu0 %v446, 4
        %v516 = vpop.permute.xlu0 %515
        %517 = vrot.lane.b32.xlu0 %v447, 4
        %v518 = vpop.permute.xlu0 %517
        %519 = vrot.lane.b32.xlu0 %v448, 4
        %v520 = vpop.permute.xlu0 %519
        %521 = vrot.lane.b32.xlu0 %v449, 4
        %v522 = vpop.permute.xlu0 %521
        %523 = vrot.lane.b32.xlu0 %v450, 4
        %v524 = vpop.permute.xlu0 %523
        %525 = vrot.lane.b32.xlu0 %v451, 4
        %v526 = vpop.permute.xlu0 %525
        %527 = vrot.lane.b32.xlu0 %v452, 4
        %v528 = vpop.permute.xlu0 %527
        %529 = vrot.lane.b32.xlu0 %v453, 4
        %v530 = vpop.permute.xlu0 %529
        %531 = vrot.lane.b32.xlu0 %v454, 4
        %v532 = vpop.permute.xlu0 %531
        %533 = vrot.lane.b32.xlu0 %v455, 4
        %v534 = vpop.permute.xlu0 %533
        %535 = vrot.lane.b32.xlu0 %v456, 4
        %v536 = vpop.permute.xlu0 %535
        %537 = vrot.lane.b32.xlu0 %v457, 4
        %v538 = vpop.permute.xlu0 %537
        %539 = vrot.lane.b32.xlu0 %v458, 4
        %v540 = vpop.permute.xlu0 %539
        %541 = vrot.lane.b32.xlu0 %v459, 4
        %v542 = vpop.permute.xlu0 %541
        %543 = vrot.lane.b32.xlu0 %v460, 4
        %v544 = vpop.permute.xlu0 %543
        %545 = vrot.lane.b32.xlu0 %v461, 4
        %v546 = vpop.permute.xlu0 %545
        %547 = vrot.lane.b32.xlu0 %v462, 4
        %v548 = vpop.permute.xlu0 %547
        %549 = vrot.lane.b32.xlu0 %v463, 4
        %v550 = vpop.permute.xlu0 %549
        %551 = vrot.lane.b32.xlu0 %v464, 4
        %v552 = vpop.permute.xlu0 %551
        %553 = vrot.lane.b32.xlu0 %v465, 4
        %v554 = vpop.permute.xlu0 %553
        %555 = vrot.lane.b32.xlu0 %v466, 4
        %v556 = vpop.permute.xlu0 %555
        %557 = vrot.lane.b32.xlu0 %v467, 4
        %v558 = vpop.permute.xlu0 %557
        %559 = vrot.lane.b32.xlu0 %v468, 4
        %v560 = vpop.permute.xlu0 %559
        %561 = vrot.lane.b32.xlu0 %v469, 4
        %v562 = vpop.permute.xlu0 %561
        %563 = vrot.lane.b32.xlu0 %v470, 4
        %v564 = vpop.permute.xlu0 %563
        %565 = vrot.lane.b32.xlu0 %v471, 4
        %v566 = vpop.permute.xlu0 %565
        %567 = vrot.lane.b32.xlu0 %v472, 4
        %v568 = vpop.permute.xlu0 %567
        %vm601 = vcmask 64544
        %602 = vst.msk [vmem:[#allocation4] sm:$0xff] %vm601, %v506
        %603 = vst.msk [vmem:[#allocation4 + $0x8] sm:$0xff] %vm601, %v508
        %604 = vst.msk [vmem:[#allocation4 + $0x10] sm:$0xff] %vm601, %v510
        %605 = vst.msk [vmem:[#allocation4 + $0x18] sm:$0xff] %vm601, %v512
        %606 = vst.msk [vmem:[#allocation4 + $0x20] sm:$0xff] %vm601, %v514
        %607 = vst.msk [vmem:[#allocation4 + $0x28] sm:$0xff] %vm601, %v516
        %608 = vst.msk [vmem:[#allocation4 + $0x30] sm:$0xff] %vm601, %v518
        %609 = vst.msk [vmem:[#allocation4 + $0x38] sm:$0xff] %vm601, %v520
        %610 = vst.msk [vmem:[#allocation4 + $0x40] sm:$0xff] %vm601, %v522
        %611 = vst.msk [vmem:[#allocation4 + $0x48] sm:$0xff] %vm601, %v524
        %612 = vst.msk [vmem:[#allocation4 + $0x50] sm:$0xff] %vm601, %v526
        %613 = vst.msk [vmem:[#allocation4 + $0x58] sm:$0xff] %vm601, %v528
        %614 = vst.msk [vmem:[#allocation4 + $0x60] sm:$0xff] %vm601, %v530
        %615 = vst.msk [vmem:[#allocation4 + $0x68] sm:$0xff] %vm601, %v532
        %616 = vst.msk [vmem:[#allocation4 + $0x70] sm:$0xff] %vm601, %v534
        %617 = vst.msk [vmem:[#allocation4 + $0x78] sm:$0xff] %vm601, %v536
        %618 = vst.msk [vmem:[#allocation4 + $0x80] sm:$0xff] %vm601, %v538
        %619 = vst.msk [vmem:[#allocation4 + $0x88] sm:$0xff] %vm601, %v540
        %620 = vst.msk [vmem:[#allocation4 + $0x90] sm:$0xff] %vm601, %v542
        %621 = vst.msk [vmem:[#allocation4 + $0x98] sm:$0xff] %vm601, %v544
        %622 = vst.msk [vmem:[#allocation4 + $0xa0] sm:$0xff] %vm601, %v546
        %623 = vst.msk [vmem:[#allocation4 + $0xa8] sm:$0xff] %vm601, %v548
        %624 = vst.msk [vmem:[#allocation4 + $0xb0] sm:$0xff] %vm601, %v550
        %625 = vst.msk [vmem:[#allocation4 + $0xb8] sm:$0xff] %vm601, %v552
        %626 = vst.msk [vmem:[#allocation4 + $0xc0] sm:$0xff] %vm601, %v554
        %627 = vst.msk [vmem:[#allocation4 + $0xc8] sm:$0xff] %vm601, %v556
        %628 = vst.msk [vmem:[#allocation4 + $0xd0] sm:$0xff] %vm601, %v558
        %629 = vst.msk [vmem:[#allocation4 + $0xd8] sm:$0xff] %vm601, %v560
        %630 = vst.msk [vmem:[#allocation4 + $0xe0] sm:$0xff] %vm601, %v562
        %631 = vst.msk [vmem:[#allocation4 + $0xe8] sm:$0xff] %vm601, %v564
        %632 = vst.msk [vmem:[#allocation4 + $0xf0] sm:$0xff] %vm601, %v566
        %633 = vst.msk [vmem:[#allocation4 + $0xf8] sm:$0xff] %vm601, %v568
        %v634 = vld [vmem:[#allocation2 + $0x2] sm:$0xff]
        %v635 = vld [vmem:[#allocation2 + $0xa] sm:$0xff]
        %v636 = vld [vmem:[#allocation2 + $0x1a] sm:$0xff]
        %v637 = vld [vmem:[#allocation2 + $0x22] sm:$0xff]
        %v638 = vld [vmem:[#allocation2 + $0x32] sm:$0xff]
        %v639 = vld [vmem:[#allocation2 + $0x3a] sm:$0xff]
        %v640 = vld [vmem:[#allocation2 + $0x4a] sm:$0xff]
        %v641 = vld [vmem:[#allocation2 + $0x52] sm:$0xff]
        %v642 = vld [vmem:[#allocation2 + $0x62] sm:$0xff]
        %v643 = vld [vmem:[#allocation2 + $0x6a] sm:$0xff]
        %v644 = vld [vmem:[#allocation2 + $0x7a] sm:$0xff]
        %v645 = vld [vmem:[#allocation2 + $0x82] sm:$0xff]
        %v646 = vld [vmem:[#allocation2 + $0x92] sm:$0xff]
        %v647 = vld [vmem:[#allocation2 + $0x9a] sm:$0xff]
        %v648 = vld [vmem:[#allocation2 + $0xaa] sm:$0xff]
        %v649 = vld [vmem:[#allocation2 + $0xb2] sm:$0xff]
        %v650 = vld [vmem:[#allocation2 + $0xc2] sm:$0xff]
        %v651 = vld [vmem:[#allocation2 + $0xca] sm:$0xff]
        %v652 = vld [vmem:[#allocation2 + $0xda] sm:$0xff]
        %v653 = vld [vmem:[#allocation2 + $0xe2] sm:$0xff]
        %v654 = vld [vmem:[#allocation2 + $0xf2] sm:$0xff]
        %v655 = vld [vmem:[#allocation2 + $0xfa] sm:$0xff]
        %v656 = vld [vmem:[#allocation2 + $0x10a] sm:$0xff]
        %v657 = vld [vmem:[#allocation2 + $0x112] sm:$0xff]
        %v658 = vld [vmem:[#allocation2 + $0x122] sm:$0xff]
        %v659 = vld [vmem:[#allocation2 + $0x12a] sm:$0xff]
        %v660 = vld [vmem:[#allocation2 + $0x13a] sm:$0xff]
        %v661 = vld [vmem:[#allocation2 + $0x142] sm:$0xff]
        %v662 = vld [vmem:[#allocation2 + $0x152] sm:$0xff]
        %v663 = vld [vmem:[#allocation2 + $0x15a] sm:$0xff]
        %v664 = vld [vmem:[#allocation2 + $0x16a] sm:$0xff]
        %v665 = vld [vmem:[#allocation2 + $0x172] sm:$0xff]
        %698 = vrot.lane.b32.xlu0 %v634, 8
        %v699 = vpop.permute.xlu0 %698
        %700 = vrot.lane.b32.xlu0 %v635, 8
        %v701 = vpop.permute.xlu0 %700
        %702 = vrot.lane.b32.xlu0 %v636, 8
        %v703 = vpop.permute.xlu0 %702
        %704 = vrot.lane.b32.xlu0 %v637, 8
        %v705 = vpop.permute.xlu0 %704
        %706 = vrot.lane.b32.xlu0 %v638, 8
        %v707 = vpop.permute.xlu0 %706
        %708 = vrot.lane.b32.xlu0 %v639, 8
        %v709 = vpop.permute.xlu0 %708
        %710 = vrot.lane.b32.xlu0 %v640, 8
        %v711 = vpop.permute.xlu0 %710
        %712 = vrot.lane.b32.xlu0 %v641, 8
        %v713 = vpop.permute.xlu0 %712
        %714 = vrot.lane.b32.xlu0 %v642, 8
        %v715 = vpop.permute.xlu0 %714
        %716 = vrot.lane.b32.xlu0 %v643, 8
        %v717 = vpop.permute.xlu0 %716
        %718 = vrot.lane.b32.xlu0 %v644, 8
        %v719 = vpop.permute.xlu0 %718
        %720 = vrot.lane.b32.xlu0 %v645, 8
        %v721 = vpop.permute.xlu0 %720
        %722 = vrot.lane.b32.xlu0 %v646, 8
        %v723 = vpop.permute.xlu0 %722
        %724 = vrot.lane.b32.xlu0 %v647, 8
        %v725 = vpop.permute.xlu0 %724
        %726 = vrot.lane.b32.xlu0 %v648, 8
        %v727 = vpop.permute.xlu0 %726
        %728 = vrot.lane.b32.xlu0 %v649, 8
        %v729 = vpop.permute.xlu0 %728
        %730 = vrot.lane.b32.xlu0 %v650, 8
        %v731 = vpop.permute.xlu0 %730
        %732 = vrot.lane.b32.xlu0 %v651, 8
        %v733 = vpop.permute.xlu0 %732
        %734 = vrot.lane.b32.xlu0 %v652, 8
        %v735 = vpop.permute.xlu0 %734
        %736 = vrot.lane.b32.xlu0 %v653, 8
        %v737 = vpop.permute.xlu0 %736
        %738 = vrot.lane.b32.xlu0 %v654, 8
        %v739 = vpop.permute.xlu0 %738
        %740 = vrot.lane.b32.xlu0 %v655, 8
        %v741 = vpop.permute.xlu0 %740
        %742 = vrot.lane.b32.xlu0 %v656, 8
        %v743 = vpop.permute.xlu0 %742
        %744 = vrot.lane.b32.xlu0 %v657, 8
        %v745 = vpop.permute.xlu0 %744
        %746 = vrot.lane.b32.xlu0 %v658, 8
        %v747 = vpop.permute.xlu0 %746
        %748 = vrot.lane.b32.xlu0 %v659, 8
        %v749 = vpop.permute.xlu0 %748
        %750 = vrot.lane.b32.xlu0 %v660, 8
        %v751 = vpop.permute.xlu0 %750
        %752 = vrot.lane.b32.xlu0 %v661, 8
        %v753 = vpop.permute.xlu0 %752
        %754 = vrot.lane.b32.xlu0 %v662, 8
        %v755 = vpop.permute.xlu0 %754
        %756 = vrot.lane.b32.xlu0 %v663, 8
        %v757 = vpop.permute.xlu0 %756
        %758 = vrot.lane.b32.xlu0 %v664, 8
        %v759 = vpop.permute.xlu0 %758
        %760 = vrot.lane.b32.xlu0 %v665, 8
        %v761 = vpop.permute.xlu0 %760
        %vm794 = vcmask 97344
        %795 = vst.msk [vmem:[#allocation4] sm:$0xff] %vm794, %v699
        %796 = vst.msk [vmem:[#allocation4 + $0x8] sm:$0xff] %vm794, %v701
        %797 = vst.msk [vmem:[#allocation4 + $0x10] sm:$0xff] %vm794, %v703
        %798 = vst.msk [vmem:[#allocation4 + $0x18] sm:$0xff] %vm794, %v705
        %799 = vst.msk [vmem:[#allocation4 + $0x20] sm:$0xff] %vm794, %v707
        %800 = vst.msk [vmem:[#allocation4 + $0x28] sm:$0xff] %vm794, %v709
        %801 = vst.msk [vmem:[#allocation4 + $0x30] sm:$0xff] %vm794, %v711
        %802 = vst.msk [vmem:[#allocation4 + $0x38] sm:$0xff] %vm794, %v713
        %803 = vst.msk [vmem:[#allocation4 + $0x40] sm:$0xff] %vm794, %v715
        %804 = vst.msk [vmem:[#allocation4 + $0x48] sm:$0xff] %vm794, %v717
        %805 = vst.msk [vmem:[#allocation4 + $0x50] sm:$0xff] %vm794, %v719
        %806 = vst.msk [vmem:[#allocation4 + $0x58] sm:$0xff] %vm794, %v721
        %807 = vst.msk [vmem:[#allocation4 + $0x60] sm:$0xff] %vm794, %v723
        %808 = vst.msk [vmem:[#allocation4 + $0x68] sm:$0xff] %vm794, %v725
        %809 = vst.msk [vmem:[#allocation4 + $0x70] sm:$0xff] %vm794, %v727
        %810 = vst.msk [vmem:[#allocation4 + $0x78] sm:$0xff] %vm794, %v729
        %811 = vst.msk [vmem:[#allocation4 + $0x80] sm:$0xff] %vm794, %v731
        %812 = vst.msk [vmem:[#allocation4 + $0x88] sm:$0xff] %vm794, %v733
        %813 = vst.msk [vmem:[#allocation4 + $0x90] sm:$0xff] %vm794, %v735
        %814 = vst.msk [vmem:[#allocation4 + $0x98] sm:$0xff] %vm794, %v737
        %815 = vst.msk [vmem:[#allocation4 + $0xa0] sm:$0xff] %vm794, %v739
        %816 = vst.msk [vmem:[#allocation4 + $0xa8] sm:$0xff] %vm794, %v741
        %817 = vst.msk [vmem:[#allocation4 + $0xb0] sm:$0xff] %vm794, %v743
        %818 = vst.msk [vmem:[#allocation4 + $0xb8] sm:$0xff] %vm794, %v745
        %819 = vst.msk [vmem:[#allocation4 + $0xc0] sm:$0xff] %vm794, %v747
        %820 = vst.msk [vmem:[#allocation4 + $0xc8] sm:$0xff] %vm794, %v749
        %821 = vst.msk [vmem:[#allocation4 + $0xd0] sm:$0xff] %vm794, %v751
        %822 = vst.msk [vmem:[#allocation4 + $0xd8] sm:$0xff] %vm794, %v753
        %823 = vst.msk [vmem:[#allocation4 + $0xe0] sm:$0xff] %vm794, %v755
        %824 = vst.msk [vmem:[#allocation4 + $0xe8] sm:$0xff] %vm794, %v757
        %825 = vst.msk [vmem:[#allocation4 + $0xf0] sm:$0xff] %vm794, %v759
        %826 = vst.msk [vmem:[#allocation4 + $0xf8] sm:$0xff] %vm794, %v761
        %v827 = vld [vmem:[%s344] sm:$0xff]
        %v828 = vld [vmem:[%s344 + $0x8] sm:$0xff]
        %v829 = vld [vmem:[%s344 + $0x18] sm:$0xff]
        %v830 = vld [vmem:[%s344 + $0x20] sm:$0xff]
        %v831 = vld [vmem:[%s344 + $0x30] sm:$0xff]
        %v832 = vld [vmem:[%s344 + $0x38] sm:$0xff]
        %v833 = vld [vmem:[%s344 + $0x48] sm:$0xff]
        %v834 = vld [vmem:[%s344 + $0x50] sm:$0xff]
        %v835 = vld [vmem:[%s344 + $0x60] sm:$0xff]
        %v836 = vld [vmem:[%s344 + $0x68] sm:$0xff]
        %v837 = vld [vmem:[%s344 + $0x78] sm:$0xff]
        %v838 = vld [vmem:[%s344 + $0x80] sm:$0xff]
        %v839 = vld [vmem:[%s344 + $0x90] sm:$0xff]
        %v840 = vld [vmem:[%s344 + $0x98] sm:$0xff]
        %v841 = vld [vmem:[%s344 + $0xa8] sm:$0xff]
        %v842 = vld [vmem:[%s344 + $0xb0] sm:$0xff]
        %v843 = vld [vmem:[%s344 + $0xc0] sm:$0xff]
        %v844 = vld [vmem:[%s344 + $0xc8] sm:$0xff]
        %v845 = vld [vmem:[%s344 + $0xd8] sm:$0xff]
        %v846 = vld [vmem:[%s344 + $0xe0] sm:$0xff]
        %v847 = vld [vmem:[%s344 + $0xf0] sm:$0xff]
        %v848 = vld [vmem:[%s344 + $0xf8] sm:$0xff]
        %v849 = vld [vmem:[%s344 + $0x108] sm:$0xff]
        %v850 = vld [vmem:[%s344 + $0x110] sm:$0xff]
        %v851 = vld [vmem:[%s344 + $0x120] sm:$0xff]
        %v852 = vld [vmem:[%s344 + $0x128] sm:$0xff]
        %v853 = vld [vmem:[%s344 + $0x138] sm:$0xff]
        %v854 = vld [vmem:[%s344 + $0x140] sm:$0xff]
        %v855 = vld [vmem:[%s344 + $0x150] sm:$0xff]
        %v856 = vld [vmem:[%s344 + $0x158] sm:$0xff]
        %v857 = vld [vmem:[%s344 + $0x168] sm:$0xff]
        %v858 = vld [vmem:[%s344 + $0x170] sm:$0xff]
        %891 = vrot.lane.b32.xlu0 %v827, 12
        %v892 = vpop.permute.xlu0 %891
        %893 = vrot.lane.b32.xlu0 %v828, 12
        %v894 = vpop.permute.xlu0 %893
        %895 = vrot.lane.b32.xlu0 %v829, 12
        %v896 = vpop.permute.xlu0 %895
        %897 = vrot.lane.b32.xlu0 %v830, 12
        %v898 = vpop.permute.xlu0 %897
        %899 = vrot.lane.b32.xlu0 %v831, 12
        %v900 = vpop.permute.xlu0 %899
        %901 = vrot.lane.b32.xlu0 %v832, 12
        %v902 = vpop.permute.xlu0 %901
        %903 = vrot.lane.b32.xlu0 %v833, 12
        %v904 = vpop.permute.xlu0 %903
        %905 = vrot.lane.b32.xlu0 %v834, 12
        %v906 = vpop.permute.xlu0 %905
        %907 = vrot.lane.b32.xlu0 %v835, 12
        %v908 = vpop.permute.xlu0 %907
        %909 = vrot.lane.b32.xlu0 %v836, 12
        %v910 = vpop.permute.xlu0 %909
        %911 = vrot.lane.b32.xlu0 %v837, 12
        %v912 = vpop.permute.xlu0 %911
        %913 = vrot.lane.b32.xlu0 %v838, 12
        %v914 = vpop.permute.xlu0 %913
        %915 = vrot.lane.b32.xlu0 %v839, 12
        %v916 = vpop.permute.xlu0 %915
        %917 = vrot.lane.b32.xlu0 %v840, 12
        %v918 = vpop.permute.xlu0 %917
        %919 = vrot.lane.b32.xlu0 %v841, 12
        %v920 = vpop.permute.xlu0 %919
        %921 = vrot.lane.b32.xlu0 %v842, 12
        %v922 = vpop.permute.xlu0 %921
        %923 = vrot.lane.b32.xlu0 %v843, 12
        %v924 = vpop.permute.xlu0 %923
        %925 = vrot.lane.b32.xlu0 %v844, 12
        %v926 = vpop.permute.xlu0 %925
        %927 = vrot.lane.b32.xlu0 %v845, 12
        %v928 = vpop.permute.xlu0 %927
        %929 = vrot.lane.b32.xlu0 %v846, 12
        %v930 = vpop.permute.xlu0 %929
        %931 = vrot.lane.b32.xlu0 %v847, 12
        %v932 = vpop.permute.xlu0 %931
        %933 = vrot.lane.b32.xlu0 %v848, 12
        %v934 = vpop.permute.xlu0 %933
        %935 = vrot.lane.b32.xlu0 %v849, 12
        %v936 = vpop.permute.xlu0 %935
        %937 = vrot.lane.b32.xlu0 %v850, 12
        %v938 = vpop.permute.xlu0 %937
        %939 = vrot.lane.b32.xlu0 %v851, 12
        %v940 = vpop.permute.xlu0 %939
        %941 = vrot.lane.b32.xlu0 %v852, 12
        %v942 = vpop.permute.xlu0 %941
        %943 = vrot.lane.b32.xlu0 %v853, 12
        %v944 = vpop.permute.xlu0 %943
        %945 = vrot.lane.b32.xlu0 %v854, 12
        %v946 = vpop.permute.xlu0 %945
        %947 = vrot.lane.b32.xlu0 %v855, 12
        %v948 = vpop.permute.xlu0 %947
        %949 = vrot.lane.b32.xlu0 %v856, 12
        %v950 = vpop.permute.xlu0 %949
        %951 = vrot.lane.b32.xlu0 %v857, 12
        %v952 = vpop.permute.xlu0 %951
        %953 = vrot.lane.b32.xlu0 %v858, 12
        %v954 = vpop.permute.xlu0 %953
        %vm987 = vcmask 130144
        %988 = vst.msk [vmem:[#allocation4] sm:$0xff] %vm987, %v892
        %989 = vst.msk [vmem:[#allocation4 + $0x8] sm:$0xff] %vm987, %v894
        %990 = vst.msk [vmem:[#allocation4 + $0x10] sm:$0xff] %vm987, %v896
        %991 = vst.msk [vmem:[#allocation4 + $0x18] sm:$0xff] %vm987, %v898
        %992 = vst.msk [vmem:[#allocation4 + $0x20] sm:$0xff] %vm987, %v900
        %993 = vst.msk [vmem:[#allocation4 + $0x28] sm:$0xff] %vm987, %v902
        %994 = vst.msk [vmem:[#allocation4 + $0x30] sm:$0xff] %vm987, %v904
        %995 = vst.msk [vmem:[#allocation4 + $0x38] sm:$0xff] %vm987, %v906
        %996 = vst.msk [vmem:[#allocation4 + $0x40] sm:$0xff] %vm987, %v908
        %997 = vst.msk [vmem:[#allocation4 + $0x48] sm:$0xff] %vm987, %v910
        %998 = vst.msk [vmem:[#allocation4 + $0x50] sm:$0xff] %vm987, %v912
        %999 = vst.msk [vmem:[#allocation4 + $0x58] sm:$0xff] %vm987, %v914
        %1000 = vst.msk [vmem:[#allocation4 + $0x60] sm:$0xff] %vm987, %v916
        %1001 = vst.msk [vmem:[#allocation4 + $0x68] sm:$0xff] %vm987, %v918
        %1002 = vst.msk [vmem:[#allocation4 + $0x70] sm:$0xff] %vm987, %v920
        %1003 = vst.msk [vmem:[#allocation4 + $0x78] sm:$0xff] %vm987, %v922
        %1004 = vst.msk [vmem:[#allocation4 + $0x80] sm:$0xff] %vm987, %v924
        %1005 = vst.msk [vmem:[#allocation4 + $0x88] sm:$0xff] %vm987, %v926
        %1006 = vst.msk [vmem:[#allocation4 + $0x90] sm:$0xff] %vm987, %v928
        %1007 = vst.msk [vmem:[#allocation4 + $0x98] sm:$0xff] %vm987, %v930
        %1008 = vst.msk [vmem:[#allocation4 + $0xa0] sm:$0xff] %vm987, %v932
        %1009 = vst.msk [vmem:[#allocation4 + $0xa8] sm:$0xff] %vm987, %v934
        %1010 = vst.msk [vmem:[#allocation4 + $0xb0] sm:$0xff] %vm987, %v936
        %1011 = vst.msk [vmem:[#allocation4 + $0xb8] sm:$0xff] %vm987, %v938
        %1012 = vst.msk [vmem:[#allocation4 + $0xc0] sm:$0xff] %vm987, %v940
        %1013 = vst.msk [vmem:[#allocation4 + $0xc8] sm:$0xff] %vm987, %v942
        %1014 = vst.msk [vmem:[#allocation4 + $0xd0] sm:$0xff] %vm987, %v944
        %1015 = vst.msk [vmem:[#allocation4 + $0xd8] sm:$0xff] %vm987, %v946
        %1016 = vst.msk [vmem:[#allocation4 + $0xe0] sm:$0xff] %vm987, %v948
        %1017 = vst.msk [vmem:[#allocation4 + $0xe8] sm:$0xff] %vm987, %v950
        %1018 = vst.msk [vmem:[#allocation4 + $0xf0] sm:$0xff] %vm987, %v952
        %1019 = vst.msk [vmem:[#allocation4 + $0xf8] sm:$0xff] %vm987, %v954
        %v1020 = vld [vmem:[%s344 + $0x1] sm:$0xff]
        %v1021 = vld [vmem:[%s344 + $0x9] sm:$0xff]
        %v1022 = vld [vmem:[%s344 + $0x19] sm:$0xff]
        %v1023 = vld [vmem:[%s344 + $0x21] sm:$0xff]
        %v1024 = vld [vmem:[%s344 + $0x31] sm:$0xff]
        %v1025 = vld [vmem:[%s344 + $0x39] sm:$0xff]
        %v1026 = vld [vmem:[%s344 + $0x49] sm:$0xff]
        %v1027 = vld [vmem:[%s344 + $0x51] sm:$0xff]
        %v1028 = vld [vmem:[%s344 + $0x61] sm:$0xff]
        %v1029 = vld [vmem:[%s344 + $0x69] sm:$0xff]
        %v1030 = vld [vmem:[%s344 + $0x79] sm:$0xff]
        %v1031 = vld [vmem:[%s344 + $0x81] sm:$0xff]
        %v1032 = vld [vmem:[%s344 + $0x91] sm:$0xff]
        %v1033 = vld [vmem:[%s344 + $0x99] sm:$0xff]
        %v1034 = vld [vmem:[%s344 + $0xa9] sm:$0xff]
        %v1035 = vld [vmem:[%s344 + $0xb1] sm:$0xff]
        %v1036 = vld [vmem:[%s344 + $0xc1] sm:$0xff]
        %v1037 = vld [vmem:[%s344 + $0xc9] sm:$0xff]
        %v1038 = vld [vmem:[%s344 + $0xd9] sm:$0xff]
        %v1039 = vld [vmem:[%s344 + $0xe1] sm:$0xff]
        %v1040 = vld [vmem:[%s344 + $0xf1] sm:$0xff]
        %v1041 = vld [vmem:[%s344 + $0xf9] sm:$0xff]
        %v1042 = vld [vmem:[%s344 + $0x109] sm:$0xff]
        %v1043 = vld [vmem:[%s344 + $0x111] sm:$0xff]
        %v1044 = vld [vmem:[%s344 + $0x121] sm:$0xff]
        %v1045 = vld [vmem:[%s344 + $0x129] sm:$0xff]
        %v1046 = vld [vmem:[%s344 + $0x139] sm:$0xff]
        %v1047 = vld [vmem:[%s344 + $0x141] sm:$0xff]
        %v1048 = vld [vmem:[%s344 + $0x151] sm:$0xff]
        %v1049 = vld [vmem:[%s344 + $0x159] sm:$0xff]
        %v1050 = vld [vmem:[%s344 + $0x169] sm:$0xff]
        %v1051 = vld [vmem:[%s344 + $0x171] sm:$0xff]
        %1084 = vrot.lane.b32.xlu0 %v1020, 16
        %v1085 = vpop.permute.xlu0 %1084
        %1086 = vrot.lane.b32.xlu0 %v1021, 16
        %v1087 = vpop.permute.xlu0 %1086
        %1088 = vrot.lane.b32.xlu0 %v1022, 16
        %v1089 = vpop.permute.xlu0 %1088
        %1090 = vrot.lane.b32.xlu0 %v1023, 16
        %v1091 = vpop.permute.xlu0 %1090
        %1092 = vrot.lane.b32.xlu0 %v1024, 16
        %v1093 = vpop.permute.xlu0 %1092
        %1094 = vrot.lane.b32.xlu0 %v1025, 16
        %v1095 = vpop.permute.xlu0 %1094
        %1096 = vrot.lane.b32.xlu0 %v1026, 16
        %v1097 = vpop.permute.xlu0 %1096
        %1098 = vrot.lane.b32.xlu0 %v1027, 16
        %v1099 = vpop.permute.xlu0 %1098
        %1100 = vrot.lane.b32.xlu0 %v1028, 16
        %v1101 = vpop.permute.xlu0 %1100
        %1102 = vrot.lane.b32.xlu0 %v1029, 16
        %v1103 = vpop.permute.xlu0 %1102
        %1104 = vrot.lane.b32.xlu0 %v1030, 16
        %v1105 = vpop.permute.xlu0 %1104
        %1106 = vrot.lane.b32.xlu0 %v1031, 16
        %v1107 = vpop.permute.xlu0 %1106
        %1108 = vrot.lane.b32.xlu0 %v1032, 16
        %v1109 = vpop.permute.xlu0 %1108
        %1110 = vrot.lane.b32.xlu0 %v1033, 16
        %v1111 = vpop.permute.xlu0 %1110
        %1112 = vrot.lane.b32.xlu0 %v1034, 16
        %v1113 = vpop.permute.xlu0 %1112
        %1114 = vrot.lane.b32.xlu0 %v1035, 16
        %v1115 = vpop.permute.xlu0 %1114
        %1116 = vrot.lane.b32.xlu0 %v1036, 16
        %v1117 = vpop.permute.xlu0 %1116
        %1118 = vrot.lane.b32.xlu0 %v1037, 16
        %v1119 = vpop.permute.xlu0 %1118
        %1120 = vrot.lane.b32.xlu0 %v1038, 16
        %v1121 = vpop.permute.xlu0 %1120
        %1122 = vrot.lane.b32.xlu0 %v1039, 16
        %v1123 = vpop.permute.xlu0 %1122
        %1124 = vrot.lane.b32.xlu0 %v1040, 16
        %v1125 = vpop.permute.xlu0 %1124
        %1126 = vrot.lane.b32.xlu0 %v1041, 16
        %v1127 = vpop.permute.xlu0 %1126
        %1128 = vrot.lane.b32.xlu0 %v1042, 16
        %v1129 = vpop.permute.xlu0 %1128
        %1130 = vrot.lane.b32.xlu0 %v1043, 16
        %v1131 = vpop.permute.xlu0 %1130
        %1132 = vrot.lane.b32.xlu0 %v1044, 16
        %v1133 = vpop.permute.xlu0 %1132
        %1134 = vrot.lane.b32.xlu0 %v1045, 16
        %v1135 = vpop.permute.xlu0 %1134
        %1136 = vrot.lane.b32.xlu0 %v1046, 16
        %v1137 = vpop.permute.xlu0 %1136
        %1138 = vrot.lane.b32.xlu0 %v1047, 16
        %v1139 = vpop.permute.xlu0 %1138
        %1140 = vrot.lane.b32.xlu0 %v1048, 16
        %v1141 = vpop.permute.xlu0 %1140
        %1142 = vrot.lane.b32.xlu0 %v1049, 16
        %v1143 = vpop.permute.xlu0 %1142
        %1144 = vrot.lane.b32.xlu0 %v1050, 16
        %v1145 = vpop.permute.xlu0 %1144
        %1146 = vrot.lane.b32.xlu0 %v1051, 16
        %v1147 = vpop.permute.xlu0 %1146
        %vm1180 = vcmask 162944
        %1181 = vst.msk [vmem:[#allocation4] sm:$0xff] %vm1180, %v1085
        %1182 = vst.msk [vmem:[#allocation4 + $0x8] sm:$0xff] %vm1180, %v1087
        %1183 = vst.msk [vmem:[#allocation4 + $0x10] sm:$0xff] %vm1180, %v1089
        %1184 = vst.msk [vmem:[#allocation4 + $0x18] sm:$0xff] %vm1180, %v1091
        %1185 = vst.msk [vmem:[#allocation4 + $0x20] sm:$0xff] %vm1180, %v1093
        %1186 = vst.msk [vmem:[#allocation4 + $0x28] sm:$0xff] %vm1180, %v1095
        %1187 = vst.msk [vmem:[#allocation4 + $0x30] sm:$0xff] %vm1180, %v1097
        %1188 = vst.msk [vmem:[#allocation4 + $0x38] sm:$0xff] %vm1180, %v1099
        %1189 = vst.msk [vmem:[#allocation4 + $0x40] sm:$0xff] %vm1180, %v1101
        %1190 = vst.msk [vmem:[#allocation4 + $0x48] sm:$0xff] %vm1180, %v1103
        %1191 = vst.msk [vmem:[#allocation4 + $0x50] sm:$0xff] %vm1180, %v1105
        %1192 = vst.msk [vmem:[#allocation4 + $0x58] sm:$0xff] %vm1180, %v1107
        %1193 = vst.msk [vmem:[#allocation4 + $0x60] sm:$0xff] %vm1180, %v1109
        %1194 = vst.msk [vmem:[#allocation4 + $0x68] sm:$0xff] %vm1180, %v1111
        %1195 = vst.msk [vmem:[#allocation4 + $0x70] sm:$0xff] %vm1180, %v1113
        %1196 = vst.msk [vmem:[#allocation4 + $0x78] sm:$0xff] %vm1180, %v1115
        %1197 = vst.msk [vmem:[#allocation4 + $0x80] sm:$0xff] %vm1180, %v1117
        %1198 = vst.msk [vmem:[#allocation4 + $0x88] sm:$0xff] %vm1180, %v1119
        %1199 = vst.msk [vmem:[#allocation4 + $0x90] sm:$0xff] %vm1180, %v1121
        %1200 = vst.msk [vmem:[#allocation4 + $0x98] sm:$0xff] %vm1180, %v1123
        %1201 = vst.msk [vmem:[#allocation4 + $0xa0] sm:$0xff] %vm1180, %v1125
        %1202 = vst.msk [vmem:[#allocation4 + $0xa8] sm:$0xff] %vm1180, %v1127
        %1203 = vst.msk [vmem:[#allocation4 + $0xb0] sm:$0xff] %vm1180, %v1129
        %1204 = vst.msk [vmem:[#allocation4 + $0xb8] sm:$0xff] %vm1180, %v1131
        %1205 = vst.msk [vmem:[#allocation4 + $0xc0] sm:$0xff] %vm1180, %v1133
        %1206 = vst.msk [vmem:[#allocation4 + $0xc8] sm:$0xff] %vm1180, %v1135
        %1207 = vst.msk [vmem:[#allocation4 + $0xd0] sm:$0xff] %vm1180, %v1137
        %1208 = vst.msk [vmem:[#allocation4 + $0xd8] sm:$0xff] %vm1180, %v1139
        %1209 = vst.msk [vmem:[#allocation4 + $0xe0] sm:$0xff] %vm1180, %v1141
        %1210 = vst.msk [vmem:[#allocation4 + $0xe8] sm:$0xff] %vm1180, %v1143
        %1211 = vst.msk [vmem:[#allocation4 + $0xf0] sm:$0xff] %vm1180, %v1145
        %1212 = vst.msk [vmem:[#allocation4 + $0xf8] sm:$0xff] %vm1180, %v1147
        %v1213 = vld [vmem:[%s344 + $0x2] sm:$0xff]
        %v1214 = vld [vmem:[%s344 + $0xa] sm:$0xff]
        %v1215 = vld [vmem:[%s344 + $0x1a] sm:$0xff]
        %v1216 = vld [vmem:[%s344 + $0x22] sm:$0xff]
        %v1217 = vld [vmem:[%s344 + $0x32] sm:$0xff]
        %v1218 = vld [vmem:[%s344 + $0x3a] sm:$0xff]
        %v1219 = vld [vmem:[%s344 + $0x4a] sm:$0xff]
        %v1220 = vld [vmem:[%s344 + $0x52] sm:$0xff]
        %v1221 = vld [vmem:[%s344 + $0x62] sm:$0xff]
        %v1222 = vld [vmem:[%s344 + $0x6a] sm:$0xff]
        %v1223 = vld [vmem:[%s344 + $0x7a] sm:$0xff]
        %v1224 = vld [vmem:[%s344 + $0x82] sm:$0xff]
        %v1225 = vld [vmem:[%s344 + $0x92] sm:$0xff]
        %v1226 = vld [vmem:[%s344 + $0x9a] sm:$0xff]
        %v1227 = vld [vmem:[%s344 + $0xaa] sm:$0xff]
        %v1228 = vld [vmem:[%s344 + $0xb2] sm:$0xff]
        %v1229 = vld [vmem:[%s344 + $0xc2] sm:$0xff]
        %v1230 = vld [vmem:[%s344 + $0xca] sm:$0xff]
        %v1231 = vld [vmem:[%s344 + $0xda] sm:$0xff]
        %v1232 = vld [vmem:[%s344 + $0xe2] sm:$0xff]
        %v1233 = vld [vmem:[%s344 + $0xf2] sm:$0xff]
        %v1234 = vld [vmem:[%s344 + $0xfa] sm:$0xff]
        %v1235 = vld [vmem:[%s344 + $0x10a] sm:$0xff]
        %v1236 = vld [vmem:[%s344 + $0x112] sm:$0xff]
        %v1237 = vld [vmem:[%s344 + $0x122] sm:$0xff]
        %v1238 = vld [vmem:[%s344 + $0x12a] sm:$0xff]
        %v1239 = vld [vmem:[%s344 + $0x13a] sm:$0xff]
        %v1240 = vld [vmem:[%s344 + $0x142] sm:$0xff]
        %v1241 = vld [vmem:[%s344 + $0x152] sm:$0xff]
        %v1242 = vld [vmem:[%s344 + $0x15a] sm:$0xff]
        %v1243 = vld [vmem:[%s344 + $0x16a] sm:$0xff]
        %v1244 = vld [vmem:[%s344 + $0x172] sm:$0xff]
        %1277 = vrot.lane.b32.xlu0 %v1213, 20
        %v1278 = vpop.permute.xlu0 %1277
        %1279 = vrot.lane.b32.xlu0 %v1214, 20
        %v1280 = vpop.permute.xlu0 %1279
        %1281 = vrot.lane.b32.xlu0 %v1215, 20
        %v1282 = vpop.permute.xlu0 %1281
        %1283 = vrot.lane.b32.xlu0 %v1216, 20
        %v1284 = vpop.permute.xlu0 %1283
        %1285 = vrot.lane.b32.xlu0 %v1217, 20
        %v1286 = vpop.permute.xlu0 %1285
        %1287 = vrot.lane.b32.xlu0 %v1218, 20
        %v1288 = vpop.permute.xlu0 %1287
        %1289 = vrot.lane.b32.xlu0 %v1219, 20
        %v1290 = vpop.permute.xlu0 %1289
        %1291 = vrot.lane.b32.xlu0 %v1220, 20
        %v1292 = vpop.permute.xlu0 %1291
        %1293 = vrot.lane.b32.xlu0 %v1221, 20
        %v1294 = vpop.permute.xlu0 %1293
        %1295 = vrot.lane.b32.xlu0 %v1222, 20
        %v1296 = vpop.permute.xlu0 %1295
        %1297 = vrot.lane.b32.xlu0 %v1223, 20
        %v1298 = vpop.permute.xlu0 %1297
        %1299 = vrot.lane.b32.xlu0 %v1224, 20
        %v1300 = vpop.permute.xlu0 %1299
        %1301 = vrot.lane.b32.xlu0 %v1225, 20
        %v1302 = vpop.permute.xlu0 %1301
        %1303 = vrot.lane.b32.xlu0 %v1226, 20
        %v1304 = vpop.permute.xlu0 %1303
        %1305 = vrot.lane.b32.xlu0 %v1227, 20
        %v1306 = vpop.permute.xlu0 %1305
        %1307 = vrot.lane.b32.xlu0 %v1228, 20
        %v1308 = vpop.permute.xlu0 %1307
        %1309 = vrot.lane.b32.xlu0 %v1229, 20
        %v1310 = vpop.permute.xlu0 %1309
        %1311 = vrot.lane.b32.xlu0 %v1230, 20
        %v1312 = vpop.permute.xlu0 %1311
        %1313 = vrot.lane.b32.xlu0 %v1231, 20
        %v1314 = vpop.permute.xlu0 %1313
        %1315 = vrot.lane.b32.xlu0 %v1232, 20
        %v1316 = vpop.permute.xlu0 %1315
        %1317 = vrot.lane.b32.xlu0 %v1233, 20
        %v1318 = vpop.permute.xlu0 %1317
        %1319 = vrot.lane.b32.xlu0 %v1234, 20
        %v1320 = vpop.permute.xlu0 %1319
        %1321 = vrot.lane.b32.xlu0 %v1235, 20
        %v1322 = vpop.permute.xlu0 %1321
        %1323 = vrot.lane.b32.xlu0 %v1236, 20
        %v1324 = vpop.permute.xlu0 %1323
        %1325 = vrot.lane.b32.xlu0 %v1237, 20
        %v1326 = vpop.permute.xlu0 %1325
        %1327 = vrot.lane.b32.xlu0 %v1238, 20
        %v1328 = vpop.permute.xlu0 %1327
        %1329 = vrot.lane.b32.xlu0 %v1239, 20
        %v1330 = vpop.permute.xlu0 %1329
        %1331 = vrot.lane.b32.xlu0 %v1240, 20
        %v1332 = vpop.permute.xlu0 %1331
        %1333 = vrot.lane.b32.xlu0 %v1241, 20
        %v1334 = vpop.permute.xlu0 %1333
        %1335 = vrot.lane.b32.xlu0 %v1242, 20
        %v1336 = vpop.permute.xlu0 %1335
        %1337 = vrot.lane.b32.xlu0 %v1243, 20
        %v1338 = vpop.permute.xlu0 %1337
        %1339 = vrot.lane.b32.xlu0 %v1244, 20
        %v1340 = vpop.permute.xlu0 %1339
        %vm1373 = vcmask 195744
        %1374 = vst.msk [vmem:[#allocation4] sm:$0xff] %vm1373, %v1278
        %1375 = vst.msk [vmem:[#allocation4 + $0x8] sm:$0xff] %vm1373, %v1280
        %1376 = vst.msk [vmem:[#allocation4 + $0x10] sm:$0xff] %vm1373, %v1282
        %1377 = vst.msk [vmem:[#allocation4 + $0x18] sm:$0xff] %vm1373, %v1284
        %1378 = vst.msk [vmem:[#allocation4 + $0x20] sm:$0xff] %vm1373, %v1286
        %1379 = vst.msk [vmem:[#allocation4 + $0x28] sm:$0xff] %vm1373, %v1288
        %1380 = vst.msk [vmem:[#allocation4 + $0x30] sm:$0xff] %vm1373, %v1290
        %1381 = vst.msk [vmem:[#allocation4 + $0x38] sm:$0xff] %vm1373, %v1292
        %1382 = vst.msk [vmem:[#allocation4 + $0x40] sm:$0xff] %vm1373, %v1294
        %1383 = vst.msk [vmem:[#allocation4 + $0x48] sm:$0xff] %vm1373, %v1296
        %1384 = vst.msk [vmem:[#allocation4 + $0x50] sm:$0xff] %vm1373, %v1298
        %1385 = vst.msk [vmem:[#allocation4 + $0x58] sm:$0xff] %vm1373, %v1300
        %1386 = vst.msk [vmem:[#allocation4 + $0x60] sm:$0xff] %vm1373, %v1302
        %1387 = vst.msk [vmem:[#allocation4 + $0x68] sm:$0xff] %vm1373, %v1304
        %1388 = vst.msk [vmem:[#allocation4 + $0x70] sm:$0xff] %vm1373, %v1306
        %1389 = vst.msk [vmem:[#allocation4 + $0x78] sm:$0xff] %vm1373, %v1308
        %1390 = vst.msk [vmem:[#allocation4 + $0x80] sm:$0xff] %vm1373, %v1310
        %1391 = vst.msk [vmem:[#allocation4 + $0x88] sm:$0xff] %vm1373, %v1312
        %1392 = vst.msk [vmem:[#allocation4 + $0x90] sm:$0xff] %vm1373, %v1314
        %1393 = vst.msk [vmem:[#allocation4 + $0x98] sm:$0xff] %vm1373, %v1316
        %1394 = vst.msk [vmem:[#allocation4 + $0xa0] sm:$0xff] %vm1373, %v1318
        %1395 = vst.msk [vmem:[#allocation4 + $0xa8] sm:$0xff] %vm1373, %v1320
        %1396 = vst.msk [vmem:[#allocation4 + $0xb0] sm:$0xff] %vm1373, %v1322
        %1397 = vst.msk [vmem:[#allocation4 + $0xb8] sm:$0xff] %vm1373, %v1324
        %1398 = vst.msk [vmem:[#allocation4 + $0xc0] sm:$0xff] %vm1373, %v1326
        %1399 = vst.msk [vmem:[#allocation4 + $0xc8] sm:$0xff] %vm1373, %v1328
        %1400 = vst.msk [vmem:[#allocation4 + $0xd0] sm:$0xff] %vm1373, %v1330
        %1401 = vst.msk [vmem:[#allocation4 + $0xd8] sm:$0xff] %vm1373, %v1332
        %1402 = vst.msk [vmem:[#allocation4 + $0xe0] sm:$0xff] %vm1373, %v1334
        %1403 = vst.msk [vmem:[#allocation4 + $0xe8] sm:$0xff] %vm1373, %v1336
        %1404 = vst.msk [vmem:[#allocation4 + $0xf0] sm:$0xff] %vm1373, %v1338
        %1405 = vst.msk [vmem:[#allocation4 + $0xf8] sm:$0xff] %vm1373, %v1340
        %s1406 = scalar_lea.vmem [#allocation2], 48
        %v1407 = vld [vmem:[%s1406] sm:$0xff]
        %v1408 = vld [vmem:[%s1406 + $0x8] sm:$0xff]
        %v1409 = vld [vmem:[%s1406 + $0x18] sm:$0xff]
        %v1410 = vld [vmem:[%s1406 + $0x20] sm:$0xff]
        %v1411 = vld [vmem:[%s1406 + $0x30] sm:$0xff]
        %v1412 = vld [vmem:[%s1406 + $0x38] sm:$0xff]
        %v1413 = vld [vmem:[%s1406 + $0x48] sm:$0xff]
        %v1414 = vld [vmem:[%s1406 + $0x50] sm:$0xff]
        %v1415 = vld [vmem:[%s1406 + $0x60] sm:$0xff]
        %v1416 = vld [vmem:[%s1406 + $0x68] sm:$0xff]
        %v1417 = vld [vmem:[%s1406 + $0x78] sm:$0xff]
        %v1418 = vld [vmem:[%s1406 + $0x80] sm:$0xff]
        %v1419 = vld [vmem:[%s1406 + $0x90] sm:$0xff]
        %v1420 = vld [vmem:[%s1406 + $0x98] sm:$0xff]
        %v1421 = vld [vmem:[%s1406 + $0xa8] sm:$0xff]
        %v1422 = vld [vmem:[%s1406 + $0xb0] sm:$0xff]
        %v1423 = vld [vmem:[%s1406 + $0xc0] sm:$0xff]
        %v1424 = vld [vmem:[%s1406 + $0xc8] sm:$0xff]
        %v1425 = vld [vmem:[%s1406 + $0xd8] sm:$0xff]
        %v1426 = vld [vmem:[%s1406 + $0xe0] sm:$0xff]
        %v1427 = vld [vmem:[%s1406 + $0xf0] sm:$0xff]
        %v1428 = vld [vmem:[%s1406 + $0xf8] sm:$0xff]
        %v1429 = vld [vmem:[%s1406 + $0x108] sm:$0xff]
        %v1430 = vld [vmem:[%s1406 + $0x110] sm:$0xff]
        %v1431 = vld [vmem:[%s1406 + $0x120] sm:$0xff]
        %v1432 = vld [vmem:[%s1406 + $0x128] sm:$0xff]
        %v1433 = vld [vmem:[%s1406 + $0x138] sm:$0xff]
        %v1434 = vld [vmem:[%s1406 + $0x140] sm:$0xff]
        %v1435 = vld [vmem:[%s1406 + $0x150] sm:$0xff]
        %v1436 = vld [vmem:[%s1406 + $0x158] sm:$0xff]
        %v1437 = vld [vmem:[%s1406 + $0x168] sm:$0xff]
        %v1438 = vld [vmem:[%s1406 + $0x170] sm:$0xff]
        %1471 = vrot.lane.b32.xlu0 %v1407, 24
        %v1472 = vpop.permute.xlu0 %1471
        %1473 = vrot.lane.b32.xlu0 %v1408, 24
        %v1474 = vpop.permute.xlu0 %1473
        %1475 = vrot.lane.b32.xlu0 %v1409, 24
        %v1476 = vpop.permute.xlu0 %1475
        %1477 = vrot.lane.b32.xlu0 %v1410, 24
        %v1478 = vpop.permute.xlu0 %1477
        %1479 = vrot.lane.b32.xlu0 %v1411, 24
        %v1480 = vpop.permute.xlu0 %1479
        %1481 = vrot.lane.b32.xlu0 %v1412, 24
        %v1482 = vpop.permute.xlu0 %1481
        %1483 = vrot.lane.b32.xlu0 %v1413, 24
        %v1484 = vpop.permute.xlu0 %1483
        %1485 = vrot.lane.b32.xlu0 %v1414, 24
        %v1486 = vpop.permute.xlu0 %1485
        %1487 = vrot.lane.b32.xlu0 %v1415, 24
        %v1488 = vpop.permute.xlu0 %1487
        %1489 = vrot.lane.b32.xlu0 %v1416, 24
        %v1490 = vpop.permute.xlu0 %1489
        %1491 = vrot.lane.b32.xlu0 %v1417, 24
        %v1492 = vpop.permute.xlu0 %1491
        %1493 = vrot.lane.b32.xlu0 %v1418, 24
        %v1494 = vpop.permute.xlu0 %1493
        %1495 = vrot.lane.b32.xlu0 %v1419, 24
        %v1496 = vpop.permute.xlu0 %1495
        %1497 = vrot.lane.b32.xlu0 %v1420, 24
        %v1498 = vpop.permute.xlu0 %1497
        %1499 = vrot.lane.b32.xlu0 %v1421, 24
        %v1500 = vpop.permute.xlu0 %1499
        %1501 = vrot.lane.b32.xlu0 %v1422, 24
        %v1502 = vpop.permute.xlu0 %1501
        %1503 = vrot.lane.b32.xlu0 %v1423, 24
        %v1504 = vpop.permute.xlu0 %1503
        %1505 = vrot.lane.b32.xlu0 %v1424, 24
        %v1506 = vpop.permute.xlu0 %1505
        %1507 = vrot.lane.b32.xlu0 %v1425, 24
        %v1508 = vpop.permute.xlu0 %1507
        %1509 = vrot.lane.b32.xlu0 %v1426, 24
        %v1510 = vpop.permute.xlu0 %1509
        %1511 = vrot.lane.b32.xlu0 %v1427, 24
        %v1512 = vpop.permute.xlu0 %1511
        %1513 = vrot.lane.b32.xlu0 %v1428, 24
        %v1514 = vpop.permute.xlu0 %1513
        %1515 = vrot.lane.b32.xlu0 %v1429, 24
        %v1516 = vpop.permute.xlu0 %1515
        %1517 = vrot.lane.b32.xlu0 %v1430, 24
        %v1518 = vpop.permute.xlu0 %1517
        %1519 = vrot.lane.b32.xlu0 %v1431, 24
        %v1520 = vpop.permute.xlu0 %1519
        %1521 = vrot.lane.b32.xlu0 %v1432, 24
        %v1522 = vpop.permute.xlu0 %1521
        %1523 = vrot.lane.b32.xlu0 %v1433, 24
        %v1524 = vpop.permute.xlu0 %1523
        %1525 = vrot.lane.b32.xlu0 %v1434, 24
        %v1526 = vpop.permute.xlu0 %1525
        %1527 = vrot.lane.b32.xlu0 %v1435, 24
        %v1528 = vpop.permute.xlu0 %1527
        %1529 = vrot.lane.b32.xlu0 %v1436, 24
        %v1530 = vpop.permute.xlu0 %1529
        %1531 = vrot.lane.b32.xlu0 %v1437, 24
        %v1532 = vpop.permute.xlu0 %1531
        %1533 = vrot.lane.b32.xlu0 %v1438, 24
        %v1534 = vpop.permute.xlu0 %1533
        %vm1567 = vcmask 228544
        %1568 = vst.msk [vmem:[#allocation4] sm:$0xff] %vm1567, %v1472
        %1569 = vst.msk [vmem:[#allocation4 + $0x8] sm:$0xff] %vm1567, %v1474
        %1570 = vst.msk [vmem:[#allocation4 + $0x10] sm:$0xff] %vm1567, %v1476
        %1571 = vst.msk [vmem:[#allocation4 + $0x18] sm:$0xff] %vm1567, %v1478
        %1572 = vst.msk [vmem:[#allocation4 + $0x20] sm:$0xff] %vm1567, %v1480
        %1573 = vst.msk [vmem:[#allocation4 + $0x28] sm:$0xff] %vm1567, %v1482
        %1574 = vst.msk [vmem:[#allocation4 + $0x30] sm:$0xff] %vm1567, %v1484
        %1575 = vst.msk [vmem:[#allocation4 + $0x38] sm:$0xff] %vm1567, %v1486
        %1576 = vst.msk [vmem:[#allocation4 + $0x40] sm:$0xff] %vm1567, %v1488
        %1577 = vst.msk [vmem:[#allocation4 + $0x48] sm:$0xff] %vm1567, %v1490
        %1578 = vst.msk [vmem:[#allocation4 + $0x50] sm:$0xff] %vm1567, %v1492
        %1579 = vst.msk [vmem:[#allocation4 + $0x58] sm:$0xff] %vm1567, %v1494
        %1580 = vst.msk [vmem:[#allocation4 + $0x60] sm:$0xff] %vm1567, %v1496
        %1581 = vst.msk [vmem:[#allocation4 + $0x68] sm:$0xff] %vm1567, %v1498
        %1582 = vst.msk [vmem:[#allocation4 + $0x70] sm:$0xff] %vm1567, %v1500
        %1583 = vst.msk [vmem:[#allocation4 + $0x78] sm:$0xff] %vm1567, %v1502
        %1584 = vst.msk [vmem:[#allocation4 + $0x80] sm:$0xff] %vm1567, %v1504
        %1585 = vst.msk [vmem:[#allocation4 + $0x88] sm:$0xff] %vm1567, %v1506
        %1586 = vst.msk [vmem:[#allocation4 + $0x90] sm:$0xff] %vm1567, %v1508
        %1587 = vst.msk [vmem:[#allocation4 + $0x98] sm:$0xff] %vm1567, %v1510
        %1588 = vst.msk [vmem:[#allocation4 + $0xa0] sm:$0xff] %vm1567, %v1512
        %1589 = vst.msk [vmem:[#allocation4 + $0xa8] sm:$0xff] %vm1567, %v1514
        %1590 = vst.msk [vmem:[#allocation4 + $0xb0] sm:$0xff] %vm1567, %v1516
        %1591 = vst.msk [vmem:[#allocation4 + $0xb8] sm:$0xff] %vm1567, %v1518
        %1592 = vst.msk [vmem:[#allocation4 + $0xc0] sm:$0xff] %vm1567, %v1520
        %1593 = vst.msk [vmem:[#allocation4 + $0xc8] sm:$0xff] %vm1567, %v1522
        %1594 = vst.msk [vmem:[#allocation4 + $0xd0] sm:$0xff] %vm1567, %v1524
        %1595 = vst.msk [vmem:[#allocation4 + $0xd8] sm:$0xff] %vm1567, %v1526
        %1596 = vst.msk [vmem:[#allocation4 + $0xe0] sm:$0xff] %vm1567, %v1528
        %1597 = vst.msk [vmem:[#allocation4 + $0xe8] sm:$0xff] %vm1567, %v1530
        %1598 = vst.msk [vmem:[#allocation4 + $0xf0] sm:$0xff] %vm1567, %v1532
        %1599 = vst.msk [vmem:[#allocation4 + $0xf8] sm:$0xff] %vm1567, %v1534
        %v1600 = vld [vmem:[%s1406 + $0x1] sm:$0xff]
        %v1601 = vld [vmem:[%s1406 + $0x9] sm:$0xff]
        %v1602 = vld [vmem:[%s1406 + $0x19] sm:$0xff]
        %v1603 = vld [vmem:[%s1406 + $0x21] sm:$0xff]
        %v1604 = vld [vmem:[%s1406 + $0x31] sm:$0xff]
        %v1605 = vld [vmem:[%s1406 + $0x39] sm:$0xff]
        %v1606 = vld [vmem:[%s1406 + $0x49] sm:$0xff]
        %v1607 = vld [vmem:[%s1406 + $0x51] sm:$0xff]
        %v1608 = vld [vmem:[%s1406 + $0x61] sm:$0xff]
        %v1609 = vld [vmem:[%s1406 + $0x69] sm:$0xff]
        %v1610 = vld [vmem:[%s1406 + $0x79] sm:$0xff]
        %v1611 = vld [vmem:[%s1406 + $0x81] sm:$0xff]
        %v1612 = vld [vmem:[%s1406 + $0x91] sm:$0xff]
        %v1613 = vld [vmem:[%s1406 + $0x99] sm:$0xff]
        %v1614 = vld [vmem:[%s1406 + $0xa9] sm:$0xff]
        %v1615 = vld [vmem:[%s1406 + $0xb1] sm:$0xff]
        %v1616 = vld [vmem:[%s1406 + $0xc1] sm:$0xff]
        %v1617 = vld [vmem:[%s1406 + $0xc9] sm:$0xff]
        %v1618 = vld [vmem:[%s1406 + $0xd9] sm:$0xff]
        %v1619 = vld [vmem:[%s1406 + $0xe1] sm:$0xff]
        %v1620 = vld [vmem:[%s1406 + $0xf1] sm:$0xff]
        %v1621 = vld [vmem:[%s1406 + $0xf9] sm:$0xff]
        %v1622 = vld [vmem:[%s1406 + $0x109] sm:$0xff]
        %v1623 = vld [vmem:[%s1406 + $0x111] sm:$0xff]
        %v1624 = vld [vmem:[%s1406 + $0x121] sm:$0xff]
        %v1625 = vld [vmem:[%s1406 + $0x129] sm:$0xff]
        %v1626 = vld [vmem:[%s1406 + $0x139] sm:$0xff]
        %v1627 = vld [vmem:[%s1406 + $0x141] sm:$0xff]
        %v1628 = vld [vmem:[%s1406 + $0x151] sm:$0xff]
        %v1629 = vld [vmem:[%s1406 + $0x159] sm:$0xff]
        %v1630 = vld [vmem:[%s1406 + $0x169] sm:$0xff]
        %v1631 = vld [vmem:[%s1406 + $0x171] sm:$0xff]
        %1664 = vrot.lane.b32.xlu0 %v1600, 28
        %v1665 = vpop.permute.xlu0 %1664
        %1666 = vrot.lane.b32.xlu0 %v1601, 28
        %v1667 = vpop.permute.xlu0 %1666
        %1668 = vrot.lane.b32.xlu0 %v1602, 28
        %v1669 = vpop.permute.xlu0 %1668
        %1670 = vrot.lane.b32.xlu0 %v1603, 28
        %v1671 = vpop.permute.xlu0 %1670
        %1672 = vrot.lane.b32.xlu0 %v1604, 28
        %v1673 = vpop.permute.xlu0 %1672
        %1674 = vrot.lane.b32.xlu0 %v1605, 28
        %v1675 = vpop.permute.xlu0 %1674
        %1676 = vrot.lane.b32.xlu0 %v1606, 28
        %v1677 = vpop.permute.xlu0 %1676
        %1678 = vrot.lane.b32.xlu0 %v1607, 28
        %v1679 = vpop.permute.xlu0 %1678
        %1680 = vrot.lane.b32.xlu0 %v1608, 28
        %v1681 = vpop.permute.xlu0 %1680
        %1682 = vrot.lane.b32.xlu0 %v1609, 28
        %v1683 = vpop.permute.xlu0 %1682
        %1684 = vrot.lane.b32.xlu0 %v1610, 28
        %v1685 = vpop.permute.xlu0 %1684
        %1686 = vrot.lane.b32.xlu0 %v1611, 28
        %v1687 = vpop.permute.xlu0 %1686
        %1688 = vrot.lane.b32.xlu0 %v1612, 28
        %v1689 = vpop.permute.xlu0 %1688
        %1690 = vrot.lane.b32.xlu0 %v1613, 28
        %v1691 = vpop.permute.xlu0 %1690
        %1692 = vrot.lane.b32.xlu0 %v1614, 28
        %v1693 = vpop.permute.xlu0 %1692
        %1694 = vrot.lane.b32.xlu0 %v1615, 28
        %v1695 = vpop.permute.xlu0 %1694
        %1696 = vrot.lane.b32.xlu0 %v1616, 28
        %v1697 = vpop.permute.xlu0 %1696
        %1698 = vrot.lane.b32.xlu0 %v1617, 28
        %v1699 = vpop.permute.xlu0 %1698
        %1700 = vrot.lane.b32.xlu0 %v1618, 28
        %v1701 = vpop.permute.xlu0 %1700
        %1702 = vrot.lane.b32.xlu0 %v1619, 28
        %v1703 = vpop.permute.xlu0 %1702
        %1704 = vrot.lane.b32.xlu0 %v1620, 28
        %v1705 = vpop.permute.xlu0 %1704
        %1706 = vrot.lane.b32.xlu0 %v1621, 28
        %v1707 = vpop.permute.xlu0 %1706
        %1708 = vrot.lane.b32.xlu0 %v1622, 28
        %v1709 = vpop.permute.xlu0 %1708
        %1710 = vrot.lane.b32.xlu0 %v1623, 28
        %v1711 = vpop.permute.xlu0 %1710
        %1712 = vrot.lane.b32.xlu0 %v1624, 28
        %v1713 = vpop.permute.xlu0 %1712
        %1714 = vrot.lane.b32.xlu0 %v1625, 28
        %v1715 = vpop.permute.xlu0 %1714
        %1716 = vrot.lane.b32.xlu0 %v1626, 28
        %v1717 = vpop.permute.xlu0 %1716
        %1718 = vrot.lane.b32.xlu0 %v1627, 28
        %v1719 = vpop.permute.xlu0 %1718
        %1720 = vrot.lane.b32.xlu0 %v1628, 28
        %v1721 = vpop.permute.xlu0 %1720
        %1722 = vrot.lane.b32.xlu0 %v1629, 28
        %v1723 = vpop.permute.xlu0 %1722
        %1724 = vrot.lane.b32.xlu0 %v1630, 28
        %v1725 = vpop.permute.xlu0 %1724
        %1726 = vrot.lane.b32.xlu0 %v1631, 28
        %v1727 = vpop.permute.xlu0 %1726
        %vm1760 = vcmask 261344
        %1761 = vst.msk [vmem:[#allocation4] sm:$0xff] %vm1760, %v1665
        %1762 = vst.msk [vmem:[#allocation4 + $0x8] sm:$0xff] %vm1760, %v1667
        %1763 = vst.msk [vmem:[#allocation4 + $0x10] sm:$0xff] %vm1760, %v1669
        %1764 = vst.msk [vmem:[#allocation4 + $0x18] sm:$0xff] %vm1760, %v1671
        %1765 = vst.msk [vmem:[#allocation4 + $0x20] sm:$0xff] %vm1760, %v1673
        %1766 = vst.msk [vmem:[#allocation4 + $0x28] sm:$0xff] %vm1760, %v1675
        %1767 = vst.msk [vmem:[#allocation4 + $0x30] sm:$0xff] %vm1760, %v1677
        %1768 = vst.msk [vmem:[#allocation4 + $0x38] sm:$0xff] %vm1760, %v1679
        %1769 = vst.msk [vmem:[#allocation4 + $0x40] sm:$0xff] %vm1760, %v1681
        %1770 = vst.msk [vmem:[#allocation4 + $0x48] sm:$0xff] %vm1760, %v1683
        %1771 = vst.msk [vmem:[#allocation4 + $0x50] sm:$0xff] %vm1760, %v1685
        %1772 = vst.msk [vmem:[#allocation4 + $0x58] sm:$0xff] %vm1760, %v1687
        %1773 = vst.msk [vmem:[#allocation4 + $0x60] sm:$0xff] %vm1760, %v1689
        %1774 = vst.msk [vmem:[#allocation4 + $0x68] sm:$0xff] %vm1760, %v1691
        %1775 = vst.msk [vmem:[#allocation4 + $0x70] sm:$0xff] %vm1760, %v1693
        %1776 = vst.msk [vmem:[#allocation4 + $0x78] sm:$0xff] %vm1760, %v1695
        %1777 = vst.msk [vmem:[#allocation4 + $0x80] sm:$0xff] %vm1760, %v1697
        %1778 = vst.msk [vmem:[#allocation4 + $0x88] sm:$0xff] %vm1760, %v1699
        %1779 = vst.msk [vmem:[#allocation4 + $0x90] sm:$0xff] %vm1760, %v1701
        %1780 = vst.msk [vmem:[#allocation4 + $0x98] sm:$0xff] %vm1760, %v1703
        %1781 = vst.msk [vmem:[#allocation4 + $0xa0] sm:$0xff] %vm1760, %v1705
        %1782 = vst.msk [vmem:[#allocation4 + $0xa8] sm:$0xff] %vm1760, %v1707
        %1783 = vst.msk [vmem:[#allocation4 + $0xb0] sm:$0xff] %vm1760, %v1709
        %1784 = vst.msk [vmem:[#allocation4 + $0xb8] sm:$0xff] %vm1760, %v1711
        %1785 = vst.msk [vmem:[#allocation4 + $0xc0] sm:$0xff] %vm1760, %v1713
        %1786 = vst.msk [vmem:[#allocation4 + $0xc8] sm:$0xff] %vm1760, %v1715
        %1787 = vst.msk [vmem:[#allocation4 + $0xd0] sm:$0xff] %vm1760, %v1717
        %1788 = vst.msk [vmem:[#allocation4 + $0xd8] sm:$0xff] %vm1760, %v1719
        %1789 = vst.msk [vmem:[#allocation4 + $0xe0] sm:$0xff] %vm1760, %v1721
        %1790 = vst.msk [vmem:[#allocation4 + $0xe8] sm:$0xff] %vm1760, %v1723
        %1791 = vst.msk [vmem:[#allocation4 + $0xf0] sm:$0xff] %vm1760, %v1725
        %1792 = vst.msk [vmem:[#allocation4 + $0xf8] sm:$0xff] %vm1760, %v1727
        %v1793 = vld [vmem:[%s1406 + $0x2] sm:$0xff]
        %v1794 = vld [vmem:[%s1406 + $0xa] sm:$0xff]
        %v1795 = vld [vmem:[%s1406 + $0x1a] sm:$0xff]
        %v1796 = vld [vmem:[%s1406 + $0x22] sm:$0xff]
        %v1797 = vld [vmem:[%s1406 + $0x32] sm:$0xff]
        %v1798 = vld [vmem:[%s1406 + $0x3a] sm:$0xff]
        %v1799 = vld [vmem:[%s1406 + $0x4a] sm:$0xff]
        %v1800 = vld [vmem:[%s1406 + $0x52] sm:$0xff]
        %v1801 = vld [vmem:[%s1406 + $0x62] sm:$0xff]
        %v1802 = vld [vmem:[%s1406 + $0x6a] sm:$0xff]
        %v1803 = vld [vmem:[%s1406 + $0x7a] sm:$0xff]
        %v1804 = vld [vmem:[%s1406 + $0x82] sm:$0xff]
        %v1805 = vld [vmem:[%s1406 + $0x92] sm:$0xff]
        %v1806 = vld [vmem:[%s1406 + $0x9a] sm:$0xff]
        %v1807 = vld [vmem:[%s1406 + $0xaa] sm:$0xff]
        %v1808 = vld [vmem:[%s1406 + $0xb2] sm:$0xff]
        %v1809 = vld [vmem:[%s1406 + $0xc2] sm:$0xff]
        %v1810 = vld [vmem:[%s1406 + $0xca] sm:$0xff]
        %v1811 = vld [vmem:[%s1406 + $0xda] sm:$0xff]
        %v1812 = vld [vmem:[%s1406 + $0xe2] sm:$0xff]
        %v1813 = vld [vmem:[%s1406 + $0xf2] sm:$0xff]
        %v1814 = vld [vmem:[%s1406 + $0xfa] sm:$0xff]
        %v1815 = vld [vmem:[%s1406 + $0x10a] sm:$0xff]
        %v1816 = vld [vmem:[%s1406 + $0x112] sm:$0xff]
        %v1817 = vld [vmem:[%s1406 + $0x122] sm:$0xff]
        %v1818 = vld [vmem:[%s1406 + $0x12a] sm:$0xff]
        %v1819 = vld [vmem:[%s1406 + $0x13a] sm:$0xff]
        %v1820 = vld [vmem:[%s1406 + $0x142] sm:$0xff]
        %v1821 = vld [vmem:[%s1406 + $0x152] sm:$0xff]
        %v1822 = vld [vmem:[%s1406 + $0x15a] sm:$0xff]
        %v1823 = vld [vmem:[%s1406 + $0x16a] sm:$0xff]
        %v1824 = vld [vmem:[%s1406 + $0x172] sm:$0xff]
        %1857 = vrot.lane.b32.xlu0 %v1793, 32
        %v1858 = vpop.permute.xlu0 %1857
        %1859 = vrot.lane.b32.xlu0 %v1794, 32
        %v1860 = vpop.permute.xlu0 %1859
        %1861 = vrot.lane.b32.xlu0 %v1795, 32
        %v1862 = vpop.permute.xlu0 %1861
        %1863 = vrot.lane.b32.xlu0 %v1796, 32
        %v1864 = vpop.permute.xlu0 %1863
        %1865 = vrot.lane.b32.xlu0 %v1797, 32
        %v1866 = vpop.permute.xlu0 %1865
        %1867 = vrot.lane.b32.xlu0 %v1798, 32
        %v1868 = vpop.permute.xlu0 %1867
        %1869 = vrot.lane.b32.xlu0 %v1799, 32
        %v1870 = vpop.permute.xlu0 %1869
        %1871 = vrot.lane.b32.xlu0 %v1800, 32
        %v1872 = vpop.permute.xlu0 %1871
        %1873 = vrot.lane.b32.xlu0 %v1801, 32
        %v1874 = vpop.permute.xlu0 %1873
        %1875 = vrot.lane.b32.xlu0 %v1802, 32
        %v1876 = vpop.permute.xlu0 %1875
        %1877 = vrot.lane.b32.xlu0 %v1803, 32
        %v1878 = vpop.permute.xlu0 %1877
        %1879 = vrot.lane.b32.xlu0 %v1804, 32
        %v1880 = vpop.permute.xlu0 %1879
        %1881 = vrot.lane.b32.xlu0 %v1805, 32
        %v1882 = vpop.permute.xlu0 %1881
        %1883 = vrot.lane.b32.xlu0 %v1806, 32
        %v1884 = vpop.permute.xlu0 %1883
        %1885 = vrot.lane.b32.xlu0 %v1807, 32
        %v1886 = vpop.permute.xlu0 %1885
        %1887 = vrot.lane.b32.xlu0 %v1808, 32
        %v1888 = vpop.permute.xlu0 %1887
        %1889 = vrot.lane.b32.xlu0 %v1809, 32
        %v1890 = vpop.permute.xlu0 %1889
        %1891 = vrot.lane.b32.xlu0 %v1810, 32
        %v1892 = vpop.permute.xlu0 %1891
        %1893 = vrot.lane.b32.xlu0 %v1811, 32
        %v1894 = vpop.permute.xlu0 %1893
        %1895 = vrot.lane.b32.xlu0 %v1812, 32
        %v1896 = vpop.permute.xlu0 %1895
        %1897 = vrot.lane.b32.xlu0 %v1813, 32
        %v1898 = vpop.permute.xlu0 %1897
        %1899 = vrot.lane.b32.xlu0 %v1814, 32
        %v1900 = vpop.permute.xlu0 %1899
        %1901 = vrot.lane.b32.xlu0 %v1815, 32
        %v1902 = vpop.permute.xlu0 %1901
        %1903 = vrot.lane.b32.xlu0 %v1816, 32
        %v1904 = vpop.permute.xlu0 %1903
        %1905 = vrot.lane.b32.xlu0 %v1817, 32
        %v1906 = vpop.permute.xlu0 %1905
        %1907 = vrot.lane.b32.xlu0 %v1818, 32
        %v1908 = vpop.permute.xlu0 %1907
        %1909 = vrot.lane.b32.xlu0 %v1819, 32
        %v1910 = vpop.permute.xlu0 %1909
        %1911 = vrot.lane.b32.xlu0 %v1820, 32
        %v1912 = vpop.permute.xlu0 %1911
        %1913 = vrot.lane.b32.xlu0 %v1821, 32
        %v1914 = vpop.permute.xlu0 %1913
        %1915 = vrot.lane.b32.xlu0 %v1822, 32
        %v1916 = vpop.permute.xlu0 %1915
        %1917 = vrot.lane.b32.xlu0 %v1823, 32
        %v1918 = vpop.permute.xlu0 %1917
        %1919 = vrot.lane.b32.xlu0 %v1824, 32
        %v1920 = vpop.permute.xlu0 %1919
        %vm1953 = vcmask 294144
        %1954 = vst.msk [vmem:[#allocation4] sm:$0xff] %vm1953, %v1858
        %1955 = vst.msk [vmem:[#allocation4 + $0x8] sm:$0xff] %vm1953, %v1860
        %1956 = vst.msk [vmem:[#allocation4 + $0x10] sm:$0xff] %vm1953, %v1862
        %1957 = vst.msk [vmem:[#allocation4 + $0x18] sm:$0xff] %vm1953, %v1864
        %1958 = vst.msk [vmem:[#allocation4 + $0x20] sm:$0xff] %vm1953, %v1866
        %1959 = vst.msk [vmem:[#allocation4 + $0x28] sm:$0xff] %vm1953, %v1868
        %1960 = vst.msk [vmem:[#allocation4 + $0x30] sm:$0xff] %vm1953, %v1870
        %1961 = vst.msk [vmem:[#allocation4 + $0x38] sm:$0xff] %vm1953, %v1872
        %1962 = vst.msk [vmem:[#allocation4 + $0x40] sm:$0xff] %vm1953, %v1874
        %1963 = vst.msk [vmem:[#allocation4 + $0x48] sm:$0xff] %vm1953, %v1876
        %1964 = vst.msk [vmem:[#allocation4 + $0x50] sm:$0xff] %vm1953, %v1878
        %1965 = vst.msk [vmem:[#allocation4 + $0x58] sm:$0xff] %vm1953, %v1880
        %1966 = vst.msk [vmem:[#allocation4 + $0x60] sm:$0xff] %vm1953, %v1882
        %1967 = vst.msk [vmem:[#allocation4 + $0x68] sm:$0xff] %vm1953, %v1884
        %1968 = vst.msk [vmem:[#allocation4 + $0x70] sm:$0xff] %vm1953, %v1886
        %1969 = vst.msk [vmem:[#allocation4 + $0x78] sm:$0xff] %vm1953, %v1888
        %1970 = vst.msk [vmem:[#allocation4 + $0x80] sm:$0xff] %vm1953, %v1890
        %1971 = vst.msk [vmem:[#allocation4 + $0x88] sm:$0xff] %vm1953, %v1892
        %1972 = vst.msk [vmem:[#allocation4 + $0x90] sm:$0xff] %vm1953, %v1894
        %1973 = vst.msk [vmem:[#allocation4 + $0x98] sm:$0xff] %vm1953, %v1896
        %1974 = vst.msk [vmem:[#allocation4 + $0xa0] sm:$0xff] %vm1953, %v1898
        %1975 = vst.msk [vmem:[#allocation4 + $0xa8] sm:$0xff] %vm1953, %v1900
        %1976 = vst.msk [vmem:[#allocation4 + $0xb0] sm:$0xff] %vm1953, %v1902
        %1977 = vst.msk [vmem:[#allocation4 + $0xb8] sm:$0xff] %vm1953, %v1904
        %1978 = vst.msk [vmem:[#allocation4 + $0xc0] sm:$0xff] %vm1953, %v1906
        %1979 = vst.msk [vmem:[#allocation4 + $0xc8] sm:$0xff] %vm1953, %v1908
        %1980 = vst.msk [vmem:[#allocation4 + $0xd0] sm:$0xff] %vm1953, %v1910
        %1981 = vst.msk [vmem:[#allocation4 + $0xd8] sm:$0xff] %vm1953, %v1912
        %1982 = vst.msk [vmem:[#allocation4 + $0xe0] sm:$0xff] %vm1953, %v1914
        %1983 = vst.msk [vmem:[#allocation4 + $0xe8] sm:$0xff] %vm1953, %v1916
        %1984 = vst.msk [vmem:[#allocation4 + $0xf0] sm:$0xff] %vm1953, %v1918
        %1985 = vst.msk [vmem:[#allocation4 + $0xf8] sm:$0xff] %vm1953, %v1920
        %v1986 = vld [vmem:[#allocation4] sm:$0xff]
        %v1987 = vld [vmem:[#allocation4 + $0x8] sm:$0xff]
        %v1988 = vld [vmem:[#allocation4 + $0x10] sm:$0xff]
        %v1989 = vld [vmem:[#allocation4 + $0x18] sm:$0xff]
        %v1990 = vld [vmem:[#allocation4 + $0x20] sm:$0xff]
        %v1991 = vld [vmem:[#allocation4 + $0x28] sm:$0xff]
        %v1992 = vld [vmem:[#allocation4 + $0x30] sm:$0xff]
        %v1993 = vld [vmem:[#allocation4 + $0x38] sm:$0xff]
        %v1994 = vld [vmem:[#allocation4 + $0x40] sm:$0xff]
        %v1995 = vld [vmem:[#allocation4 + $0x48] sm:$0xff]
        %v1996 = vld [vmem:[#allocation4 + $0x50] sm:$0xff]
        %v1997 = vld [vmem:[#allocation4 + $0x58] sm:$0xff]
        %v1998 = vld [vmem:[#allocation4 + $0x60] sm:$0xff]
        %v1999 = vld [vmem:[#allocation4 + $0x68] sm:$0xff]
        %v2000 = vld [vmem:[#allocation4 + $0x70] sm:$0xff]
        %v2001 = vld [vmem:[#allocation4 + $0x78] sm:$0xff]
        %v2002 = vld [vmem:[#allocation4 + $0x80] sm:$0xff]
        %v2003 = vld [vmem:[#allocation4 + $0x88] sm:$0xff]
        %v2004 = vld [vmem:[#allocation4 + $0x90] sm:$0xff]
        %v2005 = vld [vmem:[#allocation4 + $0x98] sm:$0xff]
        %v2006 = vld [vmem:[#allocation4 + $0xa0] sm:$0xff]
        %v2007 = vld [vmem:[#allocation4 + $0xa8] sm:$0xff]
        %v2008 = vld [vmem:[#allocation4 + $0xb0] sm:$0xff]
        %v2009 = vld [vmem:[#allocation4 + $0xb8] sm:$0xff]
        %v2010 = vld [vmem:[#allocation4 + $0xc0] sm:$0xff]
        %v2011 = vld [vmem:[#allocation4 + $0xc8] sm:$0xff]
        %v2012 = vld [vmem:[#allocation4 + $0xd0] sm:$0xff]
        %v2013 = vld [vmem:[#allocation4 + $0xd8] sm:$0xff]
        %v2014 = vld [vmem:[#allocation4 + $0xe0] sm:$0xff]
        %v2015 = vld [vmem:[#allocation4 + $0xe8] sm:$0xff]
        %v2016 = vld [vmem:[#allocation4 + $0xf0] sm:$0xff]
        %v2017 = vld [vmem:[#allocation4 + $0xf8] sm:$0xff]
        %v2018 = vpack.c.bf16 %v1987, %v1986
        %v2019 = vpack.c.bf16 %v1989, %v1988
        %v2020 = vpack.c.bf16 %v1991, %v1990
        %v2021 = vpack.c.bf16 %v1993, %v1992
        %v2022 = vpack.c.bf16 %v1995, %v1994
        %v2023 = vpack.c.bf16 %v1997, %v1996
        %v2024 = vpack.c.bf16 %v1999, %v1998
        %v2025 = vpack.c.bf16 %v2001, %v2000
        %v2026 = vpack.c.bf16 %v2003, %v2002
        %v2027 = vpack.c.bf16 %v2005, %v2004
        %v2028 = vpack.c.bf16 %v2007, %v2006
        %v2029 = vpack.c.bf16 %v2009, %v2008
        %v2030 = vpack.c.bf16 %v2011, %v2010
        %v2031 = vpack.c.bf16 %v2013, %v2012
        %v2032 = vpack.c.bf16 %v2015, %v2014
        %v2033 = vpack.c.bf16 %v2017, %v2016
        %v2034 = vld [vmem:[%s1] sm:$0xf]
        %v2035 = vld [vmem:[%s1 + $0x4] sm:$0xf]
        %v2036 = vld [vmem:[%s1 + $0x8] sm:$0xf]
        %v2037 = vld [vmem:[%s1 + $0xc] sm:$0xf]
        %v2038 = vld [vmem:[%s1 + $0x10] sm:$0x3]
        %v2039 = vld [vmem:[%s2] sm:$0x1]
        %v2041 = vlaneseq
        %v2042 = vshrl.u32 %v2041, 7
        %v2043 = vsub.s32 0, %v2042
        %v2044 = vrot.slane %v2039, %v2043
        %v2051 = vunpack.c.l.b16 %v2034
        %v2052 = vunpack.c.l.b16 %v2035
        %v2053 = vunpack.c.l.b16 %v2036
        %v2054 = vunpack.c.l.b16 %v2037
        %v2055 = vunpack.c.l.b16 %v2038
        %v2056 = vpack.c.b16 %v2052, %v2051
        %v2057 = vpack.c.b16 %v2054, %v2053
        %v2058 = vpack.c.b16 %v2055, %v2055
        %vm2061 = vcmask 293888
        %v2063 = vsel %vm2061, %v2018, 0
        %v2066 = vsel %vm2061, %v2019, 0
        %v2069 = vsel %vm2061, %v2020, 0
        %v2072 = vsel %vm2061, %v2021, 0
        %v2075 = vsel %vm2061, %v2022, 0
        %v2078 = vsel %vm2061, %v2023, 0
        %v2081 = vsel %vm2061, %v2024, 0
        %v2084 = vsel %vm2061, %v2025, 0
        %v2087 = vsel %vm2061, %v2026, 0
        %v2090 = vsel %vm2061, %v2027, 0
        %v2093 = vsel %vm2061, %v2028, 0
        %v2096 = vsel %vm2061, %v2029, 0
        %v2099 = vsel %vm2061, %v2030, 0
        %v2102 = vsel %vm2061, %v2031, 0
        %v2105 = vsel %vm2061, %v2032, 0
        %v2108 = vsel %vm2061, %v2033, 0
        %vm2110 = vcmask 1041408
        %v2112 = vsel %vm2110, %v2058, 0
        %2114 = vmatprep.subr.bf16.mxu0 0
        %2115 = vmatpush1.bf16.msra.mxu0 0
        %2116 = vmatprep.subr.bf16.mxu0 0
        %2117 = vmatpush1.bf16.msra.mxu0 0
        %2118 = vmatprep.subr.bf16.mxu0 0
        %2119 = vmatpush1.bf16.msra.mxu0 0
        %2120 = vmatprep.subr.bf16.mxu0 0
        %2121 = vmatpush1.bf16.msra.mxu0 0
        %2122 = vmatprep.subr.bf16.mxu0 0
        %2123 = vmatpush1.bf16.msra.mxu0 0
        %2124 = vmatprep.subr.bf16.mxu0 0
        %2125 = vmatpush1.bf16.msra.mxu0 %v2112
        %2126 = vmatprep.subr.bf16.mxu0 0
        %2127 = vmatpush1.bf16.msra.mxu0 %v2057
        %2128 = vmatprep.subr.bf16.mxu0 0
        %2129 = vmatpush1.bf16.msra.mxu0 %v2056
        %2130 = vmatprep.subr.bf16.mxu0 0
        %2131 = vmatpush2.bf16.msra.mxu0 0
        %2132 = vmatprep.subr.bf16.mxu0 0
        %2133 = vmatpush2.bf16.msra.mxu0 0
        %2134 = vmatprep.subr.bf16.mxu0 0
        %2135 = vmatpush2.bf16.msra.mxu0 0
        %2136 = vmatprep.subr.bf16.mxu0 0
        %2137 = vmatpush2.bf16.msra.mxu0 0
        %2138 = vmatprep.subr.bf16.mxu0 0
        %2139 = vmatpush2.bf16.msra.mxu0 0
        %2140 = vmatprep.subr.bf16.mxu0 0
        %2141 = vmatpush2.bf16.msra.mxu0 0
        %2142 = vmatprep.subr.bf16.mxu0 0
        %2143 = vmatpush2.bf16.msra.mxu0 0
        %2144 = vmatprep.subr.bf16.mxu0 0
        %2145 = vmatpush2.bf16.msra.mxu0 0
        %2146 = vmatprep.mubr.bf16.mxu0 0
        %2147 = vmatmul.mubr.bf16.gmra.mxu0 %v2063
        %v2148 = vpop.f32.mrf.mxu0
        %v2149 = vadd.f32 %v2044, %v2148
        %v2150 = vpop.f32.mrf.mxu0
        %v2151 = vpop.f32.mrf.mxu0
        %v2152 = vadd.f32 %v2044, %v2151
        %v2153 = vpop.f32.mrf.mxu0
        %2154 = vmatprep.mubr.bf16.mxu0 0
        %2155 = vmatmul.mubr.bf16.gmra.mxu0 %v2066
        %v2156 = vpop.f32.mrf.mxu0
        %v2157 = vadd.f32 %v2044, %v2156
        %v2158 = vpop.f32.mrf.mxu0
        %v2159 = vpop.f32.mrf.mxu0
        %v2160 = vadd.f32 %v2044, %v2159
        %v2161 = vpop.f32.mrf.mxu0
        %2162 = vmatprep.mubr.bf16.mxu0 0
        %2163 = vmatmul.mubr.bf16.gmra.mxu0 %v2069
        %v2164 = vpop.f32.mrf.mxu0
        %v2165 = vadd.f32 %v2044, %v2164
        %v2166 = vpop.f32.mrf.mxu0
        %v2167 = vpop.f32.mrf.mxu0
        %v2168 = vadd.f32 %v2044, %v2167
        %v2169 = vpop.f32.mrf.mxu0
        %2170 = vmatprep.mubr.bf16.mxu0 0
        %2171 = vmatmul.mubr.bf16.gmra.mxu0 %v2072
        %v2172 = vpop.f32.mrf.mxu0
        %v2173 = vadd.f32 %v2044, %v2172
        %v2174 = vpop.f32.mrf.mxu0
        %v2175 = vpop.f32.mrf.mxu0
        %v2176 = vadd.f32 %v2044, %v2175
        %v2177 = vpop.f32.mrf.mxu0
        %2178 = vmatprep.mubr.bf16.mxu0 0
        %2179 = vmatmul.mubr.bf16.gmra.mxu0 %v2075
        %v2180 = vpop.f32.mrf.mxu0
        %v2181 = vadd.f32 %v2044, %v2180
        %v2182 = vpop.f32.mrf.mxu0
        %v2183 = vpop.f32.mrf.mxu0
        %v2184 = vadd.f32 %v2044, %v2183
        %v2185 = vpop.f32.mrf.mxu0
        %2186 = vmatprep.mubr.bf16.mxu0 0
        %2187 = vmatmul.mubr.bf16.gmra.mxu0 %v2078
        %v2188 = vpop.f32.mrf.mxu0
        %v2189 = vadd.f32 %v2044, %v2188
        %v2190 = vpop.f32.mrf.mxu0
        %v2191 = vpop.f32.mrf.mxu0
        %v2192 = vadd.f32 %v2044, %v2191
        %v2193 = vpop.f32.mrf.mxu0
        %2194 = vmatprep.mubr.bf16.mxu0 0
        %2195 = vmatmul.mubr.bf16.gmra.mxu0 %v2081
        %v2196 = vpop.f32.mrf.mxu0
        %v2197 = vadd.f32 %v2044, %v2196
        %v2198 = vpop.f32.mrf.mxu0
        %v2199 = vpop.f32.mrf.mxu0
        %v2200 = vadd.f32 %v2044, %v2199
        %v2201 = vpop.f32.mrf.mxu0
        %2202 = vmatprep.mubr.bf16.mxu0 0
        %2203 = vmatmul.mubr.bf16.gmra.mxu0 %v2084
        %v2204 = vpop.f32.mrf.mxu0
        %v2205 = vadd.f32 %v2044, %v2204
        %v2206 = vpop.f32.mrf.mxu0
        %v2207 = vpop.f32.mrf.mxu0
        %v2208 = vadd.f32 %v2044, %v2207
        %v2209 = vpop.f32.mrf.mxu0
        %2210 = vmatprep.mubr.bf16.mxu0 0
        %2211 = vmatmul.mubr.bf16.gmra.mxu0 %v2087
        %v2212 = vpop.f32.mrf.mxu0
        %v2213 = vadd.f32 %v2044, %v2212
        %v2214 = vpop.f32.mrf.mxu0
        %v2215 = vpop.f32.mrf.mxu0
        %v2216 = vadd.f32 %v2044, %v2215
        %v2217 = vpop.f32.mrf.mxu0
        %2218 = vmatprep.mubr.bf16.mxu0 0
        %2219 = vmatmul.mubr.bf16.gmra.mxu0 %v2090
        %v2220 = vpop.f32.mrf.mxu0
        %v2221 = vadd.f32 %v2044, %v2220
        %v2222 = vpop.f32.mrf.mxu0
        %v2223 = vpop.f32.mrf.mxu0
        %v2224 = vadd.f32 %v2044, %v2223
        %v2225 = vpop.f32.mrf.mxu0
        %2226 = vmatprep.mubr.bf16.mxu0 0
        %2227 = vmatmul.mubr.bf16.gmra.mxu0 %v2093
        %v2228 = vpop.f32.mrf.mxu0
        %v2229 = vadd.f32 %v2044, %v2228
        %v2230 = vpop.f32.mrf.mxu0
        %v2231 = vpop.f32.mrf.mxu0
        %v2232 = vadd.f32 %v2044, %v2231
        %v2233 = vpop.f32.mrf.mxu0
        %2234 = vmatprep.mubr.bf16.mxu0 0
        %2235 = vmatmul.mubr.bf16.gmra.mxu0 %v2096
        %v2236 = vpop.f32.mrf.mxu0
        %v2237 = vadd.f32 %v2044, %v2236
        %v2238 = vpop.f32.mrf.mxu0
        %v2239 = vpop.f32.mrf.mxu0
        %v2240 = vadd.f32 %v2044, %v2239
        %v2241 = vpop.f32.mrf.mxu0
        %2242 = vmatprep.mubr.bf16.mxu0 0
        %2243 = vmatmul.mubr.bf16.gmra.mxu0 %v2099
        %v2244 = vpop.f32.mrf.mxu0
        %v2245 = vadd.f32 %v2044, %v2244
        %v2246 = vpop.f32.mrf.mxu0
        %v2247 = vpop.f32.mrf.mxu0
        %v2248 = vadd.f32 %v2044, %v2247
        %v2249 = vpop.f32.mrf.mxu0
        %2250 = vmatprep.mubr.bf16.mxu0 0
        %2251 = vmatmul.mubr.bf16.gmra.mxu0 %v2102
        %v2252 = vpop.f32.mrf.mxu0
        %v2253 = vadd.f32 %v2044, %v2252
        %v2254 = vpop.f32.mrf.mxu0
        %v2255 = vpop.f32.mrf.mxu0
        %v2256 = vadd.f32 %v2044, %v2255
        %v2257 = vpop.f32.mrf.mxu0
        %2258 = vmatprep.mubr.bf16.mxu0 0
        %2259 = vmatmul.mubr.bf16.gmra.mxu0 %v2105
        %v2260 = vpop.f32.mrf.mxu0
        %v2261 = vadd.f32 %v2044, %v2260
        %v2262 = vpop.f32.mrf.mxu0
        %v2263 = vpop.f32.mrf.mxu0
        %v2264 = vadd.f32 %v2044, %v2263
        %v2265 = vpop.f32.mrf.mxu0
        %2266 = vmatprep.mubr.bf16.mxu0 0
        %2267 = vmatmul.mubr.bf16.gmra.mxu0 %v2108
        %v2268 = vpop.f32.mrf.mxu0
        %v2269 = vadd.f32 %v2044, %v2268
        %v2270 = vpop.f32.mrf.mxu0
        %v2271 = vpop.f32.mrf.mxu0
        %v2272 = vadd.f32 %v2044, %v2271
        %v2273 = vpop.f32.mrf.mxu0
        %2274 = vdwg.mxu0
        %v2275 = vmax.f32 %v2149, 0.0
        %v2276 = vmax.f32 %v2152, 0.0
        %v2277 = vmax.f32 %v2157, 0.0
        %v2278 = vmax.f32 %v2160, 0.0
        %v2279 = vmax.f32 %v2165, 0.0
        %v2280 = vmax.f32 %v2168, 0.0
        %v2281 = vmax.f32 %v2173, 0.0
        %v2282 = vmax.f32 %v2176, 0.0
        %v2283 = vmax.f32 %v2181, 0.0
        %v2284 = vmax.f32 %v2184, 0.0
        %v2285 = vmax.f32 %v2189, 0.0
        %v2286 = vmax.f32 %v2192, 0.0
        %v2287 = vmax.f32 %v2197, 0.0
        %v2288 = vmax.f32 %v2200, 0.0
        %v2289 = vmax.f32 %v2205, 0.0
        %v2290 = vmax.f32 %v2208, 0.0
        %v2291 = vmax.f32 %v2213, 0.0
        %v2292 = vmax.f32 %v2216, 0.0
        %v2293 = vmax.f32 %v2221, 0.0
        %v2294 = vmax.f32 %v2224, 0.0
        %v2295 = vmax.f32 %v2229, 0.0
        %v2296 = vmax.f32 %v2232, 0.0
        %v2297 = vmax.f32 %v2237, 0.0
        %v2298 = vmax.f32 %v2240, 0.0
        %v2299 = vmax.f32 %v2245, 0.0
        %v2300 = vmax.f32 %v2248, 0.0
        %v2301 = vmax.f32 %v2253, 0.0
        %v2302 = vmax.f32 %v2256, 0.0
        %v2303 = vmax.f32 %v2261, 0.0
        %v2304 = vmax.f32 %v2264, 0.0
        %v2305 = vmax.f32 %v2269, 0.0
        %v2306 = vmax.f32 %v2272, 0.0
        %vm2307 = vcmask 64512
        %2308 = vst.msk [vmem:[#allocation3] sm:$0xff] %vm2307, 0.0
        %2309 = vst.msk [vmem:[#allocation3 + $0x8] sm:$0xff] %vm2307, 0.0
        %vm2310 = vcmask 58368
        %2311 = vst.msk [vmem:[#allocation3 + $0x10] sm:$0x3] %vm2310, 0.0
        %2312 = vst.msk [vmem:[#allocation3 + $0x18] sm:$0xff] %vm2307, 0.0
        %2313 = vst.msk [vmem:[#allocation3 + $0x20] sm:$0xff] %vm2307, 0.0
        %2314 = vst.msk [vmem:[#allocation3 + $0x28] sm:$0x3] %vm2310, 0.0
        %2315 = vst.msk [vmem:[#allocation3 + $0x30] sm:$0xff] %vm2307, 0.0
        %2316 = vst.msk [vmem:[#allocation3 + $0x38] sm:$0xff] %vm2307, 0.0
        %2317 = vst.msk [vmem:[#allocation3 + $0x40] sm:$0x3] %vm2310, 0.0
        %2318 = vst.msk [vmem:[#allocation3 + $0x48] sm:$0xff] %vm2307, 0.0
        %2319 = vst.msk [vmem:[#allocation3 + $0x50] sm:$0xff] %vm2307, 0.0
        %2320 = vst.msk [vmem:[#allocation3 + $0x58] sm:$0x3] %vm2310, 0.0
        %2321 = vst.msk [vmem:[#allocation3 + $0x60] sm:$0xff] %vm2307, 0.0
        %2322 = vst.msk [vmem:[#allocation3 + $0x68] sm:$0xff] %vm2307, 0.0
        %2323 = vst.msk [vmem:[#allocation3 + $0x70] sm:$0x3] %vm2310, 0.0
        %2324 = vst.msk [vmem:[#allocation3 + $0x78] sm:$0xff] %vm2307, 0.0
        %2325 = vst.msk [vmem:[#allocation3 + $0x80] sm:$0xff] %vm2307, 0.0
        %2326 = vst.msk [vmem:[#allocation3 + $0x88] sm:$0x3] %vm2310, 0.0
        %2327 = vst.msk [vmem:[#allocation3 + $0x90] sm:$0xff] %vm2307, 0.0
        %2328 = vst.msk [vmem:[#allocation3 + $0x98] sm:$0xff] %vm2307, 0.0
        %2329 = vst.msk [vmem:[#allocation3 + $0xa0] sm:$0x3] %vm2310, 0.0
        %2330 = vst.msk [vmem:[#allocation3 + $0xa8] sm:$0xff] %vm2307, 0.0
        %2331 = vst.msk [vmem:[#allocation3 + $0xb0] sm:$0xff] %vm2307, 0.0
        %2332 = vst.msk [vmem:[#allocation3 + $0xb8] sm:$0x3] %vm2310, 0.0
        %2333 = vst.msk [vmem:[#allocation3 + $0xc0] sm:$0xff] %vm2307, 0.0
        %2334 = vst.msk [vmem:[#allocation3 + $0xc8] sm:$0xff] %vm2307, 0.0
        %2335 = vst.msk [vmem:[#allocation3 + $0xd0] sm:$0x3] %vm2310, 0.0
        %2336 = vst.msk [vmem:[#allocation3 + $0xd8] sm:$0xff] %vm2307, 0.0
        %2337 = vst.msk [vmem:[#allocation3 + $0xe0] sm:$0xff] %vm2307, 0.0
        %2338 = vst.msk [vmem:[#allocation3 + $0xe8] sm:$0x3] %vm2310, 0.0
        %2339 = vst.msk [vmem:[#allocation3 + $0xf0] sm:$0xff] %vm2307, 0.0
        %2340 = vst.msk [vmem:[#allocation3 + $0xf8] sm:$0xff] %vm2307, 0.0
        %2341 = vst.msk [vmem:[#allocation3 + $0x100] sm:$0x3] %vm2310, 0.0
        %2342 = vst.msk [vmem:[#allocation3 + $0x108] sm:$0xff] %vm2307, 0.0
        %2343 = vst.msk [vmem:[#allocation3 + $0x110] sm:$0xff] %vm2307, 0.0
        %2344 = vst.msk [vmem:[#allocation3 + $0x118] sm:$0x3] %vm2310, 0.0
        %2345 = vst.msk [vmem:[#allocation3 + $0x120] sm:$0xff] %vm2307, 0.0
        %2346 = vst.msk [vmem:[#allocation3 + $0x128] sm:$0xff] %vm2307, 0.0
        %2347 = vst.msk [vmem:[#allocation3 + $0x130] sm:$0x3] %vm2310, 0.0
        %2348 = vst.msk [vmem:[#allocation3 + $0x138] sm:$0xff] %vm2307, 0.0
        %2349 = vst.msk [vmem:[#allocation3 + $0x140] sm:$0xff] %vm2307, 0.0
        %2350 = vst.msk [vmem:[#allocation3 + $0x148] sm:$0x3] %vm2310, 0.0
        %2351 = vst.msk [vmem:[#allocation3 + $0x150] sm:$0xff] %vm2307, 0.0
        %2352 = vst.msk [vmem:[#allocation3 + $0x158] sm:$0xff] %vm2307, 0.0
        %2353 = vst.msk [vmem:[#allocation3 + $0x160] sm:$0x3] %vm2310, 0.0
        %2354 = vst.msk [vmem:[#allocation3 + $0x168] sm:$0xff] %vm2307, 0.0
        %2355 = vst.msk [vmem:[#allocation3 + $0x170] sm:$0xff] %vm2307, 0.0
        %2356 = vst.msk [vmem:[#allocation3 + $0x178] sm:$0x3] %vm2310, 0.0
        %2357 = vst.msk [vmem:[#allocation3 + $0x180] sm:$0xff] %vm2307, 0.0
        %2358 = vst.msk [vmem:[#allocation3 + $0x188] sm:$0xff] %vm2307, 0.0
        %2359 = vst.msk [vmem:[#allocation3 + $0x190] sm:$0x3] %vm2310, 0.0
        %2360 = vst.msk [vmem:[#allocation3 + $0x198] sm:$0xff] %vm2307, 0.0
        %2361 = vst.msk [vmem:[#allocation3 + $0x1a0] sm:$0xff] %vm2307, 0.0
        %2362 = vst.msk [vmem:[#allocation3 + $0x1a8] sm:$0x3] %vm2310, 0.0
        %s2363 = scalar_lea.vmem [#allocation3], 24
        %2364 = vst.msk [vmem:[%s2363 + $0x1] sm:$0xff] %vm2307, %v2275
        %2365 = vst.msk [vmem:[%s2363 + $0x9] sm:$0xff] %vm2307, %v2276
        %2366 = vst.msk [vmem:[%s2363 + $0x19] sm:$0xff] %vm2307, %v2277
        %2367 = vst.msk [vmem:[%s2363 + $0x21] sm:$0xff] %vm2307, %v2278
        %2368 = vst.msk [vmem:[%s2363 + $0x31] sm:$0xff] %vm2307, %v2279
        %2369 = vst.msk [vmem:[%s2363 + $0x39] sm:$0xff] %vm2307, %v2280
        %2370 = vst.msk [vmem:[%s2363 + $0x49] sm:$0xff] %vm2307, %v2281
        %2371 = vst.msk [vmem:[%s2363 + $0x51] sm:$0xff] %vm2307, %v2282
        %2372 = vst.msk [vmem:[%s2363 + $0x61] sm:$0xff] %vm2307, %v2283
        %2373 = vst.msk [vmem:[%s2363 + $0x69] sm:$0xff] %vm2307, %v2284
        %2374 = vst.msk [vmem:[%s2363 + $0x79] sm:$0xff] %vm2307, %v2285
        %2375 = vst.msk [vmem:[%s2363 + $0x81] sm:$0xff] %vm2307, %v2286
        %2376 = vst.msk [vmem:[%s2363 + $0x91] sm:$0xff] %vm2307, %v2287
        %2377 = vst.msk [vmem:[%s2363 + $0x99] sm:$0xff] %vm2307, %v2288
        %2378 = vst.msk [vmem:[%s2363 + $0xa9] sm:$0xff] %vm2307, %v2289
        %2379 = vst.msk [vmem:[%s2363 + $0xb1] sm:$0xff] %vm2307, %v2290
        %2380 = vst.msk [vmem:[%s2363 + $0xc1] sm:$0xff] %vm2307, %v2291
        %2381 = vst.msk [vmem:[%s2363 + $0xc9] sm:$0xff] %vm2307, %v2292
        %2382 = vst.msk [vmem:[%s2363 + $0xd9] sm:$0xff] %vm2307, %v2293
        %2383 = vst.msk [vmem:[%s2363 + $0xe1] sm:$0xff] %vm2307, %v2294
        %2384 = vst.msk [vmem:[%s2363 + $0xf1] sm:$0xff] %vm2307, %v2295
        %2385 = vst.msk [vmem:[%s2363 + $0xf9] sm:$0xff] %vm2307, %v2296
        %2386 = vst.msk [vmem:[%s2363 + $0x109] sm:$0xff] %vm2307, %v2297
        %2387 = vst.msk [vmem:[%s2363 + $0x111] sm:$0xff] %vm2307, %v2298
        %2388 = vst.msk [vmem:[%s2363 + $0x121] sm:$0xff] %vm2307, %v2299
        %2389 = vst.msk [vmem:[%s2363 + $0x129] sm:$0xff] %vm2307, %v2300
        %2390 = vst.msk [vmem:[%s2363 + $0x139] sm:$0xff] %vm2307, %v2301
        %2391 = vst.msk [vmem:[%s2363 + $0x141] sm:$0xff] %vm2307, %v2302
        %2392 = vst.msk [vmem:[%s2363 + $0x151] sm:$0xff] %vm2307, %v2303
        %2393 = vst.msk [vmem:[%s2363 + $0x159] sm:$0xff] %vm2307, %v2304
        %2394 = vst.msk [vmem:[%s2363 + $0x169] sm:$0xff] %vm2307, %v2305
        %2395 = vst.msk [vmem:[%s2363 + $0x171] sm:$0xff] %vm2307, %v2306
        %v2396 = vld [vmem:[#allocation3] sm:$0xff]
        %v2397 = vld [vmem:[#allocation3 + $0x8] sm:$0xff]
        %v2398 = vld [vmem:[#allocation3 + $0x18] sm:$0xff]
        %v2399 = vld [vmem:[#allocation3 + $0x20] sm:$0xff]
        %v2400 = vld [vmem:[#allocation3 + $0x30] sm:$0xff]
        %v2401 = vld [vmem:[#allocation3 + $0x38] sm:$0xff]
        %v2402 = vld [vmem:[#allocation3 + $0x48] sm:$0xff]
        %v2403 = vld [vmem:[#allocation3 + $0x50] sm:$0xff]
        %v2404 = vld [vmem:[#allocation3 + $0x60] sm:$0xff]
        %v2405 = vld [vmem:[#allocation3 + $0x68] sm:$0xff]
        %v2406 = vld [vmem:[#allocation3 + $0x78] sm:$0xff]
        %v2407 = vld [vmem:[#allocation3 + $0x80] sm:$0xff]
        %v2408 = vld [vmem:[#allocation3 + $0x90] sm:$0xff]
        %v2409 = vld [vmem:[#allocation3 + $0x98] sm:$0xff]
        %v2410 = vld [vmem:[#allocation3 + $0xa8] sm:$0xff]
        %v2411 = vld [vmem:[#allocation3 + $0xb0] sm:$0xff]
        %v2412 = vld [vmem:[#allocation3 + $0xc0] sm:$0xff]
        %v2413 = vld [vmem:[#allocation3 + $0xc8] sm:$0xff]
        %v2414 = vld [vmem:[#allocation3 + $0xd8] sm:$0xff]
        %v2415 = vld [vmem:[#allocation3 + $0xe0] sm:$0xff]
        %v2416 = vld [vmem:[#allocation3 + $0xf0] sm:$0xff]
        %v2417 = vld [vmem:[#allocation3 + $0xf8] sm:$0xff]
        %v2418 = vld [vmem:[#allocation3 + $0x108] sm:$0xff]
        %v2419 = vld [vmem:[#allocation3 + $0x110] sm:$0xff]
        %v2420 = vld [vmem:[#allocation3 + $0x120] sm:$0xff]
        %v2421 = vld [vmem:[#allocation3 + $0x128] sm:$0xff]
        %v2422 = vld [vmem:[#allocation3 + $0x138] sm:$0xff]
        %v2423 = vld [vmem:[#allocation3 + $0x140] sm:$0xff]
        %v2424 = vld [vmem:[#allocation3 + $0x150] sm:$0xff]
        %v2425 = vld [vmem:[#allocation3 + $0x158] sm:$0xff]
        %v2426 = vld [vmem:[#allocation3 + $0x168] sm:$0xff]
        %v2427 = vld [vmem:[#allocation3 + $0x170] sm:$0xff]
        %2428 = vst.msk [vmem:[#allocation5] sm:$0xff] %vm2307, %v2396
        %2429 = vst.msk [vmem:[#allocation5 + $0x8] sm:$0xff] %vm2307, %v2397
        %2430 = vst.msk [vmem:[#allocation5 + $0x10] sm:$0xff] %vm2307, %v2398
        %2431 = vst.msk [vmem:[#allocation5 + $0x18] sm:$0xff] %vm2307, %v2399
        %2432 = vst.msk [vmem:[#allocation5 + $0x20] sm:$0xff] %vm2307, %v2400
        %2433 = vst.msk [vmem:[#allocation5 + $0x28] sm:$0xff] %vm2307, %v2401
        %2434 = vst.msk [vmem:[#allocation5 + $0x30] sm:$0xff] %vm2307, %v2402
        %2435 = vst.msk [vmem:[#allocation5 + $0x38] sm:$0xff] %vm2307, %v2403
        %2436 = vst.msk [vmem:[#allocation5 + $0x40] sm:$0xff] %vm2307, %v2404
        %2437 = vst.msk [vmem:[#allocation5 + $0x48] sm:$0xff] %vm2307, %v2405
        %2438 = vst.msk [vmem:[#allocation5 + $0x50] sm:$0xff] %vm2307, %v2406
        %2439 = vst.msk [vmem:[#allocation5 + $0x58] sm:$0xff] %vm2307, %v2407
        %2440 = vst.msk [vmem:[#allocation5 + $0x60] sm:$0xff] %vm2307, %v2408
        %2441 = vst.msk [vmem:[#allocation5 + $0x68] sm:$0xff] %vm2307, %v2409
        %2442 = vst.msk [vmem:[#allocation5 + $0x70] sm:$0xff] %vm2307, %v2410
        %2443 = vst.msk [vmem:[#allocation5 + $0x78] sm:$0xff] %vm2307, %v2411
        %2444 = vst.msk [vmem:[#allocation5 + $0x80] sm:$0xff] %vm2307, %v2412
        %2445 = vst.msk [vmem:[#allocation5 + $0x88] sm:$0xff] %vm2307, %v2413
        %2446 = vst.msk [vmem:[#allocation5 + $0x90] sm:$0xff] %vm2307, %v2414
        %2447 = vst.msk [vmem:[#allocation5 + $0x98] sm:$0xff] %vm2307, %v2415
        %2448 = vst.msk [vmem:[#allocation5 + $0xa0] sm:$0xff] %vm2307, %v2416
        %2449 = vst.msk [vmem:[#allocation5 + $0xa8] sm:$0xff] %vm2307, %v2417
        %2450 = vst.msk [vmem:[#allocation5 + $0xb0] sm:$0xff] %vm2307, %v2418
        %2451 = vst.msk [vmem:[#allocation5 + $0xb8] sm:$0xff] %vm2307, %v2419
        %2452 = vst.msk [vmem:[#allocation5 + $0xc0] sm:$0xff] %vm2307, %v2420
        %2453 = vst.msk [vmem:[#allocation5 + $0xc8] sm:$0xff] %vm2307, %v2421
        %2454 = vst.msk [vmem:[#allocation5 + $0xd0] sm:$0xff] %vm2307, %v2422
        %2455 = vst.msk [vmem:[#allocation5 + $0xd8] sm:$0xff] %vm2307, %v2423
        %2456 = vst.msk [vmem:[#allocation5 + $0xe0] sm:$0xff] %vm2307, %v2424
        %2457 = vst.msk [vmem:[#allocation5 + $0xe8] sm:$0xff] %vm2307, %v2425
        %2458 = vst.msk [vmem:[#allocation5 + $0xf0] sm:$0xff] %vm2307, %v2426
        %2459 = vst.msk [vmem:[#allocation5 + $0xf8] sm:$0xff] %vm2307, %v2427
        %v2460 = vld [vmem:[#allocation3 + $0x1] sm:$0xff]
        %v2461 = vld [vmem:[#allocation3 + $0x9] sm:$0xff]
        %v2462 = vld [vmem:[#allocation3 + $0x19] sm:$0xff]
        %v2463 = vld [vmem:[#allocation3 + $0x21] sm:$0xff]
        %v2464 = vld [vmem:[#allocation3 + $0x31] sm:$0xff]
        %v2465 = vld [vmem:[#allocation3 + $0x39] sm:$0xff]
        %v2466 = vld [vmem:[#allocation3 + $0x49] sm:$0xff]
        %v2467 = vld [vmem:[#allocation3 + $0x51] sm:$0xff]
        %v2468 = vld [vmem:[#allocation3 + $0x61] sm:$0xff]
        %v2469 = vld [vmem:[#allocation3 + $0x69] sm:$0xff]
        %v2470 = vld [vmem:[#allocation3 + $0x79] sm:$0xff]
        %v2471 = vld [vmem:[#allocation3 + $0x81] sm:$0xff]
        %v2472 = vld [vmem:[#allocation3 + $0x91] sm:$0xff]
        %v2473 = vld [vmem:[#allocation3 + $0x99] sm:$0xff]
        %v2474 = vld [vmem:[#allocation3 + $0xa9] sm:$0xff]
        %v2475 = vld [vmem:[#allocation3 + $0xb1] sm:$0xff]
        %v2476 = vld [vmem:[#allocation3 + $0xc1] sm:$0xff]
        %v2477 = vld [vmem:[#allocation3 + $0xc9] sm:$0xff]
        %v2478 = vld [vmem:[#allocation3 + $0xd9] sm:$0xff]
        %v2479 = vld [vmem:[#allocation3 + $0xe1] sm:$0xff]
        %v2480 = vld [vmem:[#allocation3 + $0xf1] sm:$0xff]
        %v2481 = vld [vmem:[#allocation3 + $0xf9] sm:$0xff]
        %v2482 = vld [vmem:[#allocation3 + $0x109] sm:$0xff]
        %v2483 = vld [vmem:[#allocation3 + $0x111] sm:$0xff]
        %v2484 = vld [vmem:[#allocation3 + $0x121] sm:$0xff]
        %v2485 = vld [vmem:[#allocation3 + $0x129] sm:$0xff]
        %v2486 = vld [vmem:[#allocation3 + $0x139] sm:$0xff]
        %v2487 = vld [vmem:[#allocation3 + $0x141] sm:$0xff]
        %v2488 = vld [vmem:[#allocation3 + $0x151] sm:$0xff]
        %v2489 = vld [vmem:[#allocation3 + $0x159] sm:$0xff]
        %v2490 = vld [vmem:[#allocation3 + $0x169] sm:$0xff]
        %v2491 = vld [vmem:[#allocation3 + $0x171] sm:$0xff]
        %2524 = vrot.lane.b32.xlu0 %v2460, 8
        %v2525 = vpop.permute.xlu0 %2524
        %2526 = vrot.lane.b32.xlu0 %v2461, 8
        %v2527 = vpop.permute.xlu0 %2526
        %2528 = vrot.lane.b32.xlu0 %v2462, 8
        %v2529 = vpop.permute.xlu0 %2528
        %2530 = vrot.lane.b32.xlu0 %v2463, 8
        %v2531 = vpop.permute.xlu0 %2530
        %2532 = vrot.lane.b32.xlu0 %v2464, 8
        %v2533 = vpop.permute.xlu0 %2532
        %2534 = vrot.lane.b32.xlu0 %v2465, 8
        %v2535 = vpop.permute.xlu0 %2534
        %2536 = vrot.lane.b32.xlu0 %v2466, 8
        %v2537 = vpop.permute.xlu0 %2536
        %2538 = vrot.lane.b32.xlu0 %v2467, 8
        %v2539 = vpop.permute.xlu0 %2538
        %2540 = vrot.lane.b32.xlu0 %v2468, 8
        %v2541 = vpop.permute.xlu0 %2540
        %2542 = vrot.lane.b32.xlu0 %v2469, 8
        %v2543 = vpop.permute.xlu0 %2542
        %2544 = vrot.lane.b32.xlu0 %v2470, 8
        %v2545 = vpop.permute.xlu0 %2544
        %2546 = vrot.lane.b32.xlu0 %v2471, 8
        %v2547 = vpop.permute.xlu0 %2546
        %2548 = vrot.lane.b32.xlu0 %v2472, 8
        %v2549 = vpop.permute.xlu0 %2548
        %2550 = vrot.lane.b32.xlu0 %v2473, 8
        %v2551 = vpop.permute.xlu0 %2550
        %2552 = vrot.lane.b32.xlu0 %v2474, 8
        %v2553 = vpop.permute.xlu0 %2552
        %2554 = vrot.lane.b32.xlu0 %v2475, 8
        %v2555 = vpop.permute.xlu0 %2554
        %2556 = vrot.lane.b32.xlu0 %v2476, 8
        %v2557 = vpop.permute.xlu0 %2556
        %2558 = vrot.lane.b32.xlu0 %v2477, 8
        %v2559 = vpop.permute.xlu0 %2558
        %2560 = vrot.lane.b32.xlu0 %v2478, 8
        %v2561 = vpop.permute.xlu0 %2560
        %2562 = vrot.lane.b32.xlu0 %v2479, 8
        %v2563 = vpop.permute.xlu0 %2562
        %2564 = vrot.lane.b32.xlu0 %v2480, 8
        %v2565 = vpop.permute.xlu0 %2564
        %2566 = vrot.lane.b32.xlu0 %v2481, 8
        %v2567 = vpop.permute.xlu0 %2566
        %2568 = vrot.lane.b32.xlu0 %v2482, 8
        %v2569 = vpop.permute.xlu0 %2568
        %2570 = vrot.lane.b32.xlu0 %v2483, 8
        %v2571 = vpop.permute.xlu0 %2570
        %2572 = vrot.lane.b32.xlu0 %v2484, 8
        %v2573 = vpop.permute.xlu0 %2572
        %2574 = vrot.lane.b32.xlu0 %v2485, 8
        %v2575 = vpop.permute.xlu0 %2574
        %2576 = vrot.lane.b32.xlu0 %v2486, 8
        %v2577 = vpop.permute.xlu0 %2576
        %2578 = vrot.lane.b32.xlu0 %v2487, 8
        %v2579 = vpop.permute.xlu0 %2578
        %2580 = vrot.lane.b32.xlu0 %v2488, 8
        %v2581 = vpop.permute.xlu0 %2580
        %2582 = vrot.lane.b32.xlu0 %v2489, 8
        %v2583 = vpop.permute.xlu0 %2582
        %2584 = vrot.lane.b32.xlu0 %v2490, 8
        %v2585 = vpop.permute.xlu0 %2584
        %2586 = vrot.lane.b32.xlu0 %v2491, 8
        %v2587 = vpop.permute.xlu0 %2586
        %vm2620 = vcmask 130112
        %2621 = vst.msk [vmem:[#allocation5] sm:$0xff] %vm2620, %v2525
        %2622 = vst.msk [vmem:[#allocation5 + $0x8] sm:$0xff] %vm2620, %v2527
        %2623 = vst.msk [vmem:[#allocation5 + $0x10] sm:$0xff] %vm2620, %v2529
        %2624 = vst.msk [vmem:[#allocation5 + $0x18] sm:$0xff] %vm2620, %v2531
        %2625 = vst.msk [vmem:[#allocation5 + $0x20] sm:$0xff] %vm2620, %v2533
        %2626 = vst.msk [vmem:[#allocation5 + $0x28] sm:$0xff] %vm2620, %v2535
        %2627 = vst.msk [vmem:[#allocation5 + $0x30] sm:$0xff] %vm2620, %v2537
        %2628 = vst.msk [vmem:[#allocation5 + $0x38] sm:$0xff] %vm2620, %v2539
        %2629 = vst.msk [vmem:[#allocation5 + $0x40] sm:$0xff] %vm2620, %v2541
        %2630 = vst.msk [vmem:[#allocation5 + $0x48] sm:$0xff] %vm2620, %v2543
        %2631 = vst.msk [vmem:[#allocation5 + $0x50] sm:$0xff] %vm2620, %v2545
        %2632 = vst.msk [vmem:[#allocation5 + $0x58] sm:$0xff] %vm2620, %v2547
        %2633 = vst.msk [vmem:[#allocation5 + $0x60] sm:$0xff] %vm2620, %v2549
        %2634 = vst.msk [vmem:[#allocation5 + $0x68] sm:$0xff] %vm2620, %v2551
        %2635 = vst.msk [vmem:[#allocation5 + $0x70] sm:$0xff] %vm2620, %v2553
        %2636 = vst.msk [vmem:[#allocation5 + $0x78] sm:$0xff] %vm2620, %v2555
        %2637 = vst.msk [vmem:[#allocation5 + $0x80] sm:$0xff] %vm2620, %v2557
        %2638 = vst.msk [vmem:[#allocation5 + $0x88] sm:$0xff] %vm2620, %v2559
        %2639 = vst.msk [vmem:[#allocation5 + $0x90] sm:$0xff] %vm2620, %v2561
        %2640 = vst.msk [vmem:[#allocation5 + $0x98] sm:$0xff] %vm2620, %v2563
        %2641 = vst.msk [vmem:[#allocation5 + $0xa0] sm:$0xff] %vm2620, %v2565
        %2642 = vst.msk [vmem:[#allocation5 + $0xa8] sm:$0xff] %vm2620, %v2567
        %2643 = vst.msk [vmem:[#allocation5 + $0xb0] sm:$0xff] %vm2620, %v2569
        %2644 = vst.msk [vmem:[#allocation5 + $0xb8] sm:$0xff] %vm2620, %v2571
        %2645 = vst.msk [vmem:[#allocation5 + $0xc0] sm:$0xff] %vm2620, %v2573
        %2646 = vst.msk [vmem:[#allocation5 + $0xc8] sm:$0xff] %vm2620, %v2575
        %2647 = vst.msk [vmem:[#allocation5 + $0xd0] sm:$0xff] %vm2620, %v2577
        %2648 = vst.msk [vmem:[#allocation5 + $0xd8] sm:$0xff] %vm2620, %v2579
        %2649 = vst.msk [vmem:[#allocation5 + $0xe0] sm:$0xff] %vm2620, %v2581
        %2650 = vst.msk [vmem:[#allocation5 + $0xe8] sm:$0xff] %vm2620, %v2583
        %2651 = vst.msk [vmem:[#allocation5 + $0xf0] sm:$0xff] %vm2620, %v2585
        %2652 = vst.msk [vmem:[#allocation5 + $0xf8] sm:$0xff] %vm2620, %v2587
        %v2653 = vld [vmem:[#allocation3 + $0x2] sm:$0xff]
        %v2654 = vld [vmem:[#allocation3 + $0xa] sm:$0xff]
        %v2655 = vld [vmem:[#allocation3 + $0x1a] sm:$0xff]
        %v2656 = vld [vmem:[#allocation3 + $0x22] sm:$0xff]
        %v2657 = vld [vmem:[#allocation3 + $0x32] sm:$0xff]
        %v2658 = vld [vmem:[#allocation3 + $0x3a] sm:$0xff]
        %v2659 = vld [vmem:[#allocation3 + $0x4a] sm:$0xff]
        %v2660 = vld [vmem:[#allocation3 + $0x52] sm:$0xff]
        %v2661 = vld [vmem:[#allocation3 + $0x62] sm:$0xff]
        %v2662 = vld [vmem:[#allocation3 + $0x6a] sm:$0xff]
        %v2663 = vld [vmem:[#allocation3 + $0x7a] sm:$0xff]
        %v2664 = vld [vmem:[#allocation3 + $0x82] sm:$0xff]
        %v2665 = vld [vmem:[#allocation3 + $0x92] sm:$0xff]
        %v2666 = vld [vmem:[#allocation3 + $0x9a] sm:$0xff]
        %v2667 = vld [vmem:[#allocation3 + $0xaa] sm:$0xff]
        %v2668 = vld [vmem:[#allocation3 + $0xb2] sm:$0xff]
        %v2669 = vld [vmem:[#allocation3 + $0xc2] sm:$0xff]
        %v2670 = vld [vmem:[#allocation3 + $0xca] sm:$0xff]
        %v2671 = vld [vmem:[#allocation3 + $0xda] sm:$0xff]
        %v2672 = vld [vmem:[#allocation3 + $0xe2] sm:$0xff]
        %v2673 = vld [vmem:[#allocation3 + $0xf2] sm:$0xff]
        %v2674 = vld [vmem:[#allocation3 + $0xfa] sm:$0xff]
        %v2675 = vld [vmem:[#allocation3 + $0x10a] sm:$0xff]
        %v2676 = vld [vmem:[#allocation3 + $0x112] sm:$0xff]
        %v2677 = vld [vmem:[#allocation3 + $0x122] sm:$0xff]
        %v2678 = vld [vmem:[#allocation3 + $0x12a] sm:$0xff]
        %v2679 = vld [vmem:[#allocation3 + $0x13a] sm:$0xff]
        %v2680 = vld [vmem:[#allocation3 + $0x142] sm:$0xff]
        %v2681 = vld [vmem:[#allocation3 + $0x152] sm:$0xff]
        %v2682 = vld [vmem:[#allocation3 + $0x15a] sm:$0xff]
        %v2683 = vld [vmem:[#allocation3 + $0x16a] sm:$0xff]
        %v2684 = vld [vmem:[#allocation3 + $0x172] sm:$0xff]
        %2717 = vrot.lane.b32.xlu0 %v2653, 16
        %v2718 = vpop.permute.xlu0 %2717
        %2719 = vrot.lane.b32.xlu0 %v2654, 16
        %v2720 = vpop.permute.xlu0 %2719
        %2721 = vrot.lane.b32.xlu0 %v2655, 16
        %v2722 = vpop.permute.xlu0 %2721
        %2723 = vrot.lane.b32.xlu0 %v2656, 16
        %v2724 = vpop.permute.xlu0 %2723
        %2725 = vrot.lane.b32.xlu0 %v2657, 16
        %v2726 = vpop.permute.xlu0 %2725
        %2727 = vrot.lane.b32.xlu0 %v2658, 16
        %v2728 = vpop.permute.xlu0 %2727
        %2729 = vrot.lane.b32.xlu0 %v2659, 16
        %v2730 = vpop.permute.xlu0 %2729
        %2731 = vrot.lane.b32.xlu0 %v2660, 16
        %v2732 = vpop.permute.xlu0 %2731
        %2733 = vrot.lane.b32.xlu0 %v2661, 16
        %v2734 = vpop.permute.xlu0 %2733
        %2735 = vrot.lane.b32.xlu0 %v2662, 16
        %v2736 = vpop.permute.xlu0 %2735
        %2737 = vrot.lane.b32.xlu0 %v2663, 16
        %v2738 = vpop.permute.xlu0 %2737
        %2739 = vrot.lane.b32.xlu0 %v2664, 16
        %v2740 = vpop.permute.xlu0 %2739
        %2741 = vrot.lane.b32.xlu0 %v2665, 16
        %v2742 = vpop.permute.xlu0 %2741
        %2743 = vrot.lane.b32.xlu0 %v2666, 16
        %v2744 = vpop.permute.xlu0 %2743
        %2745 = vrot.lane.b32.xlu0 %v2667, 16
        %v2746 = vpop.permute.xlu0 %2745
        %2747 = vrot.lane.b32.xlu0 %v2668, 16
        %v2748 = vpop.permute.xlu0 %2747
        %2749 = vrot.lane.b32.xlu0 %v2669, 16
        %v2750 = vpop.permute.xlu0 %2749
        %2751 = vrot.lane.b32.xlu0 %v2670, 16
        %v2752 = vpop.permute.xlu0 %2751
        %2753 = vrot.lane.b32.xlu0 %v2671, 16
        %v2754 = vpop.permute.xlu0 %2753
        %2755 = vrot.lane.b32.xlu0 %v2672, 16
        %v2756 = vpop.permute.xlu0 %2755
        %2757 = vrot.lane.b32.xlu0 %v2673, 16
        %v2758 = vpop.permute.xlu0 %2757
        %2759 = vrot.lane.b32.xlu0 %v2674, 16
        %v2760 = vpop.permute.xlu0 %2759
        %2761 = vrot.lane.b32.xlu0 %v2675, 16
        %v2762 = vpop.permute.xlu0 %2761
        %2763 = vrot.lane.b32.xlu0 %v2676, 16
        %v2764 = vpop.permute.xlu0 %2763
        %2765 = vrot.lane.b32.xlu0 %v2677, 16
        %v2766 = vpop.permute.xlu0 %2765
        %2767 = vrot.lane.b32.xlu0 %v2678, 16
        %v2768 = vpop.permute.xlu0 %2767
        %2769 = vrot.lane.b32.xlu0 %v2679, 16
        %v2770 = vpop.permute.xlu0 %2769
        %2771 = vrot.lane.b32.xlu0 %v2680, 16
        %v2772 = vpop.permute.xlu0 %2771
        %2773 = vrot.lane.b32.xlu0 %v2681, 16
        %v2774 = vpop.permute.xlu0 %2773
        %2775 = vrot.lane.b32.xlu0 %v2682, 16
        %v2776 = vpop.permute.xlu0 %2775
        %2777 = vrot.lane.b32.xlu0 %v2683, 16
        %v2778 = vpop.permute.xlu0 %2777
        %2779 = vrot.lane.b32.xlu0 %v2684, 16
        %v2780 = vpop.permute.xlu0 %2779
        %vm2813 = vcmask 195712
        %2814 = vst.msk [vmem:[#allocation5] sm:$0xff] %vm2813, %v2718
        %2815 = vst.msk [vmem:[#allocation5 + $0x8] sm:$0xff] %vm2813, %v2720
        %2816 = vst.msk [vmem:[#allocation5 + $0x10] sm:$0xff] %vm2813, %v2722
        %2817 = vst.msk [vmem:[#allocation5 + $0x18] sm:$0xff] %vm2813, %v2724
        %2818 = vst.msk [vmem:[#allocation5 + $0x20] sm:$0xff] %vm2813, %v2726
        %2819 = vst.msk [vmem:[#allocation5 + $0x28] sm:$0xff] %vm2813, %v2728
        %2820 = vst.msk [vmem:[#allocation5 + $0x30] sm:$0xff] %vm2813, %v2730
        %2821 = vst.msk [vmem:[#allocation5 + $0x38] sm:$0xff] %vm2813, %v2732
        %2822 = vst.msk [vmem:[#allocation5 + $0x40] sm:$0xff] %vm2813, %v2734
        %2823 = vst.msk [vmem:[#allocation5 + $0x48] sm:$0xff] %vm2813, %v2736
        %2824 = vst.msk [vmem:[#allocation5 + $0x50] sm:$0xff] %vm2813, %v2738
        %2825 = vst.msk [vmem:[#allocation5 + $0x58] sm:$0xff] %vm2813, %v2740
        %2826 = vst.msk [vmem:[#allocation5 + $0x60] sm:$0xff] %vm2813, %v2742
        %2827 = vst.msk [vmem:[#allocation5 + $0x68] sm:$0xff] %vm2813, %v2744
        %2828 = vst.msk [vmem:[#allocation5 + $0x70] sm:$0xff] %vm2813, %v2746
        %2829 = vst.msk [vmem:[#allocation5 + $0x78] sm:$0xff] %vm2813, %v2748
        %2830 = vst.msk [vmem:[#allocation5 + $0x80] sm:$0xff] %vm2813, %v2750
        %2831 = vst.msk [vmem:[#allocation5 + $0x88] sm:$0xff] %vm2813, %v2752
        %2832 = vst.msk [vmem:[#allocation5 + $0x90] sm:$0xff] %vm2813, %v2754
        %2833 = vst.msk [vmem:[#allocation5 + $0x98] sm:$0xff] %vm2813, %v2756
        %2834 = vst.msk [vmem:[#allocation5 + $0xa0] sm:$0xff] %vm2813, %v2758
        %2835 = vst.msk [vmem:[#allocation5 + $0xa8] sm:$0xff] %vm2813, %v2760
        %2836 = vst.msk [vmem:[#allocation5 + $0xb0] sm:$0xff] %vm2813, %v2762
        %2837 = vst.msk [vmem:[#allocation5 + $0xb8] sm:$0xff] %vm2813, %v2764
        %2838 = vst.msk [vmem:[#allocation5 + $0xc0] sm:$0xff] %vm2813, %v2766
        %2839 = vst.msk [vmem:[#allocation5 + $0xc8] sm:$0xff] %vm2813, %v2768
        %2840 = vst.msk [vmem:[#allocation5 + $0xd0] sm:$0xff] %vm2813, %v2770
        %2841 = vst.msk [vmem:[#allocation5 + $0xd8] sm:$0xff] %vm2813, %v2772
        %2842 = vst.msk [vmem:[#allocation5 + $0xe0] sm:$0xff] %vm2813, %v2774
        %2843 = vst.msk [vmem:[#allocation5 + $0xe8] sm:$0xff] %vm2813, %v2776
        %2844 = vst.msk [vmem:[#allocation5 + $0xf0] sm:$0xff] %vm2813, %v2778
        %2845 = vst.msk [vmem:[#allocation5 + $0xf8] sm:$0xff] %vm2813, %v2780
        %v2846 = vld [vmem:[%s2363] sm:$0xff]
        %v2847 = vld [vmem:[%s2363 + $0x8] sm:$0xff]
        %v2848 = vld [vmem:[%s2363 + $0x18] sm:$0xff]
        %v2849 = vld [vmem:[%s2363 + $0x20] sm:$0xff]
        %v2850 = vld [vmem:[%s2363 + $0x30] sm:$0xff]
        %v2851 = vld [vmem:[%s2363 + $0x38] sm:$0xff]
        %v2852 = vld [vmem:[%s2363 + $0x48] sm:$0xff]
        %v2853 = vld [vmem:[%s2363 + $0x50] sm:$0xff]
        %v2854 = vld [vmem:[%s2363 + $0x60] sm:$0xff]
        %v2855 = vld [vmem:[%s2363 + $0x68] sm:$0xff]
        %v2856 = vld [vmem:[%s2363 + $0x78] sm:$0xff]
        %v2857 = vld [vmem:[%s2363 + $0x80] sm:$0xff]
        %v2858 = vld [vmem:[%s2363 + $0x90] sm:$0xff]
        %v2859 = vld [vmem:[%s2363 + $0x98] sm:$0xff]
        %v2860 = vld [vmem:[%s2363 + $0xa8] sm:$0xff]
        %v2861 = vld [vmem:[%s2363 + $0xb0] sm:$0xff]
        %v2862 = vld [vmem:[%s2363 + $0xc0] sm:$0xff]
        %v2863 = vld [vmem:[%s2363 + $0xc8] sm:$0xff]
        %v2864 = vld [vmem:[%s2363 + $0xd8] sm:$0xff]
        %v2865 = vld [vmem:[%s2363 + $0xe0] sm:$0xff]
        %v2866 = vld [vmem:[%s2363 + $0xf0] sm:$0xff]
        %v2867 = vld [vmem:[%s2363 + $0xf8] sm:$0xff]
        %v2868 = vld [vmem:[%s2363 + $0x108] sm:$0xff]
        %v2869 = vld [vmem:[%s2363 + $0x110] sm:$0xff]
        %v2870 = vld [vmem:[%s2363 + $0x120] sm:$0xff]
        %v2871 = vld [vmem:[%s2363 + $0x128] sm:$0xff]
        %v2872 = vld [vmem:[%s2363 + $0x138] sm:$0xff]
        %v2873 = vld [vmem:[%s2363 + $0x140] sm:$0xff]
        %v2874 = vld [vmem:[%s2363 + $0x150] sm:$0xff]
        %v2875 = vld [vmem:[%s2363 + $0x158] sm:$0xff]
        %v2876 = vld [vmem:[%s2363 + $0x168] sm:$0xff]
        %v2877 = vld [vmem:[%s2363 + $0x170] sm:$0xff]
        %2910 = vrot.lane.b32.xlu0 %v2846, 24
        %v2911 = vpop.permute.xlu0 %2910
        %2912 = vrot.lane.b32.xlu0 %v2847, 24
        %v2913 = vpop.permute.xlu0 %2912
        %2914 = vrot.lane.b32.xlu0 %v2848, 24
        %v2915 = vpop.permute.xlu0 %2914
        %2916 = vrot.lane.b32.xlu0 %v2849, 24
        %v2917 = vpop.permute.xlu0 %2916
        %2918 = vrot.lane.b32.xlu0 %v2850, 24
        %v2919 = vpop.permute.xlu0 %2918
        %2920 = vrot.lane.b32.xlu0 %v2851, 24
        %v2921 = vpop.permute.xlu0 %2920
        %2922 = vrot.lane.b32.xlu0 %v2852, 24
        %v2923 = vpop.permute.xlu0 %2922
        %2924 = vrot.lane.b32.xlu0 %v2853, 24
        %v2925 = vpop.permute.xlu0 %2924
        %2926 = vrot.lane.b32.xlu0 %v2854, 24
        %v2927 = vpop.permute.xlu0 %2926
        %2928 = vrot.lane.b32.xlu0 %v2855, 24
        %v2929 = vpop.permute.xlu0 %2928
        %2930 = vrot.lane.b32.xlu0 %v2856, 24
        %v2931 = vpop.permute.xlu0 %2930
        %2932 = vrot.lane.b32.xlu0 %v2857, 24
        %v2933 = vpop.permute.xlu0 %2932
        %2934 = vrot.lane.b32.xlu0 %v2858, 24
        %v2935 = vpop.permute.xlu0 %2934
        %2936 = vrot.lane.b32.xlu0 %v2859, 24
        %v2937 = vpop.permute.xlu0 %2936
        %2938 = vrot.lane.b32.xlu0 %v2860, 24
        %v2939 = vpop.permute.xlu0 %2938
        %2940 = vrot.lane.b32.xlu0 %v2861, 24
        %v2941 = vpop.permute.xlu0 %2940
        %2942 = vrot.lane.b32.xlu0 %v2862, 24
        %v2943 = vpop.permute.xlu0 %2942
        %2944 = vrot.lane.b32.xlu0 %v2863, 24
        %v2945 = vpop.permute.xlu0 %2944
        %2946 = vrot.lane.b32.xlu0 %v2864, 24
        %v2947 = vpop.permute.xlu0 %2946
        %2948 = vrot.lane.b32.xlu0 %v2865, 24
        %v2949 = vpop.permute.xlu0 %2948
        %2950 = vrot.lane.b32.xlu0 %v2866, 24
        %v2951 = vpop.permute.xlu0 %2950
        %2952 = vrot.lane.b32.xlu0 %v2867, 24
        %v2953 = vpop.permute.xlu0 %2952
        %2954 = vrot.lane.b32.xlu0 %v2868, 24
        %v2955 = vpop.permute.xlu0 %2954
        %2956 = vrot.lane.b32.xlu0 %v2869, 24
        %v2957 = vpop.permute.xlu0 %2956
        %2958 = vrot.lane.b32.xlu0 %v2870, 24
        %v2959 = vpop.permute.xlu0 %2958
        %2960 = vrot.lane.b32.xlu0 %v2871, 24
        %v2961 = vpop.permute.xlu0 %2960
        %2962 = vrot.lane.b32.xlu0 %v2872, 24
        %v2963 = vpop.permute.xlu0 %2962
        %2964 = vrot.lane.b32.xlu0 %v2873, 24
        %v2965 = vpop.permute.xlu0 %2964
        %2966 = vrot.lane.b32.xlu0 %v2874, 24
        %v2967 = vpop.permute.xlu0 %2966
        %2968 = vrot.lane.b32.xlu0 %v2875, 24
        %v2969 = vpop.permute.xlu0 %2968
        %2970 = vrot.lane.b32.xlu0 %v2876, 24
        %v2971 = vpop.permute.xlu0 %2970
        %2972 = vrot.lane.b32.xlu0 %v2877, 24
        %v2973 = vpop.permute.xlu0 %2972
        %vm3006 = vcmask 261312
        %3007 = vst.msk [vmem:[#allocation5] sm:$0xff] %vm3006, %v2911
        %3008 = vst.msk [vmem:[#allocation5 + $0x8] sm:$0xff] %vm3006, %v2913
        %3009 = vst.msk [vmem:[#allocation5 + $0x10] sm:$0xff] %vm3006, %v2915
        %3010 = vst.msk [vmem:[#allocation5 + $0x18] sm:$0xff] %vm3006, %v2917
        %3011 = vst.msk [vmem:[#allocation5 + $0x20] sm:$0xff] %vm3006, %v2919
        %3012 = vst.msk [vmem:[#allocation5 + $0x28] sm:$0xff] %vm3006, %v2921
        %3013 = vst.msk [vmem:[#allocation5 + $0x30] sm:$0xff] %vm3006, %v2923
        %3014 = vst.msk [vmem:[#allocation5 + $0x38] sm:$0xff] %vm3006, %v2925
        %3015 = vst.msk [vmem:[#allocation5 + $0x40] sm:$0xff] %vm3006, %v2927
        %3016 = vst.msk [vmem:[#allocation5 + $0x48] sm:$0xff] %vm3006, %v2929
        %3017 = vst.msk [vmem:[#allocation5 + $0x50] sm:$0xff] %vm3006, %v2931
        %3018 = vst.msk [vmem:[#allocation5 + $0x58] sm:$0xff] %vm3006, %v2933
        %3019 = vst.msk [vmem:[#allocation5 + $0x60] sm:$0xff] %vm3006, %v2935
        %3020 = vst.msk [vmem:[#allocation5 + $0x68] sm:$0xff] %vm3006, %v2937
        %3021 = vst.msk [vmem:[#allocation5 + $0x70] sm:$0xff] %vm3006, %v2939
        %3022 = vst.msk [vmem:[#allocation5 + $0x78] sm:$0xff] %vm3006, %v2941
        %3023 = vst.msk [vmem:[#allocation5 + $0x80] sm:$0xff] %vm3006, %v2943
        %3024 = vst.msk [vmem:[#allocation5 + $0x88] sm:$0xff] %vm3006, %v2945
        %3025 = vst.msk [vmem:[#allocation5 + $0x90] sm:$0xff] %vm3006, %v2947
        %3026 = vst.msk [vmem:[#allocation5 + $0x98] sm:$0xff] %vm3006, %v2949
        %3027 = vst.msk [vmem:[#allocation5 + $0xa0] sm:$0xff] %vm3006, %v2951
        %3028 = vst.msk [vmem:[#allocation5 + $0xa8] sm:$0xff] %vm3006, %v2953
        %3029 = vst.msk [vmem:[#allocation5 + $0xb0] sm:$0xff] %vm3006, %v2955
        %3030 = vst.msk [vmem:[#allocation5 + $0xb8] sm:$0xff] %vm3006, %v2957
        %3031 = vst.msk [vmem:[#allocation5 + $0xc0] sm:$0xff] %vm3006, %v2959
        %3032 = vst.msk [vmem:[#allocation5 + $0xc8] sm:$0xff] %vm3006, %v2961
        %3033 = vst.msk [vmem:[#allocation5 + $0xd0] sm:$0xff] %vm3006, %v2963
        %3034 = vst.msk [vmem:[#allocation5 + $0xd8] sm:$0xff] %vm3006, %v2965
        %3035 = vst.msk [vmem:[#allocation5 + $0xe0] sm:$0xff] %vm3006, %v2967
        %3036 = vst.msk [vmem:[#allocation5 + $0xe8] sm:$0xff] %vm3006, %v2969
        %3037 = vst.msk [vmem:[#allocation5 + $0xf0] sm:$0xff] %vm3006, %v2971
        %3038 = vst.msk [vmem:[#allocation5 + $0xf8] sm:$0xff] %vm3006, %v2973
        %v3039 = vld [vmem:[%s2363 + $0x1] sm:$0xff]
        %v3040 = vld [vmem:[%s2363 + $0x9] sm:$0xff]
        %v3041 = vld [vmem:[%s2363 + $0x19] sm:$0xff]
        %v3042 = vld [vmem:[%s2363 + $0x21] sm:$0xff]
        %v3043 = vld [vmem:[%s2363 + $0x31] sm:$0xff]
        %v3044 = vld [vmem:[%s2363 + $0x39] sm:$0xff]
        %v3045 = vld [vmem:[%s2363 + $0x49] sm:$0xff]
        %v3046 = vld [vmem:[%s2363 + $0x51] sm:$0xff]
        %v3047 = vld [vmem:[%s2363 + $0x61] sm:$0xff]
        %v3048 = vld [vmem:[%s2363 + $0x69] sm:$0xff]
        %v3049 = vld [vmem:[%s2363 + $0x79] sm:$0xff]
        %v3050 = vld [vmem:[%s2363 + $0x81] sm:$0xff]
        %v3051 = vld [vmem:[%s2363 + $0x91] sm:$0xff]
        %v3052 = vld [vmem:[%s2363 + $0x99] sm:$0xff]
        %v3053 = vld [vmem:[%s2363 + $0xa9] sm:$0xff]
        %v3054 = vld [vmem:[%s2363 + $0xb1] sm:$0xff]
        %v3055 = vld [vmem:[%s2363 + $0xc1] sm:$0xff]
        %v3056 = vld [vmem:[%s2363 + $0xc9] sm:$0xff]
        %v3057 = vld [vmem:[%s2363 + $0xd9] sm:$0xff]
        %v3058 = vld [vmem:[%s2363 + $0xe1] sm:$0xff]
        %v3059 = vld [vmem:[%s2363 + $0xf1] sm:$0xff]
        %v3060 = vld [vmem:[%s2363 + $0xf9] sm:$0xff]
        %v3061 = vld [vmem:[%s2363 + $0x109] sm:$0xff]
        %v3062 = vld [vmem:[%s2363 + $0x111] sm:$0xff]
        %v3063 = vld [vmem:[%s2363 + $0x121] sm:$0xff]
        %v3064 = vld [vmem:[%s2363 + $0x129] sm:$0xff]
        %v3065 = vld [vmem:[%s2363 + $0x139] sm:$0xff]
        %v3066 = vld [vmem:[%s2363 + $0x141] sm:$0xff]
        %v3067 = vld [vmem:[%s2363 + $0x151] sm:$0xff]
        %v3068 = vld [vmem:[%s2363 + $0x159] sm:$0xff]
        %v3069 = vld [vmem:[%s2363 + $0x169] sm:$0xff]
        %v3070 = vld [vmem:[%s2363 + $0x171] sm:$0xff]
        %3103 = vrot.lane.b32.xlu0 %v3039, 32
        %v3104 = vpop.permute.xlu0 %3103
        %3105 = vrot.lane.b32.xlu0 %v3040, 32
        %v3106 = vpop.permute.xlu0 %3105
        %3107 = vrot.lane.b32.xlu0 %v3041, 32
        %v3108 = vpop.permute.xlu0 %3107
        %3109 = vrot.lane.b32.xlu0 %v3042, 32
        %v3110 = vpop.permute.xlu0 %3109
        %3111 = vrot.lane.b32.xlu0 %v3043, 32
        %v3112 = vpop.permute.xlu0 %3111
        %3113 = vrot.lane.b32.xlu0 %v3044, 32
        %v3114 = vpop.permute.xlu0 %3113
        %3115 = vrot.lane.b32.xlu0 %v3045, 32
        %v3116 = vpop.permute.xlu0 %3115
        %3117 = vrot.lane.b32.xlu0 %v3046, 32
        %v3118 = vpop.permute.xlu0 %3117
        %3119 = vrot.lane.b32.xlu0 %v3047, 32
        %v3120 = vpop.permute.xlu0 %3119
        %3121 = vrot.lane.b32.xlu0 %v3048, 32
        %v3122 = vpop.permute.xlu0 %3121
        %3123 = vrot.lane.b32.xlu0 %v3049, 32
        %v3124 = vpop.permute.xlu0 %3123
        %3125 = vrot.lane.b32.xlu0 %v3050, 32
        %v3126 = vpop.permute.xlu0 %3125
        %3127 = vrot.lane.b32.xlu0 %v3051, 32
        %v3128 = vpop.permute.xlu0 %3127
        %3129 = vrot.lane.b32.xlu0 %v3052, 32
        %v3130 = vpop.permute.xlu0 %3129
        %3131 = vrot.lane.b32.xlu0 %v3053, 32
        %v3132 = vpop.permute.xlu0 %3131
        %3133 = vrot.lane.b32.xlu0 %v3054, 32
        %v3134 = vpop.permute.xlu0 %3133
        %3135 = vrot.lane.b32.xlu0 %v3055, 32
        %v3136 = vpop.permute.xlu0 %3135
        %3137 = vrot.lane.b32.xlu0 %v3056, 32
        %v3138 = vpop.permute.xlu0 %3137
        %3139 = vrot.lane.b32.xlu0 %v3057, 32
        %v3140 = vpop.permute.xlu0 %3139
        %3141 = vrot.lane.b32.xlu0 %v3058, 32
        %v3142 = vpop.permute.xlu0 %3141
        %3143 = vrot.lane.b32.xlu0 %v3059, 32
        %v3144 = vpop.permute.xlu0 %3143
        %3145 = vrot.lane.b32.xlu0 %v3060, 32
        %v3146 = vpop.permute.xlu0 %3145
        %3147 = vrot.lane.b32.xlu0 %v3061, 32
        %v3148 = vpop.permute.xlu0 %3147
        %3149 = vrot.lane.b32.xlu0 %v3062, 32
        %v3150 = vpop.permute.xlu0 %3149
        %3151 = vrot.lane.b32.xlu0 %v3063, 32
        %v3152 = vpop.permute.xlu0 %3151
        %3153 = vrot.lane.b32.xlu0 %v3064, 32
        %v3154 = vpop.permute.xlu0 %3153
        %3155 = vrot.lane.b32.xlu0 %v3065, 32
        %v3156 = vpop.permute.xlu0 %3155
        %3157 = vrot.lane.b32.xlu0 %v3066, 32
        %v3158 = vpop.permute.xlu0 %3157
        %3159 = vrot.lane.b32.xlu0 %v3067, 32
        %v3160 = vpop.permute.xlu0 %3159
        %3161 = vrot.lane.b32.xlu0 %v3068, 32
        %v3162 = vpop.permute.xlu0 %3161
        %3163 = vrot.lane.b32.xlu0 %v3069, 32
        %v3164 = vpop.permute.xlu0 %3163
        %3165 = vrot.lane.b32.xlu0 %v3070, 32
        %v3166 = vpop.permute.xlu0 %3165
        %vm3199 = vcmask 326912
        %3200 = vst.msk [vmem:[#allocation5] sm:$0xff] %vm3199, %v3104
        %3201 = vst.msk [vmem:[#allocation5 + $0x8] sm:$0xff] %vm3199, %v3106
        %3202 = vst.msk [vmem:[#allocation5 + $0x10] sm:$0xff] %vm3199, %v3108
        %3203 = vst.msk [vmem:[#allocation5 + $0x18] sm:$0xff] %vm3199, %v3110
        %3204 = vst.msk [vmem:[#allocation5 + $0x20] sm:$0xff] %vm3199, %v3112
        %3205 = vst.msk [vmem:[#allocation5 + $0x28] sm:$0xff] %vm3199, %v3114
        %3206 = vst.msk [vmem:[#allocation5 + $0x30] sm:$0xff] %vm3199, %v3116
        %3207 = vst.msk [vmem:[#allocation5 + $0x38] sm:$0xff] %vm3199, %v3118
        %3208 = vst.msk [vmem:[#allocation5 + $0x40] sm:$0xff] %vm3199, %v3120
        %3209 = vst.msk [vmem:[#allocation5 + $0x48] sm:$0xff] %vm3199, %v3122
        %3210 = vst.msk [vmem:[#allocation5 + $0x50] sm:$0xff] %vm3199, %v3124
        %3211 = vst.msk [vmem:[#allocation5 + $0x58] sm:$0xff] %vm3199, %v3126
        %3212 = vst.msk [vmem:[#allocation5 + $0x60] sm:$0xff] %vm3199, %v3128
        %3213 = vst.msk [vmem:[#allocation5 + $0x68] sm:$0xff] %vm3199, %v3130
        %3214 = vst.msk [vmem:[#allocation5 + $0x70] sm:$0xff] %vm3199, %v3132
        %3215 = vst.msk [vmem:[#allocation5 + $0x78] sm:$0xff] %vm3199, %v3134
        %3216 = vst.msk [vmem:[#allocation5 + $0x80] sm:$0xff] %vm3199, %v3136
        %3217 = vst.msk [vmem:[#allocation5 + $0x88] sm:$0xff] %vm3199, %v3138
        %3218 = vst.msk [vmem:[#allocation5 + $0x90] sm:$0xff] %vm3199, %v3140
        %3219 = vst.msk [vmem:[#allocation5 + $0x98] sm:$0xff] %vm3199, %v3142
        %3220 = vst.msk [vmem:[#allocation5 + $0xa0] sm:$0xff] %vm3199, %v3144
        %3221 = vst.msk [vmem:[#allocation5 + $0xa8] sm:$0xff] %vm3199, %v3146
        %3222 = vst.msk [vmem:[#allocation5 + $0xb0] sm:$0xff] %vm3199, %v3148
        %3223 = vst.msk [vmem:[#allocation5 + $0xb8] sm:$0xff] %vm3199, %v3150
        %3224 = vst.msk [vmem:[#allocation5 + $0xc0] sm:$0xff] %vm3199, %v3152
        %3225 = vst.msk [vmem:[#allocation5 + $0xc8] sm:$0xff] %vm3199, %v3154
        %3226 = vst.msk [vmem:[#allocation5 + $0xd0] sm:$0xff] %vm3199, %v3156
        %3227 = vst.msk [vmem:[#allocation5 + $0xd8] sm:$0xff] %vm3199, %v3158
        %3228 = vst.msk [vmem:[#allocation5 + $0xe0] sm:$0xff] %vm3199, %v3160
        %3229 = vst.msk [vmem:[#allocation5 + $0xe8] sm:$0xff] %vm3199, %v3162
        %3230 = vst.msk [vmem:[#allocation5 + $0xf0] sm:$0xff] %vm3199, %v3164
        %3231 = vst.msk [vmem:[#allocation5 + $0xf8] sm:$0xff] %vm3199, %v3166
        %v3232 = vld [vmem:[%s2363 + $0x2] sm:$0xff]
        %v3233 = vld [vmem:[%s2363 + $0xa] sm:$0xff]
        %v3234 = vld [vmem:[%s2363 + $0x1a] sm:$0xff]
        %v3235 = vld [vmem:[%s2363 + $0x22] sm:$0xff]
        %v3236 = vld [vmem:[%s2363 + $0x32] sm:$0xff]
        %v3237 = vld [vmem:[%s2363 + $0x3a] sm:$0xff]
        %v3238 = vld [vmem:[%s2363 + $0x4a] sm:$0xff]
        %v3239 = vld [vmem:[%s2363 + $0x52] sm:$0xff]
        %v3240 = vld [vmem:[%s2363 + $0x62] sm:$0xff]
        %v3241 = vld [vmem:[%s2363 + $0x6a] sm:$0xff]
        %v3242 = vld [vmem:[%s2363 + $0x7a] sm:$0xff]
        %v3243 = vld [vmem:[%s2363 + $0x82] sm:$0xff]
        %v3244 = vld [vmem:[%s2363 + $0x92] sm:$0xff]
        %v3245 = vld [vmem:[%s2363 + $0x9a] sm:$0xff]
        %v3246 = vld [vmem:[%s2363 + $0xaa] sm:$0xff]
        %v3247 = vld [vmem:[%s2363 + $0xb2] sm:$0xff]
        %v3248 = vld [vmem:[%s2363 + $0xc2] sm:$0xff]
        %v3249 = vld [vmem:[%s2363 + $0xca] sm:$0xff]
        %v3250 = vld [vmem:[%s2363 + $0xda] sm:$0xff]
        %v3251 = vld [vmem:[%s2363 + $0xe2] sm:$0xff]
        %v3252 = vld [vmem:[%s2363 + $0xf2] sm:$0xff]
        %v3253 = vld [vmem:[%s2363 + $0xfa] sm:$0xff]
        %v3254 = vld [vmem:[%s2363 + $0x10a] sm:$0xff]
        %v3255 = vld [vmem:[%s2363 + $0x112] sm:$0xff]
        %v3256 = vld [vmem:[%s2363 + $0x122] sm:$0xff]
        %v3257 = vld [vmem:[%s2363 + $0x12a] sm:$0xff]
        %v3258 = vld [vmem:[%s2363 + $0x13a] sm:$0xff]
        %v3259 = vld [vmem:[%s2363 + $0x142] sm:$0xff]
        %v3260 = vld [vmem:[%s2363 + $0x152] sm:$0xff]
        %v3261 = vld [vmem:[%s2363 + $0x15a] sm:$0xff]
        %v3262 = vld [vmem:[%s2363 + $0x16a] sm:$0xff]
        %v3263 = vld [vmem:[%s2363 + $0x172] sm:$0xff]
        %3296 = vrot.lane.b32.xlu0 %v3232, 40
        %v3297 = vpop.permute.xlu0 %3296
        %3298 = vrot.lane.b32.xlu0 %v3233, 40
        %v3299 = vpop.permute.xlu0 %3298
        %3300 = vrot.lane.b32.xlu0 %v3234, 40
        %v3301 = vpop.permute.xlu0 %3300
        %3302 = vrot.lane.b32.xlu0 %v3235, 40
        %v3303 = vpop.permute.xlu0 %3302
        %3304 = vrot.lane.b32.xlu0 %v3236, 40
        %v3305 = vpop.permute.xlu0 %3304
        %3306 = vrot.lane.b32.xlu0 %v3237, 40
        %v3307 = vpop.permute.xlu0 %3306
        %3308 = vrot.lane.b32.xlu0 %v3238, 40
        %v3309 = vpop.permute.xlu0 %3308
        %3310 = vrot.lane.b32.xlu0 %v3239, 40
        %v3311 = vpop.permute.xlu0 %3310
        %3312 = vrot.lane.b32.xlu0 %v3240, 40
        %v3313 = vpop.permute.xlu0 %3312
        %3314 = vrot.lane.b32.xlu0 %v3241, 40
        %v3315 = vpop.permute.xlu0 %3314
        %3316 = vrot.lane.b32.xlu0 %v3242, 40
        %v3317 = vpop.permute.xlu0 %3316
        %3318 = vrot.lane.b32.xlu0 %v3243, 40
        %v3319 = vpop.permute.xlu0 %3318
        %3320 = vrot.lane.b32.xlu0 %v3244, 40
        %v3321 = vpop.permute.xlu0 %3320
        %3322 = vrot.lane.b32.xlu0 %v3245, 40
        %v3323 = vpop.permute.xlu0 %3322
        %3324 = vrot.lane.b32.xlu0 %v3246, 40
        %v3325 = vpop.permute.xlu0 %3324
        %3326 = vrot.lane.b32.xlu0 %v3247, 40
        %v3327 = vpop.permute.xlu0 %3326
        %3328 = vrot.lane.b32.xlu0 %v3248, 40
        %v3329 = vpop.permute.xlu0 %3328
        %3330 = vrot.lane.b32.xlu0 %v3249, 40
        %v3331 = vpop.permute.xlu0 %3330
        %3332 = vrot.lane.b32.xlu0 %v3250, 40
        %v3333 = vpop.permute.xlu0 %3332
        %3334 = vrot.lane.b32.xlu0 %v3251, 40
        %v3335 = vpop.permute.xlu0 %3334
        %3336 = vrot.lane.b32.xlu0 %v3252, 40
        %v3337 = vpop.permute.xlu0 %3336
        %3338 = vrot.lane.b32.xlu0 %v3253, 40
        %v3339 = vpop.permute.xlu0 %3338
        %3340 = vrot.lane.b32.xlu0 %v3254, 40
        %v3341 = vpop.permute.xlu0 %3340
        %3342 = vrot.lane.b32.xlu0 %v3255, 40
        %v3343 = vpop.permute.xlu0 %3342
        %3344 = vrot.lane.b32.xlu0 %v3256, 40
        %v3345 = vpop.permute.xlu0 %3344
        %3346 = vrot.lane.b32.xlu0 %v3257, 40
        %v3347 = vpop.permute.xlu0 %3346
        %3348 = vrot.lane.b32.xlu0 %v3258, 40
        %v3349 = vpop.permute.xlu0 %3348
        %3350 = vrot.lane.b32.xlu0 %v3259, 40
        %v3351 = vpop.permute.xlu0 %3350
        %3352 = vrot.lane.b32.xlu0 %v3260, 40
        %v3353 = vpop.permute.xlu0 %3352
        %3354 = vrot.lane.b32.xlu0 %v3261, 40
        %v3355 = vpop.permute.xlu0 %3354
        %3356 = vrot.lane.b32.xlu0 %v3262, 40
        %v3357 = vpop.permute.xlu0 %3356
        %3358 = vrot.lane.b32.xlu0 %v3263, 40
        %v3359 = vpop.permute.xlu0 %3358
        %vm3392 = vcmask 392512
        %3393 = vst.msk [vmem:[#allocation5] sm:$0xff] %vm3392, %v3297
        %3394 = vst.msk [vmem:[#allocation5 + $0x8] sm:$0xff] %vm3392, %v3299
        %3395 = vst.msk [vmem:[#allocation5 + $0x10] sm:$0xff] %vm3392, %v3301
        %3396 = vst.msk [vmem:[#allocation5 + $0x18] sm:$0xff] %vm3392, %v3303
        %3397 = vst.msk [vmem:[#allocation5 + $0x20] sm:$0xff] %vm3392, %v3305
        %3398 = vst.msk [vmem:[#allocation5 + $0x28] sm:$0xff] %vm3392, %v3307
        %3399 = vst.msk [vmem:[#allocation5 + $0x30] sm:$0xff] %vm3392, %v3309
        %3400 = vst.msk [vmem:[#allocation5 + $0x38] sm:$0xff] %vm3392, %v3311
        %3401 = vst.msk [vmem:[#allocation5 + $0x40] sm:$0xff] %vm3392, %v3313
        %3402 = vst.msk [vmem:[#allocation5 + $0x48] sm:$0xff] %vm3392, %v3315
        %3403 = vst.msk [vmem:[#allocation5 + $0x50] sm:$0xff] %vm3392, %v3317
        %3404 = vst.msk [vmem:[#allocation5 + $0x58] sm:$0xff] %vm3392, %v3319
        %3405 = vst.msk [vmem:[#allocation5 + $0x60] sm:$0xff] %vm3392, %v3321
        %3406 = vst.msk [vmem:[#allocation5 + $0x68] sm:$0xff] %vm3392, %v3323
        %3407 = vst.msk [vmem:[#allocation5 + $0x70] sm:$0xff] %vm3392, %v3325
        %3408 = vst.msk [vmem:[#allocation5 + $0x78] sm:$0xff] %vm3392, %v3327
        %3409 = vst.msk [vmem:[#allocation5 + $0x80] sm:$0xff] %vm3392, %v3329
        %3410 = vst.msk [vmem:[#allocation5 + $0x88] sm:$0xff] %vm3392, %v3331
        %3411 = vst.msk [vmem:[#allocation5 + $0x90] sm:$0xff] %vm3392, %v3333
        %3412 = vst.msk [vmem:[#allocation5 + $0x98] sm:$0xff] %vm3392, %v3335
        %3413 = vst.msk [vmem:[#allocation5 + $0xa0] sm:$0xff] %vm3392, %v3337
        %3414 = vst.msk [vmem:[#allocation5 + $0xa8] sm:$0xff] %vm3392, %v3339
        %3415 = vst.msk [vmem:[#allocation5 + $0xb0] sm:$0xff] %vm3392, %v3341
        %3416 = vst.msk [vmem:[#allocation5 + $0xb8] sm:$0xff] %vm3392, %v3343
        %3417 = vst.msk [vmem:[#allocation5 + $0xc0] sm:$0xff] %vm3392, %v3345
        %3418 = vst.msk [vmem:[#allocation5 + $0xc8] sm:$0xff] %vm3392, %v3347
        %3419 = vst.msk [vmem:[#allocation5 + $0xd0] sm:$0xff] %vm3392, %v3349
        %3420 = vst.msk [vmem:[#allocation5 + $0xd8] sm:$0xff] %vm3392, %v3351
        %3421 = vst.msk [vmem:[#allocation5 + $0xe0] sm:$0xff] %vm3392, %v3353
        %3422 = vst.msk [vmem:[#allocation5 + $0xe8] sm:$0xff] %vm3392, %v3355
        %3423 = vst.msk [vmem:[#allocation5 + $0xf0] sm:$0xff] %vm3392, %v3357
        %3424 = vst.msk [vmem:[#allocation5 + $0xf8] sm:$0xff] %vm3392, %v3359
        %s3425 = scalar_lea.vmem [#allocation3], 48
        %v3426 = vld [vmem:[%s3425] sm:$0xff]
        %v3427 = vld [vmem:[%s3425 + $0x8] sm:$0xff]
        %v3428 = vld [vmem:[%s3425 + $0x18] sm:$0xff]
        %v3429 = vld [vmem:[%s3425 + $0x20] sm:$0xff]
        %v3430 = vld [vmem:[%s3425 + $0x30] sm:$0xff]
        %v3431 = vld [vmem:[%s3425 + $0x38] sm:$0xff]
        %v3432 = vld [vmem:[%s3425 + $0x48] sm:$0xff]
        %v3433 = vld [vmem:[%s3425 + $0x50] sm:$0xff]
        %v3434 = vld [vmem:[%s3425 + $0x60] sm:$0xff]
        %v3435 = vld [vmem:[%s3425 + $0x68] sm:$0xff]
        %v3436 = vld [vmem:[%s3425 + $0x78] sm:$0xff]
        %v3437 = vld [vmem:[%s3425 + $0x80] sm:$0xff]
        %v3438 = vld [vmem:[%s3425 + $0x90] sm:$0xff]
        %v3439 = vld [vmem:[%s3425 + $0x98] sm:$0xff]
        %v3440 = vld [vmem:[%s3425 + $0xa8] sm:$0xff]
        %v3441 = vld [vmem:[%s3425 + $0xb0] sm:$0xff]
        %v3442 = vld [vmem:[%s3425 + $0xc0] sm:$0xff]
        %v3443 = vld [vmem:[%s3425 + $0xc8] sm:$0xff]
        %v3444 = vld [vmem:[%s3425 + $0xd8] sm:$0xff]
        %v3445 = vld [vmem:[%s3425 + $0xe0] sm:$0xff]
        %v3446 = vld [vmem:[%s3425 + $0xf0] sm:$0xff]
        %v3447 = vld [vmem:[%s3425 + $0xf8] sm:$0xff]
        %v3448 = vld [vmem:[%s3425 + $0x108] sm:$0xff]
        %v3449 = vld [vmem:[%s3425 + $0x110] sm:$0xff]
        %v3450 = vld [vmem:[%s3425 + $0x120] sm:$0xff]
        %v3451 = vld [vmem:[%s3425 + $0x128] sm:$0xff]
        %v3452 = vld [vmem:[%s3425 + $0x138] sm:$0xff]
        %v3453 = vld [vmem:[%s3425 + $0x140] sm:$0xff]
        %v3454 = vld [vmem:[%s3425 + $0x150] sm:$0xff]
        %v3455 = vld [vmem:[%s3425 + $0x158] sm:$0xff]
        %v3456 = vld [vmem:[%s3425 + $0x168] sm:$0xff]
        %v3457 = vld [vmem:[%s3425 + $0x170] sm:$0xff]
        %3490 = vrot.lane.b32.xlu0 %v3426, 48
        %v3491 = vpop.permute.xlu0 %3490
        %3492 = vrot.lane.b32.xlu0 %v3427, 48
        %v3493 = vpop.permute.xlu0 %3492
        %3494 = vrot.lane.b32.xlu0 %v3428, 48
        %v3495 = vpop.permute.xlu0 %3494
        %3496 = vrot.lane.b32.xlu0 %v3429, 48
        %v3497 = vpop.permute.xlu0 %3496
        %3498 = vrot.lane.b32.xlu0 %v3430, 48
        %v3499 = vpop.permute.xlu0 %3498
        %3500 = vrot.lane.b32.xlu0 %v3431, 48
        %v3501 = vpop.permute.xlu0 %3500
        %3502 = vrot.lane.b32.xlu0 %v3432, 48
        %v3503 = vpop.permute.xlu0 %3502
        %3504 = vrot.lane.b32.xlu0 %v3433, 48
        %v3505 = vpop.permute.xlu0 %3504
        %3506 = vrot.lane.b32.xlu0 %v3434, 48
        %v3507 = vpop.permute.xlu0 %3506
        %3508 = vrot.lane.b32.xlu0 %v3435, 48
        %v3509 = vpop.permute.xlu0 %3508
        %3510 = vrot.lane.b32.xlu0 %v3436, 48
        %v3511 = vpop.permute.xlu0 %3510
        %3512 = vrot.lane.b32.xlu0 %v3437, 48
        %v3513 = vpop.permute.xlu0 %3512
        %3514 = vrot.lane.b32.xlu0 %v3438, 48
        %v3515 = vpop.permute.xlu0 %3514
        %3516 = vrot.lane.b32.xlu0 %v3439, 48
        %v3517 = vpop.permute.xlu0 %3516
        %3518 = vrot.lane.b32.xlu0 %v3440, 48
        %v3519 = vpop.permute.xlu0 %3518
        %3520 = vrot.lane.b32.xlu0 %v3441, 48
        %v3521 = vpop.permute.xlu0 %3520
        %3522 = vrot.lane.b32.xlu0 %v3442, 48
        %v3523 = vpop.permute.xlu0 %3522
        %3524 = vrot.lane.b32.xlu0 %v3443, 48
        %v3525 = vpop.permute.xlu0 %3524
        %3526 = vrot.lane.b32.xlu0 %v3444, 48
        %v3527 = vpop.permute.xlu0 %3526
        %3528 = vrot.lane.b32.xlu0 %v3445, 48
        %v3529 = vpop.permute.xlu0 %3528
        %3530 = vrot.lane.b32.xlu0 %v3446, 48
        %v3531 = vpop.permute.xlu0 %3530
        %3532 = vrot.lane.b32.xlu0 %v3447, 48
        %v3533 = vpop.permute.xlu0 %3532
        %3534 = vrot.lane.b32.xlu0 %v3448, 48
        %v3535 = vpop.permute.xlu0 %3534
        %3536 = vrot.lane.b32.xlu0 %v3449, 48
        %v3537 = vpop.permute.xlu0 %3536
        %3538 = vrot.lane.b32.xlu0 %v3450, 48
        %v3539 = vpop.permute.xlu0 %3538
        %3540 = vrot.lane.b32.xlu0 %v3451, 48
        %v3541 = vpop.permute.xlu0 %3540
        %3542 = vrot.lane.b32.xlu0 %v3452, 48
        %v3543 = vpop.permute.xlu0 %3542
        %3544 = vrot.lane.b32.xlu0 %v3453, 48
        %v3545 = vpop.permute.xlu0 %3544
        %3546 = vrot.lane.b32.xlu0 %v3454, 48
        %v3547 = vpop.permute.xlu0 %3546
        %3548 = vrot.lane.b32.xlu0 %v3455, 48
        %v3549 = vpop.permute.xlu0 %3548
        %3550 = vrot.lane.b32.xlu0 %v3456, 48
        %v3551 = vpop.permute.xlu0 %3550
        %3552 = vrot.lane.b32.xlu0 %v3457, 48
        %v3553 = vpop.permute.xlu0 %3552
        %vm3586 = vcmask 458112
        %3587 = vst.msk [vmem:[#allocation5] sm:$0xff] %vm3586, %v3491
        %3588 = vst.msk [vmem:[#allocation5 + $0x8] sm:$0xff] %vm3586, %v3493
        %3589 = vst.msk [vmem:[#allocation5 + $0x10] sm:$0xff] %vm3586, %v3495
        %3590 = vst.msk [vmem:[#allocation5 + $0x18] sm:$0xff] %vm3586, %v3497
        %3591 = vst.msk [vmem:[#allocation5 + $0x20] sm:$0xff] %vm3586, %v3499
        %3592 = vst.msk [vmem:[#allocation5 + $0x28] sm:$0xff] %vm3586, %v3501
        %3593 = vst.msk [vmem:[#allocation5 + $0x30] sm:$0xff] %vm3586, %v3503
        %3594 = vst.msk [vmem:[#allocation5 + $0x38] sm:$0xff] %vm3586, %v3505
        %3595 = vst.msk [vmem:[#allocation5 + $0x40] sm:$0xff] %vm3586, %v3507
        %3596 = vst.msk [vmem:[#allocation5 + $0x48] sm:$0xff] %vm3586, %v3509
        %3597 = vst.msk [vmem:[#allocation5 + $0x50] sm:$0xff] %vm3586, %v3511
        %3598 = vst.msk [vmem:[#allocation5 + $0x58] sm:$0xff] %vm3586, %v3513
        %3599 = vst.msk [vmem:[#allocation5 + $0x60] sm:$0xff] %vm3586, %v3515
        %3600 = vst.msk [vmem:[#allocation5 + $0x68] sm:$0xff] %vm3586, %v3517
        %3601 = vst.msk [vmem:[#allocation5 + $0x70] sm:$0xff] %vm3586, %v3519
        %3602 = vst.msk [vmem:[#allocation5 + $0x78] sm:$0xff] %vm3586, %v3521
        %3603 = vst.msk [vmem:[#allocation5 + $0x80] sm:$0xff] %vm3586, %v3523
        %3604 = vst.msk [vmem:[#allocation5 + $0x88] sm:$0xff] %vm3586, %v3525
        %3605 = vst.msk [vmem:[#allocation5 + $0x90] sm:$0xff] %vm3586, %v3527
        %3606 = vst.msk [vmem:[#allocation5 + $0x98] sm:$0xff] %vm3586, %v3529
        %3607 = vst.msk [vmem:[#allocation5 + $0xa0] sm:$0xff] %vm3586, %v3531
        %3608 = vst.msk [vmem:[#allocation5 + $0xa8] sm:$0xff] %vm3586, %v3533
        %3609 = vst.msk [vmem:[#allocation5 + $0xb0] sm:$0xff] %vm3586, %v3535
        %3610 = vst.msk [vmem:[#allocation5 + $0xb8] sm:$0xff] %vm3586, %v3537
        %3611 = vst.msk [vmem:[#allocation5 + $0xc0] sm:$0xff] %vm3586, %v3539
        %3612 = vst.msk [vmem:[#allocation5 + $0xc8] sm:$0xff] %vm3586, %v3541
        %3613 = vst.msk [vmem:[#allocation5 + $0xd0] sm:$0xff] %vm3586, %v3543
        %3614 = vst.msk [vmem:[#allocation5 + $0xd8] sm:$0xff] %vm3586, %v3545
        %3615 = vst.msk [vmem:[#allocation5 + $0xe0] sm:$0xff] %vm3586, %v3547
        %3616 = vst.msk [vmem:[#allocation5 + $0xe8] sm:$0xff] %vm3586, %v3549
        %3617 = vst.msk [vmem:[#allocation5 + $0xf0] sm:$0xff] %vm3586, %v3551
        %3618 = vst.msk [vmem:[#allocation5 + $0xf8] sm:$0xff] %vm3586, %v3553
        %v3619 = vld [vmem:[%s3425 + $0x1] sm:$0xff]
        %v3620 = vld [vmem:[%s3425 + $0x9] sm:$0xff]
        %v3621 = vld [vmem:[%s3425 + $0x19] sm:$0xff]
        %v3622 = vld [vmem:[%s3425 + $0x21] sm:$0xff]
        %v3623 = vld [vmem:[%s3425 + $0x31] sm:$0xff]
        %v3624 = vld [vmem:[%s3425 + $0x39] sm:$0xff]
        %v3625 = vld [vmem:[%s3425 + $0x49] sm:$0xff]
        %v3626 = vld [vmem:[%s3425 + $0x51] sm:$0xff]
        %v3627 = vld [vmem:[%s3425 + $0x61] sm:$0xff]
        %v3628 = vld [vmem:[%s3425 + $0x69] sm:$0xff]
        %v3629 = vld [vmem:[%s3425 + $0x79] sm:$0xff]
        %v3630 = vld [vmem:[%s3425 + $0x81] sm:$0xff]
        %v3631 = vld [vmem:[%s3425 + $0x91] sm:$0xff]
        %v3632 = vld [vmem:[%s3425 + $0x99] sm:$0xff]
        %v3633 = vld [vmem:[%s3425 + $0xa9] sm:$0xff]
        %v3634 = vld [vmem:[%s3425 + $0xb1] sm:$0xff]
        %v3635 = vld [vmem:[%s3425 + $0xc1] sm:$0xff]
        %v3636 = vld [vmem:[%s3425 + $0xc9] sm:$0xff]
        %v3637 = vld [vmem:[%s3425 + $0xd9] sm:$0xff]
        %v3638 = vld [vmem:[%s3425 + $0xe1] sm:$0xff]
        %v3639 = vld [vmem:[%s3425 + $0xf1] sm:$0xff]
        %v3640 = vld [vmem:[%s3425 + $0xf9] sm:$0xff]
        %v3641 = vld [vmem:[%s3425 + $0x109] sm:$0xff]
        %v3642 = vld [vmem:[%s3425 + $0x111] sm:$0xff]
        %v3643 = vld [vmem:[%s3425 + $0x121] sm:$0xff]
        %v3644 = vld [vmem:[%s3425 + $0x129] sm:$0xff]
        %v3645 = vld [vmem:[%s3425 + $0x139] sm:$0xff]
        %v3646 = vld [vmem:[%s3425 + $0x141] sm:$0xff]
        %v3647 = vld [vmem:[%s3425 + $0x151] sm:$0xff]
        %v3648 = vld [vmem:[%s3425 + $0x159] sm:$0xff]
        %v3649 = vld [vmem:[%s3425 + $0x169] sm:$0xff]
        %v3650 = vld [vmem:[%s3425 + $0x171] sm:$0xff]
        %3683 = vrot.lane.b32.xlu0 %v3619, 56
        %v3684 = vpop.permute.xlu0 %3683
        %3685 = vrot.lane.b32.xlu0 %v3620, 56
        %v3686 = vpop.permute.xlu0 %3685
        %3687 = vrot.lane.b32.xlu0 %v3621, 56
        %v3688 = vpop.permute.xlu0 %3687
        %3689 = vrot.lane.b32.xlu0 %v3622, 56
        %v3690 = vpop.permute.xlu0 %3689
        %3691 = vrot.lane.b32.xlu0 %v3623, 56
        %v3692 = vpop.permute.xlu0 %3691
        %3693 = vrot.lane.b32.xlu0 %v3624, 56
        %v3694 = vpop.permute.xlu0 %3693
        %3695 = vrot.lane.b32.xlu0 %v3625, 56
        %v3696 = vpop.permute.xlu0 %3695
        %3697 = vrot.lane.b32.xlu0 %v3626, 56
        %v3698 = vpop.permute.xlu0 %3697
        %3699 = vrot.lane.b32.xlu0 %v3627, 56
        %v3700 = vpop.permute.xlu0 %3699
        %3701 = vrot.lane.b32.xlu0 %v3628, 56
        %v3702 = vpop.permute.xlu0 %3701
        %3703 = vrot.lane.b32.xlu0 %v3629, 56
        %v3704 = vpop.permute.xlu0 %3703
        %3705 = vrot.lane.b32.xlu0 %v3630, 56
        %v3706 = vpop.permute.xlu0 %3705
        %3707 = vrot.lane.b32.xlu0 %v3631, 56
        %v3708 = vpop.permute.xlu0 %3707
        %3709 = vrot.lane.b32.xlu0 %v3632, 56
        %v3710 = vpop.permute.xlu0 %3709
        %3711 = vrot.lane.b32.xlu0 %v3633, 56
        %v3712 = vpop.permute.xlu0 %3711
        %3713 = vrot.lane.b32.xlu0 %v3634, 56
        %v3714 = vpop.permute.xlu0 %3713
        %3715 = vrot.lane.b32.xlu0 %v3635, 56
        %v3716 = vpop.permute.xlu0 %3715
        %3717 = vrot.lane.b32.xlu0 %v3636, 56
        %v3718 = vpop.permute.xlu0 %3717
        %3719 = vrot.lane.b32.xlu0 %v3637, 56
        %v3720 = vpop.permute.xlu0 %3719
        %3721 = vrot.lane.b32.xlu0 %v3638, 56
        %v3722 = vpop.permute.xlu0 %3721
        %3723 = vrot.lane.b32.xlu0 %v3639, 56
        %v3724 = vpop.permute.xlu0 %3723
        %3725 = vrot.lane.b32.xlu0 %v3640, 56
        %v3726 = vpop.permute.xlu0 %3725
        %3727 = vrot.lane.b32.xlu0 %v3641, 56
        %v3728 = vpop.permute.xlu0 %3727
        %3729 = vrot.lane.b32.xlu0 %v3642, 56
        %v3730 = vpop.permute.xlu0 %3729
        %3731 = vrot.lane.b32.xlu0 %v3643, 56
        %v3732 = vpop.permute.xlu0 %3731
        %3733 = vrot.lane.b32.xlu0 %v3644, 56
        %v3734 = vpop.permute.xlu0 %3733
        %3735 = vrot.lane.b32.xlu0 %v3645, 56
        %v3736 = vpop.permute.xlu0 %3735
        %3737 = vrot.lane.b32.xlu0 %v3646, 56
        %v3738 = vpop.permute.xlu0 %3737
        %3739 = vrot.lane.b32.xlu0 %v3647, 56
        %v3740 = vpop.permute.xlu0 %3739
        %3741 = vrot.lane.b32.xlu0 %v3648, 56
        %v3742 = vpop.permute.xlu0 %3741
        %3743 = vrot.lane.b32.xlu0 %v3649, 56
        %v3744 = vpop.permute.xlu0 %3743
        %3745 = vrot.lane.b32.xlu0 %v3650, 56
        %v3746 = vpop.permute.xlu0 %3745
        %vm3779 = vcmask 523712
        %3780 = vst.msk [vmem:[#allocation5] sm:$0xff] %vm3779, %v3684
        %3781 = vst.msk [vmem:[#allocation5 + $0x8] sm:$0xff] %vm3779, %v3686
        %3782 = vst.msk [vmem:[#allocation5 + $0x10] sm:$0xff] %vm3779, %v3688
        %3783 = vst.msk [vmem:[#allocation5 + $0x18] sm:$0xff] %vm3779, %v3690
        %3784 = vst.msk [vmem:[#allocation5 + $0x20] sm:$0xff] %vm3779, %v3692
        %3785 = vst.msk [vmem:[#allocation5 + $0x28] sm:$0xff] %vm3779, %v3694
        %3786 = vst.msk [vmem:[#allocation5 + $0x30] sm:$0xff] %vm3779, %v3696
        %3787 = vst.msk [vmem:[#allocation5 + $0x38] sm:$0xff] %vm3779, %v3698
        %3788 = vst.msk [vmem:[#allocation5 + $0x40] sm:$0xff] %vm3779, %v3700
        %3789 = vst.msk [vmem:[#allocation5 + $0x48] sm:$0xff] %vm3779, %v3702
        %3790 = vst.msk [vmem:[#allocation5 + $0x50] sm:$0xff] %vm3779, %v3704
        %3791 = vst.msk [vmem:[#allocation5 + $0x58] sm:$0xff] %vm3779, %v3706
        %3792 = vst.msk [vmem:[#allocation5 + $0x60] sm:$0xff] %vm3779, %v3708
        %3793 = vst.msk [vmem:[#allocation5 + $0x68] sm:$0xff] %vm3779, %v3710
        %3794 = vst.msk [vmem:[#allocation5 + $0x70] sm:$0xff] %vm3779, %v3712
        %3795 = vst.msk [vmem:[#allocation5 + $0x78] sm:$0xff] %vm3779, %v3714
        %3796 = vst.msk [vmem:[#allocation5 + $0x80] sm:$0xff] %vm3779, %v3716
        %3797 = vst.msk [vmem:[#allocation5 + $0x88] sm:$0xff] %vm3779, %v3718
        %3798 = vst.msk [vmem:[#allocation5 + $0x90] sm:$0xff] %vm3779, %v3720
        %3799 = vst.msk [vmem:[#allocation5 + $0x98] sm:$0xff] %vm3779, %v3722
        %3800 = vst.msk [vmem:[#allocation5 + $0xa0] sm:$0xff] %vm3779, %v3724
        %3801 = vst.msk [vmem:[#allocation5 + $0xa8] sm:$0xff] %vm3779, %v3726
        %3802 = vst.msk [vmem:[#allocation5 + $0xb0] sm:$0xff] %vm3779, %v3728
        %3803 = vst.msk [vmem:[#allocation5 + $0xb8] sm:$0xff] %vm3779, %v3730
        %3804 = vst.msk [vmem:[#allocation5 + $0xc0] sm:$0xff] %vm3779, %v3732
        %3805 = vst.msk [vmem:[#allocation5 + $0xc8] sm:$0xff] %vm3779, %v3734
        %3806 = vst.msk [vmem:[#allocation5 + $0xd0] sm:$0xff] %vm3779, %v3736
        %3807 = vst.msk [vmem:[#allocation5 + $0xd8] sm:$0xff] %vm3779, %v3738
        %3808 = vst.msk [vmem:[#allocation5 + $0xe0] sm:$0xff] %vm3779, %v3740
        %3809 = vst.msk [vmem:[#allocation5 + $0xe8] sm:$0xff] %vm3779, %v3742
        %3810 = vst.msk [vmem:[#allocation5 + $0xf0] sm:$0xff] %vm3779, %v3744
        %3811 = vst.msk [vmem:[#allocation5 + $0xf8] sm:$0xff] %vm3779, %v3746
        %v3812 = vld [vmem:[%s3425 + $0x2] sm:$0xff]
        %v3813 = vld [vmem:[%s3425 + $0xa] sm:$0xff]
        %v3814 = vld [vmem:[%s3425 + $0x1a] sm:$0xff]
        %v3815 = vld [vmem:[%s3425 + $0x22] sm:$0xff]
        %v3816 = vld [vmem:[%s3425 + $0x32] sm:$0xff]
        %v3817 = vld [vmem:[%s3425 + $0x3a] sm:$0xff]
        %v3818 = vld [vmem:[%s3425 + $0x4a] sm:$0xff]
        %v3819 = vld [vmem:[%s3425 + $0x52] sm:$0xff]
        %v3820 = vld [vmem:[%s3425 + $0x62] sm:$0xff]
        %v3821 = vld [vmem:[%s3425 + $0x6a] sm:$0xff]
        %v3822 = vld [vmem:[%s3425 + $0x7a] sm:$0xff]
        %v3823 = vld [vmem:[%s3425 + $0x82] sm:$0xff]
        %v3824 = vld [vmem:[%s3425 + $0x92] sm:$0xff]
        %v3825 = vld [vmem:[%s3425 + $0x9a] sm:$0xff]
        %v3826 = vld [vmem:[%s3425 + $0xaa] sm:$0xff]
        %v3827 = vld [vmem:[%s3425 + $0xb2] sm:$0xff]
        %v3828 = vld [vmem:[%s3425 + $0xc2] sm:$0xff]
        %v3829 = vld [vmem:[%s3425 + $0xca] sm:$0xff]
        %v3830 = vld [vmem:[%s3425 + $0xda] sm:$0xff]
        %v3831 = vld [vmem:[%s3425 + $0xe2] sm:$0xff]
        %v3832 = vld [vmem:[%s3425 + $0xf2] sm:$0xff]
        %v3833 = vld [vmem:[%s3425 + $0xfa] sm:$0xff]
        %v3834 = vld [vmem:[%s3425 + $0x10a] sm:$0xff]
        %v3835 = vld [vmem:[%s3425 + $0x112] sm:$0xff]
        %v3836 = vld [vmem:[%s3425 + $0x122] sm:$0xff]
        %v3837 = vld [vmem:[%s3425 + $0x12a] sm:$0xff]
        %v3838 = vld [vmem:[%s3425 + $0x13a] sm:$0xff]
        %v3839 = vld [vmem:[%s3425 + $0x142] sm:$0xff]
        %v3840 = vld [vmem:[%s3425 + $0x152] sm:$0xff]
        %v3841 = vld [vmem:[%s3425 + $0x15a] sm:$0xff]
        %v3842 = vld [vmem:[%s3425 + $0x16a] sm:$0xff]
        %v3843 = vld [vmem:[%s3425 + $0x172] sm:$0xff]
        %3876 = vrot.lane.b32.xlu0 %v3812, 64
        %v3877 = vpop.permute.xlu0 %3876
        %3878 = vrot.lane.b32.xlu0 %v3813, 64
        %v3879 = vpop.permute.xlu0 %3878
        %3880 = vrot.lane.b32.xlu0 %v3814, 64
        %v3881 = vpop.permute.xlu0 %3880
        %3882 = vrot.lane.b32.xlu0 %v3815, 64
        %v3883 = vpop.permute.xlu0 %3882
        %3884 = vrot.lane.b32.xlu0 %v3816, 64
        %v3885 = vpop.permute.xlu0 %3884
        %3886 = vrot.lane.b32.xlu0 %v3817, 64
        %v3887 = vpop.permute.xlu0 %3886
        %3888 = vrot.lane.b32.xlu0 %v3818, 64
        %v3889 = vpop.permute.xlu0 %3888
        %3890 = vrot.lane.b32.xlu0 %v3819, 64
        %v3891 = vpop.permute.xlu0 %3890
        %3892 = vrot.lane.b32.xlu0 %v3820, 64
        %v3893 = vpop.permute.xlu0 %3892
        %3894 = vrot.lane.b32.xlu0 %v3821, 64
        %v3895 = vpop.permute.xlu0 %3894
        %3896 = vrot.lane.b32.xlu0 %v3822, 64
        %v3897 = vpop.permute.xlu0 %3896
        %3898 = vrot.lane.b32.xlu0 %v3823, 64
        %v3899 = vpop.permute.xlu0 %3898
        %3900 = vrot.lane.b32.xlu0 %v3824, 64
        %v3901 = vpop.permute.xlu0 %3900
        %3902 = vrot.lane.b32.xlu0 %v3825, 64
        %v3903 = vpop.permute.xlu0 %3902
        %3904 = vrot.lane.b32.xlu0 %v3826, 64
        %v3905 = vpop.permute.xlu0 %3904
        %3906 = vrot.lane.b32.xlu0 %v3827, 64
        %v3907 = vpop.permute.xlu0 %3906
        %3908 = vrot.lane.b32.xlu0 %v3828, 64
        %v3909 = vpop.permute.xlu0 %3908
        %3910 = vrot.lane.b32.xlu0 %v3829, 64
        %v3911 = vpop.permute.xlu0 %3910
        %3912 = vrot.lane.b32.xlu0 %v3830, 64
        %v3913 = vpop.permute.xlu0 %3912
        %3914 = vrot.lane.b32.xlu0 %v3831, 64
        %v3915 = vpop.permute.xlu0 %3914
        %3916 = vrot.lane.b32.xlu0 %v3832, 64
        %v3917 = vpop.permute.xlu0 %3916
        %3918 = vrot.lane.b32.xlu0 %v3833, 64
        %v3919 = vpop.permute.xlu0 %3918
        %3920 = vrot.lane.b32.xlu0 %v3834, 64
        %v3921 = vpop.permute.xlu0 %3920
        %3922 = vrot.lane.b32.xlu0 %v3835, 64
        %v3923 = vpop.permute.xlu0 %3922
        %3924 = vrot.lane.b32.xlu0 %v3836, 64
        %v3925 = vpop.permute.xlu0 %3924
        %3926 = vrot.lane.b32.xlu0 %v3837, 64
        %v3927 = vpop.permute.xlu0 %3926
        %3928 = vrot.lane.b32.xlu0 %v3838, 64
        %v3929 = vpop.permute.xlu0 %3928
        %3930 = vrot.lane.b32.xlu0 %v3839, 64
        %v3931 = vpop.permute.xlu0 %3930
        %3932 = vrot.lane.b32.xlu0 %v3840, 64
        %v3933 = vpop.permute.xlu0 %3932
        %3934 = vrot.lane.b32.xlu0 %v3841, 64
        %v3935 = vpop.permute.xlu0 %3934
        %3936 = vrot.lane.b32.xlu0 %v3842, 64
        %v3937 = vpop.permute.xlu0 %3936
        %3938 = vrot.lane.b32.xlu0 %v3843, 64
        %v3939 = vpop.permute.xlu0 %3938
        %vm3972 = vcmask 589312
        %3973 = vst.msk [vmem:[#allocation5] sm:$0xff] %vm3972, %v3877
        %3974 = vst.msk [vmem:[#allocation5 + $0x8] sm:$0xff] %vm3972, %v3879
        %3975 = vst.msk [vmem:[#allocation5 + $0x10] sm:$0xff] %vm3972, %v3881
        %3976 = vst.msk [vmem:[#allocation5 + $0x18] sm:$0xff] %vm3972, %v3883
        %3977 = vst.msk [vmem:[#allocation5 + $0x20] sm:$0xff] %vm3972, %v3885
        %3978 = vst.msk [vmem:[#allocation5 + $0x28] sm:$0xff] %vm3972, %v3887
        %3979 = vst.msk [vmem:[#allocation5 + $0x30] sm:$0xff] %vm3972, %v3889
        %3980 = vst.msk [vmem:[#allocation5 + $0x38] sm:$0xff] %vm3972, %v3891
        %3981 = vst.msk [vmem:[#allocation5 + $0x40] sm:$0xff] %vm3972, %v3893
        %3982 = vst.msk [vmem:[#allocation5 + $0x48] sm:$0xff] %vm3972, %v3895
        %3983 = vst.msk [vmem:[#allocation5 + $0x50] sm:$0xff] %vm3972, %v3897
        %3984 = vst.msk [vmem:[#allocation5 + $0x58] sm:$0xff] %vm3972, %v3899
        %3985 = vst.msk [vmem:[#allocation5 + $0x60] sm:$0xff] %vm3972, %v3901
        %3986 = vst.msk [vmem:[#allocation5 + $0x68] sm:$0xff] %vm3972, %v3903
        %3987 = vst.msk [vmem:[#allocation5 + $0x70] sm:$0xff] %vm3972, %v3905
        %3988 = vst.msk [vmem:[#allocation5 + $0x78] sm:$0xff] %vm3972, %v3907
        %3989 = vst.msk [vmem:[#allocation5 + $0x80] sm:$0xff] %vm3972, %v3909
        %3990 = vst.msk [vmem:[#allocation5 + $0x88] sm:$0xff] %vm3972, %v3911
        %3991 = vst.msk [vmem:[#allocation5 + $0x90] sm:$0xff] %vm3972, %v3913
        %3992 = vst.msk [vmem:[#allocation5 + $0x98] sm:$0xff] %vm3972, %v3915
        %3993 = vst.msk [vmem:[#allocation5 + $0xa0] sm:$0xff] %vm3972, %v3917
        %3994 = vst.msk [vmem:[#allocation5 + $0xa8] sm:$0xff] %vm3972, %v3919
        %3995 = vst.msk [vmem:[#allocation5 + $0xb0] sm:$0xff] %vm3972, %v3921
        %3996 = vst.msk [vmem:[#allocation5 + $0xb8] sm:$0xff] %vm3972, %v3923
        %3997 = vst.msk [vmem:[#allocation5 + $0xc0] sm:$0xff] %vm3972, %v3925
        %3998 = vst.msk [vmem:[#allocation5 + $0xc8] sm:$0xff] %vm3972, %v3927
        %3999 = vst.msk [vmem:[#allocation5 + $0xd0] sm:$0xff] %vm3972, %v3929
        %4000 = vst.msk [vmem:[#allocation5 + $0xd8] sm:$0xff] %vm3972, %v3931
        %4001 = vst.msk [vmem:[#allocation5 + $0xe0] sm:$0xff] %vm3972, %v3933
        %4002 = vst.msk [vmem:[#allocation5 + $0xe8] sm:$0xff] %vm3972, %v3935
        %4003 = vst.msk [vmem:[#allocation5 + $0xf0] sm:$0xff] %vm3972, %v3937
        %4004 = vst.msk [vmem:[#allocation5 + $0xf8] sm:$0xff] %vm3972, %v3939
        %v4005 = vld [vmem:[%s3] sm:$0xf]
        %v4006 = vld [vmem:[#allocation5] sm:$0xff]
        %v4007 = vld [vmem:[#allocation5 + $0x8] sm:$0xff]
        %v4008 = vld [vmem:[#allocation5 + $0x10] sm:$0xff]
        %v4009 = vld [vmem:[#allocation5 + $0x18] sm:$0xff]
        %v4010 = vld [vmem:[#allocation5 + $0x20] sm:$0xff]
        %v4011 = vld [vmem:[#allocation5 + $0x28] sm:$0xff]
        %v4012 = vld [vmem:[#allocation5 + $0x30] sm:$0xff]
        %v4013 = vld [vmem:[#allocation5 + $0x38] sm:$0xff]
        %v4014 = vld [vmem:[#allocation5 + $0x40] sm:$0xff]
        %v4015 = vld [vmem:[#allocation5 + $0x48] sm:$0xff]
        %v4016 = vld [vmem:[#allocation5 + $0x50] sm:$0xff]
        %v4017 = vld [vmem:[#allocation5 + $0x58] sm:$0xff]
        %v4018 = vld [vmem:[#allocation5 + $0x60] sm:$0xff]
        %v4019 = vld [vmem:[#allocation5 + $0x68] sm:$0xff]
        %v4020 = vld [vmem:[#allocation5 + $0x70] sm:$0xff]
        %v4021 = vld [vmem:[#allocation5 + $0x78] sm:$0xff]
        %v4022 = vld [vmem:[#allocation5 + $0x80] sm:$0xff]
        %v4023 = vld [vmem:[#allocation5 + $0x88] sm:$0xff]
        %v4024 = vld [vmem:[#allocation5 + $0x90] sm:$0xff]
        %v4025 = vld [vmem:[#allocation5 + $0x98] sm:$0xff]
        %v4026 = vld [vmem:[#allocation5 + $0xa0] sm:$0xff]
        %v4027 = vld [vmem:[#allocation5 + $0xa8] sm:$0xff]
        %v4028 = vld [vmem:[#allocation5 + $0xb0] sm:$0xff]
        %v4029 = vld [vmem:[#allocation5 + $0xb8] sm:$0xff]
        %v4030 = vld [vmem:[#allocation5 + $0xc0] sm:$0xff]
        %v4031 = vld [vmem:[#allocation5 + $0xc8] sm:$0xff]
        %v4032 = vld [vmem:[#allocation5 + $0xd0] sm:$0xff]
        %v4033 = vld [vmem:[#allocation5 + $0xd8] sm:$0xff]
        %v4034 = vld [vmem:[#allocation5 + $0xe0] sm:$0xff]
        %v4035 = vld [vmem:[#allocation5 + $0xe8] sm:$0xff]
        %v4036 = vld [vmem:[#allocation5 + $0xf0] sm:$0xff]
        %v4037 = vld [vmem:[#allocation5 + $0xf8] sm:$0xff]
        %v4038 = vpack.c.bf16 %v4007, %v4006
        %v4039 = vpack.c.bf16 %v4009, %v4008
        %v4040 = vpack.c.bf16 %v4011, %v4010
        %v4041 = vpack.c.bf16 %v4013, %v4012
        %v4042 = vpack.c.bf16 %v4015, %v4014
        %v4043 = vpack.c.bf16 %v4017, %v4016
        %v4044 = vpack.c.bf16 %v4019, %v4018
        %v4045 = vpack.c.bf16 %v4021, %v4020
        %v4046 = vpack.c.bf16 %v4023, %v4022
        %v4047 = vpack.c.bf16 %v4025, %v4024
        %v4048 = vpack.c.bf16 %v4027, %v4026
        %v4049 = vpack.c.bf16 %v4029, %v4028
        %v4050 = vpack.c.bf16 %v4031, %v4030
        %v4051 = vpack.c.bf16 %v4033, %v4032
        %v4052 = vpack.c.bf16 %v4035, %v4034
        %v4053 = vpack.c.bf16 %v4037, %v4036
        %v4054 = vld [vmem:[%s4] sm:$0xff]
        %4056 = vset.pattern.permute.xlu0 0
        %4057 = vperm.xlu0 %4056, %v4054
        %v4058 = vpop.permute.xlu0 %4057
        %vm4060 = vcmask 588800
        %v4062 = vsel %vm4060, %v4005, 0
        %v4065 = vsel %vm4060, %v4038, 0
        %v4068 = vsel %vm4060, %v4039, 0
        %v4071 = vsel %vm4060, %v4040, 0
        %v4074 = vsel %vm4060, %v4041, 0
        %v4077 = vsel %vm4060, %v4042, 0
        %v4080 = vsel %vm4060, %v4043, 0
        %v4083 = vsel %vm4060, %v4044, 0
        %v4086 = vsel %vm4060, %v4045, 0
        %v4089 = vsel %vm4060, %v4046, 0
        %v4092 = vsel %vm4060, %v4047, 0
        %v4095 = vsel %vm4060, %v4048, 0
        %v4098 = vsel %vm4060, %v4049, 0
        %v4101 = vsel %vm4060, %v4050, 0
        %v4104 = vsel %vm4060, %v4051, 0
        %v4107 = vsel %vm4060, %v4052, 0
        %v4110 = vsel %vm4060, %v4053, 0
        %4112 = vmatprep.subr.bf16.mxu0 0
        %4113 = vmatpush1.bf16.xpose.msra.mxu0 %v4086
        %4114 = vmatprep.subr.bf16.mxu0 0
        %4115 = vmatpush1.bf16.xpose.msra.mxu0 %v4083
        %4116 = vmatprep.subr.bf16.mxu0 0
        %4117 = vmatpush1.bf16.xpose.msra.mxu0 %v4080
        %4118 = vmatprep.subr.bf16.mxu0 0
        %4119 = vmatpush1.bf16.xpose.msra.mxu0 %v4077
        %4120 = vmatprep.subr.bf16.mxu0 0
        %4121 = vmatpush1.bf16.xpose.msra.mxu0 %v4074
        %4122 = vmatprep.subr.bf16.mxu0 0
        %4123 = vmatpush1.bf16.xpose.msra.mxu0 %v4071
        %4124 = vmatprep.subr.bf16.mxu0 0
        %4125 = vmatpush1.bf16.xpose.msra.mxu0 %v4068
        %4126 = vmatprep.subr.bf16.mxu0 0
        %4127 = vmatpush1.bf16.xpose.msra.mxu0 %v4065
        %4128 = vmatprep.subr.bf16.mxu0 0
        %4129 = vmatpush2.bf16.xpose.msra.mxu0 %v4110
        %4130 = vmatprep.subr.bf16.mxu0 0
        %4131 = vmatpush2.bf16.xpose.msra.mxu0 %v4107
        %4132 = vmatprep.subr.bf16.mxu0 0
        %4133 = vmatpush2.bf16.xpose.msra.mxu0 %v4104
        %4134 = vmatprep.subr.bf16.mxu0 0
        %4135 = vmatpush2.bf16.xpose.msra.mxu0 %v4101
        %4136 = vmatprep.subr.bf16.mxu0 0
        %4137 = vmatpush2.bf16.xpose.msra.mxu0 %v4098
        %4138 = vmatprep.subr.bf16.mxu0 0
        %4139 = vmatpush2.bf16.xpose.msra.mxu0 %v4095
        %4140 = vmatprep.subr.bf16.mxu0 0
        %4141 = vmatpush2.bf16.xpose.msra.mxu0 %v4092
        %4142 = vmatprep.subr.bf16.mxu0 0
        %4143 = vmatpush2.bf16.xpose.msra.mxu0 %v4089
        %4144 = vmatprep.mubr.bf16.mxu0 0
        %4145 = vmatmul.mubr.bf16.gmra.mxu0 %v4062
        %v4146 = vpop.f32.mrf.mxu0
        %v4147 = vadd.f32 %v4058, %v4146
        %v4148 = vpop.f32.mrf.mxu0
        %v4149 = vadd.f32 %v4058, %v4148
        %v4150 = vpop.f32.mrf.mxu0
        %v4151 = vpop.f32.mrf.mxu0
        %4152 = vdwg.mxu0
        %v4153 = vmax.f32 %v4147, 0.0
        %v4154 = vmax.f32 %v4149, 0.0
        %4155 = vst [vmem:[%s217] sm:$0xff] %v4153
        %4156 = vst [vmem:[%s217 + $0x8] sm:$0xff] %v4154
        %s4157 = sand.u32 %s137, 1
        %s4158 = scalar_lea.sflag [#allocation7], %s4157
        %s4159 = sand.u32 %s137, 1
        %s4160 = smul.addr %s4159, 16
        %s4161 = scalar_lea.vmem [#allocation6], %s4160
        // Predicated region
        $region41: #{tpu_custom_call.1} parent=39 // pred_check
          %p4162 = pneg %p147
        $region42: #{tpu_custom_call.1} parent=39 // pred_check_branch
          %4164 = sbr.rel (%p4162) target = $region44
        $region43: #{tpu_custom_call.1} parent=39 // pred_region
          %s4166 = ssub.s32 256, 256
          %4167 = vsyncadd %s4158, %s4166
          %s4168 = smul.addr %s19, 2
          %s4169 = smul.addr %s4168, 128
          %s4170 = scalar_lea.hbm %s5, %s4169
          %s4172 = sshll.u32 %s4161, 4
          %s4173 = int_to_ptr.vmem [resolvable:$true] %s4172
          %4175 = dma.vmem_to_hbm [thread:$0]  %s4173, 256, %s4170, %s4158
        $region44: #{tpu_custom_call.1} parent=39 // pred_fallthru
          _
      $region40: #{tpu_custom_call.1} parent=5 // pred_fallthru
        _
      %p4176 = scmp.le.s32.totalorder 2, %s14
      // Predicated region
      $region45: #{tpu_custom_call.1} parent=5 // pred_check
        %p4177 = pneg %p4176
      $region46: #{tpu_custom_call.1} parent=5 // pred_check_branch
        %4179 = sbr.rel (%p4177) target = $region48
      $region47: #{tpu_custom_call.1} parent=5 // pred_region
        %s4180 = ssub.s32 %s14, 2
        // Predicated region
        $region49: #{tpu_custom_call.1} parent=47 // pred_check
          %p4181 = pneg %p153
        $region50: #{tpu_custom_call.1} parent=47 // pred_check_branch
          %4183 = sbr.rel (%p4181) target = $region52
        $region51: #{tpu_custom_call.1} parent=47 // pred_region
          %s4184 = sand.u32 %s138, 1
          %s4185 = scalar_lea.sflag [#allocation7], %s4184
          %s4186 = sand.u32 %s138, 1
          %s4187 = smul.addr %s4186, 16
          %s4188 = scalar_lea.vmem [#allocation6], %s4187
          %4189 = dma.done %s4185, 256
        $region52: #{tpu_custom_call.1} parent=47 // pred_fallthru
          _
      $region48: #{tpu_custom_call.1} parent=5 // pred_fallthru
        _
    $region6: #{tpu_custom_call.1} parent=1 // loop_footer
      %s18 = sadd.s32 1, %s14
    $region7: #{tpu_custom_call.1} parent=1 // loop_footer_branch
      %13 = sbr.rel target = $region3
    $region8: #{tpu_custom_call.1} parent=1 // loop_exit
      _
    %4190 = vsyncpa [#allocation7], 1
    %s4191 = scalar_lea.sflag [#allocation7], 1
    %4192 = vsyncpa %s4191, 1

</llo_original>
